<compile_context>
chip_gen: v6e
topology: v6e:2x2x1
jax: 0.10.0
libtpu: 0.0.40
codegen_flags: <defaults>
</compile_context>

<pallas_src>
import functools

import jax
import jax.numpy as jnp
import numpy as np
from jax.experimental import pallas as pl
from jax.experimental.pallas import tpu as pltpu


# ---------------------------------------------------------------------------
# Pallas kernel: one grid step == one block of T_blk time steps.
# ---------------------------------------------------------------------------
def _rekt_block_kernel(
    lt_ref,        # SMEM (B, S_pad) int32 scalar prefetch: last-seen time slot
    c_sf_ref,      # (T_blk, bb, d)  gap_embed @ Wsf_g + bsf
    c_out_ref,     # (T_blk, bb, d)  now_pro  @ Wo_p  + bo1
    c_x_ref,       # (T_blk, bb, 2d) [X@Was_x + bas | X@Wss_x + bss]
    skill0_ref,    # (1, d)   skill_state parameter row 0
    ls_ref,        # (1, d)   ls_state parameter
    w_gate_ref,    # (2d, 2d) blockdiag(wsf_s, waf_a)
    caf_ref,       # (1, d)   all-forget constant (time_embed[1]@Waf_g + baf)
    w_big_ref,     # (2d, 3d) [[Wo_s, 0, Wss_s], [Wo_a, Was_a, 0]]
    wo2_ref,       # (1, d)   head row
    bo2_ref,       # (1, 1)
    out_ref,       # (T_blk, bb) time-major output block
    skill_scr,     # VMEM (S_pad*bb, d) per-time-slot skill states
    all_scr,       # VMEM (bb, d)       running all_state
    gather_scr,    # VMEM (bb, d)       gathered last skill state
    *, t_blk, d,
):
    b = pl.program_id(0)
    tb = pl.program_id(1)
    bb = all_scr.shape[0]
    b_off = b * bb

    @pl.when(tb == 0)
    def _init():
        # Only slot 0 can ever be read before being written (lt==0 aliasing);
        # all other slots are written at step t before any later read.
        skill_scr[0:bb, :] = jnp.broadcast_to(skill0_ref[...], (bb, d))
        all_scr[...] = jnp.broadcast_to(ls_ref[...], (bb, d))

    # Hoisted reads / broadcasts (JAX does not CSE broadcast_in_dim).
    w_gate = w_gate_ref[...]
    w_big = w_big_ref[...]
    caf_b = jnp.broadcast_to(caf_ref[...], (bb, d))
    wo2_row = wo2_ref[...]
    bo2 = bo2_ref[...]

    def mm(a, w):
        # Default (single-pass) MXU precision with f32 accumulation.
        return jnp.dot(a, w, preferred_element_type=jnp.float32)

    p_cols = []
    for lt_step in range(t_blk):                 # static, fully unrolled
        t = tb * t_blk + lt_step

        # --- SMEM-indexed gather: lbss[bi] = skill_scr[lt[bi, t]*bb + bi] ---
        if bb <= 8:                              # tiny batch block: unroll
            for bi in range(bb):
                lt_val = lt_ref[b_off + bi, t]
                gather_scr[pl.ds(bi, 1), :] = \
                    skill_scr[pl.ds(lt_val * bb + bi, 1), :]
        else:
            def gather_body(bi, carry):
                lt_val = lt_ref[b_off + bi, t]
                gather_scr[pl.ds(bi, 1), :] = \
                    skill_scr[pl.ds(lt_val * bb + bi, 1), :]
                return carry
            jax.lax.fori_loop(0, bb, gather_body, 0)

        lbss = gather_scr[...]                                   # (bb, d)
        all_state = all_scr[...]                                 # (bb, d)
        cat1 = jnp.concatenate([lbss, all_state], axis=-1)       # (bb, 2d)

        # Both forget gates in one MXU pass (block-diagonal weights).
        gate_bias = jnp.concatenate([c_sf_ref[lt_step], caf_b], axis=-1)
        gates = jax.nn.sigmoid(mm(cat1, w_gate) + gate_bias)     # [sf | af]
        forgotten = cat1 * gates                                 # [lbss_f | lbas]
        lbss_f = forgotten[:, :d]
        lbas = forgotten[:, d:]

        # One fused MXU pass:
        #   zw[:, :d]   = lbss_f@Wo_s + lbas@Wo_a   (head pre-activation)
        #   zw[:, d:2d] = lbas@Was_a                (all-state update)
        #   zw[:, 2d:]  = lbss_f@Wss_s              (skill-state update)
        # TODO(synk): for d >= 128 split this back into separate matmuls
        # (the fused K/N no longer fits a single MXU tile).
        zw = mm(forgotten, w_big)

        h = jnp.maximum(zw[:, :d] + c_out_ref[lt_step], 0.0)
        # Prediction head as a VPU lane reduce (keeps the N=1 matmul off the
        # serial MXU path).
        p = jax.nn.sigmoid(
            jnp.sum(h * wo2_row, axis=-1, keepdims=True) + bo2)  # (bb, 1)
        p_cols.append(p)

        upd = jnp.tanh(zw[:, d:] + c_x_ref[lt_step])             # (bb, 2d)
        all_scr[...] = lbas + upd[:, :d]
        new_skill = lbss_f + upd[:, d:]
        skill_scr[pl.ds(pl.multiple_of(t * bb, bb), bb), :] = new_skill

    # One small lane->sublane transpose and one full-block store per T_blk
    # steps (no per-step VMEM read-modify-write of the output).
    out_ref[...] = jnp.concatenate(p_cols, axis=1).T


# ---------------------------------------------------------------------------
# Host-side helpers.
# ---------------------------------------------------------------------------
def _compute_last_time(next_skill, skill_max):
    """lt[b, t] = last step t' < t with next_skill[b, t'] == next_skill[b, t], else 0."""
    B, S = next_skill.shape
    bidx = jnp.arange(B)

    def step(lst, inp):
        t, sk = inp
        lt = lst[bidx, sk]
        lst = lst.at[bidx, sk].set(t)
        return lst, lt

    _, lts = jax.lax.scan(
        step, jnp.zeros((B, skill_max), jnp.int32),
        (jnp.arange(S, dtype=jnp.int32), next_skill.T))
    return lts.T  # (B, S) int32


def rekt_concept_forward(params, last_problem, last_skill, last_ans,
                         next_problem, next_skill, next_ans, *,
                         batch_block=None, time_block=8):
    # last_problem / last_ans / next_problem are unused (matches the PyTorch
    # forward); last_skill only supplies batch / seq sizes.
    del last_problem, last_ans, next_problem
    B = last_skill.shape[0]
    S = last_skill.shape[-1]
    d = params["skill_embed"].shape[1]
    skill_max = params["skill_embed"].shape[0]

    bb = B if batch_block is None else batch_block
    assert B % bb == 0           # v7x: pick bb so B//bb >= 2 to use both cores
    nb = B // bb

    t_blk = time_block
    assert t_blk % 8 == 0        # output block (T_blk, bb) must obey (8,128)
    S_pad = ((S + t_blk - 1) // t_blk) * t_blk
    n_tb = S_pad // t_blk

    hi = jax.lax.Precision.HIGHEST  # host precompute only (cheap, parallel)

    next_pro_embed = params["skill_embed"][next_skill]              # (B, S, d)
    next_X = next_pro_embed + params["ans_embed"][next_ans]         # (B, S, d)

    lt = _compute_last_time(next_skill, skill_max)                  # (B, S)
    gap = jnp.arange(S, dtype=jnp.int32)[None, :] - lt
    gap_embed = params["time_embed"][gap]                           # (B, S, d)

    # TODO(synk): PyTorch's einsum('ij,jj->ij', res_p, sigmoid(g)) only
    # type-checks when seq == 199; we apply sigmoid(diag(g))[:seq].
    gsig = jax.nn.sigmoid(jnp.diagonal(params["g"])[:S])            # (S,)

    Wsf, bsf = params["sf_w"], params["sf_b"]
    Waf, baf = params["af_w"], params["af_b"]
    Was, bas = params["as_w"], params["as_b"]
    Wss, bss = params["ss_w"], params["ss_b"]
    Wo1, bo1 = params["out1_w"], params["out1_b"]
    Wo2, bo2 = params["out2_w"], params["out2_b"]

    wsf_s, wsf_g = Wsf[:, :d].T, Wsf[:, d:].T
    waf_a = Waf[:, :d].T
    wo_a, wo_s, wo_p = Wo1[:, :d].T, Wo1[:, d:2 * d].T, Wo1[:, 2 * d:].T
    was_a, was_x = Was[:, :d].T, Was[:, d:].T
    wss_s, wss_x = Wss[:, :d].T, Wss[:, d:].T

    # all_time_gap is all-ones -> time_embed[1]'s contribution is constant.
    caf = jnp.dot(params["time_embed"][1:2], Waf[:, d:].T, precision=hi) + baf[None, :]

    # Block-diagonal fused weights for the two serial MXU passes.
    zero = jnp.zeros((d, d), jnp.float32)
    w_gate = jnp.block([[wsf_s, zero], [zero, waf_a]])              # (2d, 2d)
    w_big = jnp.block([[wo_s, zero, wss_s],
                       [wo_a, was_a, zero]])                        # (2d, 3d)

    # Precompute all state-independent per-step terms on the host.
    c_sf = jnp.einsum("bsd,de->bse", gap_embed, wsf_g, precision=hi) + bsf
    c_out = jnp.einsum("bsd,de->bse", next_pro_embed, wo_p, precision=hi) + bo1
    c_x = jnp.concatenate(
        [jnp.einsum("bsd,de->bse", next_X, was_x, precision=hi) + bas,
         jnp.einsum("bsd,de->bse", next_X, wss_x, precision=hi) + bss], axis=-1)

    def to_stream(x):   # (B, S, c) -> zero-padded time-major (S_pad, B, c) f32
        x = jnp.transpose(x, (1, 0, 2)).astype(jnp.float32)
        return jnp.pad(x, ((0, S_pad - S), (0, 0), (0, 0)))

    c_sf_s, c_out_s, c_x_s = to_stream(c_sf), to_stream(c_out), to_stream(c_x)
    lt_pad = jnp.pad(lt, ((0, 0), (0, S_pad - S))).astype(jnp.int32)

    skill0 = params["skill_state"][0:1]                             # (1, d)
    ls_init = params["ls_state"]                                    # (1, d)

    const = lambda shape: pl.BlockSpec(shape, lambda b, tb, lt_r: (0, 0))
    kern = functools.partial(_rekt_block_kernel, t_blk=t_blk, d=d)

    out_tm = pl.pallas_call(
        kern,
        out_shape=jax.ShapeDtypeStruct((S_pad, B), jnp.float32),
        grid_spec=pltpu.PrefetchScalarGridSpec(
            num_scalar_prefetch=1,
            grid=(nb, n_tb),
            in_specs=[
                pl.BlockSpec((t_blk, bb, d), lambda b, tb, lt_r: (tb, b, 0)),
                pl.BlockSpec((t_blk, bb, d), lambda b, tb, lt_r: (tb, b, 0)),
                pl.BlockSpec((t_blk, bb, 2 * d), lambda b, tb, lt_r: (tb, b, 0)),
                const((1, d)),              # skill0
                const((1, d)),              # ls_init
                const((2 * d, 2 * d)),      # w_gate
                const((1, d)),              # caf
                const((2 * d, 3 * d)),      # w_big
                const((1, d)),              # wo2 row
                const((1, 1)),              # bo2
            ],
            out_specs=pl.BlockSpec((t_blk, bb), lambda b, tb, lt_r: (tb, b)),
            scratch_shapes=[
                pltpu.VMEM((S_pad * bb, d), jnp.float32),   # skill states
                pltpu.VMEM((bb, d), jnp.float32),           # all_state
                pltpu.VMEM((bb, d), jnp.float32),           # gather buffer
            ],
        ),
        compiler_params=pltpu.CompilerParams(
            dimension_semantics=("parallel", "arbitrary"),
            vmem_limit_bytes=48 * 1024 * 1024),
    )(lt_pad, c_sf_s, c_out_s, c_x_s, skill0, ls_init,
      w_gate, caf, w_big, Wo2, bo2.reshape(1, 1))

    # Drop the time padding, go batch-major, apply the diag(g) scaling.
    return out_tm[:S].T * gsig[None, :]                             # (B, S)


# ---------------------------------------------------------------------------
# Deterministic parameter construction (only the parameters the forward uses).
# ---------------------------------------------------------------------------
def make_params(key, pro_max, skill_max, d):
    del pro_max  # pro_embed / pro_state etc. are unused by forward
    keys = jax.random.split(key, 12)
    u = lambda k, shape: jax.random.uniform(k, shape, jnp.float32)

    def lin(k, out_f, in_f):
        k1, k2 = jax.random.split(k)
        bound = 1.0 / (in_f ** 0.5)
        W = jax.random.uniform(k1, (out_f, in_f), jnp.float32, -bound, bound)
        b = jax.random.uniform(k2, (out_f,), jnp.float32, -bound, bound)
        return W, b

    params = {
        "skill_embed": u(keys[0], (skill_max, d)),
        "ans_embed": u(keys[1], (2, d)),
        "time_embed": u(keys[2], (200, d)),
        "ls_state": u(keys[3], (1, d)),
        "skill_state": u(keys[4], (199, d)),
        "g": u(keys[5], (199, 199)),
    }
    params["sf_w"], params["sf_b"] = lin(keys[6], d, 2 * d)
    params["af_w"], params["af_b"] = lin(keys[7], d, 2 * d)
    params["as_w"], params["as_b"] = lin(keys[8], d, 2 * d)
    params["ss_w"], params["ss_b"] = lin(keys[9], d, 2 * d)
    params["out1_w"], params["out1_b"] = lin(keys[10], d, 3 * d)
    params["out2_w"], params["out2_b"] = lin(keys[11], 1, d)
    return params


# ---------------------------------------------------------------------------
# Pure numpy reference (mirrors the PyTorch forward, eval-mode dropout).
# ---------------------------------------------------------------------------
def reference_forward(p, next_skill, next_ans):
    skill_embed, ans_embed = p["skill_embed"], p["ans_embed"]
    time_embed, ls_state = p["time_embed"], p["ls_state"]
    skill_state_p, g = p["skill_state"], p["g"]
    Wsf, bsf = p["sf_w"], p["sf_b"]
    Waf, baf = p["af_w"], p["af_b"]
    Was, bas = p["as_w"], p["as_b"]
    Wss, bss = p["ss_w"], p["ss_b"]
    Wo1, bo1 = p["out1_w"], p["out1_b"]
    Wo2, bo2 = p["out2_w"], p["out2_b"]

    B, S = next_skill.shape
    sig = lambda x: 1.0 / (1.0 + np.exp(-x))
    bidx = np.arange(B)

    next_pro_embed = skill_embed[next_skill]
    next_X = next_pro_embed + ans_embed[next_ans]
    last_skill_time = np.zeros((B, skill_embed.shape[0]), dtype=np.int64)
    skill_state = np.tile(skill_state_p[None], (B, 1, 1)).astype(np.float32)
    all_state = np.tile(ls_state, (B, 1)).astype(np.float32)
    te1 = np.tile(time_embed[1][None], (B, 1))

    res_p = []
    for t in range(S):
        now_pro = next_pro_embed[:, t]
        sk = next_skill[:, t]
        lt = last_skill_time[bidx, sk]
        lbss = skill_state[bidx, lt]
        gap_emb = time_embed[t - lt]
        sf = sig(np.concatenate([lbss, gap_emb], -1) @ Wsf.T + bsf)
        lbss = lbss * sf
        af = sig(np.concatenate([all_state, te1], -1) @ Waf.T + baf)
        lbas = all_state * af
        final = np.concatenate([lbas, lbss, now_pro], -1)
        h = np.maximum(final @ Wo1.T + bo1, 0.0)
        P = sig(h @ Wo2.T + bo2)[:, 0]
        res_p.append(P)
        all_state = lbas + np.tanh(
            np.concatenate([lbas, next_X[:, t]], -1) @ Was.T + bas)
        item_skill = lbss + np.tanh(
            np.concatenate([lbss, next_X[:, t]], -1) @ Wss.T + bss)
        last_skill_time[bidx, sk] = t
        skill_state[:, t] = item_skill

    res = np.stack(res_p, 0).T                                      # (B, S)
    gdiag = sig(np.diag(g))[:S]
    return res * gdiag[None, :]


if __name__ == "__main__":
    key = jax.random.PRNGKey(0)
    B, S, d = 2, 8, 32
    pro_max, skill_max = 16, 8

    kp, k1, k2, k3, k4, k5, k6 = jax.random.split(key, 7)
    params = make_params(kp, pro_max, skill_max, d)

    next_skill = jax.random.randint(k1, (B, S), 0, skill_max, jnp.int32)
    next_ans = jax.random.randint(k2, (B, S), 0, 2, jnp.int32)
    next_problem = jax.random.randint(k3, (B, S), 0, pro_max, jnp.int32)
    last_skill = jax.random.randint(k4, (B, S), 0, skill_max, jnp.int32)
    last_ans = jax.random.randint(k5, (B, S), 0, 2, jnp.int32)
    last_problem = jax.random.randint(k6, (B, S), 0, pro_max, jnp.int32)

    out = rekt_concept_forward(params, last_problem, last_skill, last_ans,
                               next_problem, next_skill, next_ans)
    out = jax.block_until_ready(out)

    ref = reference_forward({k: np.asarray(v) for k, v in params.items()},
                            np.asarray(next_skill), np.asarray(next_ans))

    assert out.shape == (B, S), out.shape
    # Tolerance allows default (single-pass bf16) MXU precision through the
    # S-step recurrence; outputs are sigmoid-bounded so abs error dominates.
    err = float(np.max(np.abs(np.asarray(out) - ref)))
    assert np.allclose(np.asarray(out), ref, atol=5e-3, rtol=5e-3), err
    print("KERNEL_OK")
</pallas_src>

<mosaic_0001>
module attributes {stable_mosaic.version = 11 : i64} {
  func.func @_rekt_block_kernel(%arg0: i32, %arg1: i32, %arg2: memref<2x8xi32, #tpu.memory_space<smem>>, %arg3: memref<8x2x32xf32, #tpu.memory_space<vmem>>, %arg4: memref<8x2x32xf32, #tpu.memory_space<vmem>>, %arg5: memref<8x2x64xf32, #tpu.memory_space<vmem>>, %arg6: memref<1x32xf32, #tpu.memory_space<vmem>>, %arg7: memref<1x32xf32, #tpu.memory_space<vmem>>, %arg8: memref<64x64xf32, #tpu.memory_space<vmem>>, %arg9: memref<1x32xf32, #tpu.memory_space<vmem>>, %arg10: memref<64x96xf32, #tpu.memory_space<vmem>>, %arg11: memref<1x32xf32, #tpu.memory_space<vmem>>, %arg12: memref<1x1xf32, #tpu.memory_space<vmem>>, %arg13: memref<8x2xf32, #tpu.memory_space<vmem>>, %arg14: memref<16x32xf32, #tpu.memory_space<vmem>>, %arg15: memref<2x32xf32, #tpu.memory_space<vmem>>, %arg16: memref<2x32xf32, #tpu.memory_space<vmem>>) attributes {dimension_semantics = [#tpu.dimension_semantics<parallel>, #tpu.dimension_semantics<arbitrary>], iteration_bounds = array<i64: 1, 1>, scalar_prefetch = 1 : i64, scratch_operands = 3 : i64, tpu.core_type = #tpu.core_type<tc>, window_params = [{transform_indices = @transform_0, window_bounds = array<i64: 8, 2, 32>}, {transform_indices = @transform_1, window_bounds = array<i64: 8, 2, 32>}, {transform_indices = @transform_2, window_bounds = array<i64: 8, 2, 64>}, {pipeline_mode = #tpu.pipeline_mode<synchronous>, transform_indices = @transform_3, window_bounds = array<i64: 1, 32>}, {pipeline_mode = #tpu.pipeline_mode<synchronous>, transform_indices = @transform_4, window_bounds = array<i64: 1, 32>}, {pipeline_mode = #tpu.pipeline_mode<synchronous>, transform_indices = @transform_5, window_bounds = array<i64: 64, 64>}, {pipeline_mode = #tpu.pipeline_mode<synchronous>, transform_indices = @transform_6, window_bounds = array<i64: 1, 32>}, {pipeline_mode = #tpu.pipeline_mode<synchronous>, transform_indices = @transform_7, window_bounds = array<i64: 64, 96>}, {pipeline_mode = #tpu.pipeline_mode<synchronous>, transform_indices = @transform_8, window_bounds = array<i64: 1, 32>}, {pipeline_mode = #tpu.pipeline_mode<synchronous>, transform_indices = @transform_9, window_bounds = array<i64: 1, 1>}, {transform_indices = @transform_10, window_bounds = array<i64: 8, 2>}]} {
    %c2_i32 = arith.constant 2 : i32
    %0 = arith.muli %arg0, %c2_i32 : i32
    %c0_i32 = arith.constant 0 : i32
    %1 = arith.cmpi eq, %arg1, %c0_i32 : i32
    %2 = arith.extui %1 : i1 to i32
    %c0_i32_0 = arith.constant 0 : i32
    %3 = arith.cmpi ne, %2, %c0_i32_0 : i32
    scf.if %3 {
      %c0_293 = arith.constant 0 : index
      %c0_294 = arith.constant 0 : index
      %558 = vector.load %arg6[%c0_293, %c0_294] : memref<1x32xf32, #tpu.memory_space<vmem>>, vector<1x32xf32>
      %559 = vector.shape_cast %558 : vector<1x32xf32> to vector<1x32xf32>
      %560 = vector.broadcast %559 : vector<1x32xf32> to vector<2x32xf32>
      %c0_295 = arith.constant 0 : index
      %c0_296 = arith.constant 0 : index
      %561 = vector.load %arg14[%c0_295, %c0_296] : memref<16x32xf32, #tpu.memory_space<vmem>>, vector<2x32xf32>
      tpu.vector_store %arg14[%c0_295, %c0_296], %560 {strides = array<i32>} : memref<16x32xf32, #tpu.memory_space<vmem>>, vector<2x32xf32>,
      %c0_297 = arith.constant 0 : index
      %c0_298 = arith.constant 0 : index
      %562 = vector.load %arg7[%c0_297, %c0_298] : memref<1x32xf32, #tpu.memory_space<vmem>>, vector<1x32xf32>
      %563 = vector.shape_cast %562 : vector<1x32xf32> to vector<1x32xf32>
      %564 = vector.broadcast %563 : vector<1x32xf32> to vector<2x32xf32>
      %c0_299 = arith.constant 0 : index
      %c0_300 = arith.constant 0 : index
      %565 = vector.load %arg15[%c0_299, %c0_300] : memref<2x32xf32, #tpu.memory_space<vmem>>, vector<2x32xf32>
      tpu.vector_store %arg15[%c0_299, %c0_300], %564 {strides = array<i32>} : memref<2x32xf32, #tpu.memory_space<vmem>>, vector<2x32xf32>,
    } else {
    }
    %c0 = arith.constant 0 : index
    %c0_1 = arith.constant 0 : index
    %4 = vector.load %arg8[%c0, %c0_1] : memref<64x64xf32, #tpu.memory_space<vmem>>, vector<64x64xf32>
    %c0_2 = arith.constant 0 : index
    %c0_3 = arith.constant 0 : index
    %5 = vector.load %arg10[%c0_2, %c0_3] : memref<64x96xf32, #tpu.memory_space<vmem>>, vector<64x96xf32>
    %c0_4 = arith.constant 0 : index
    %c0_5 = arith.constant 0 : index
    %6 = vector.load %arg9[%c0_4, %c0_5] : memref<1x32xf32, #tpu.memory_space<vmem>>, vector<1x32xf32>
    %7 = vector.shape_cast %6 : vector<1x32xf32> to vector<1x32xf32>
    %8 = vector.broadcast %7 : vector<1x32xf32> to vector<2x32xf32>
    %c0_6 = arith.constant 0 : index
    %c0_7 = arith.constant 0 : index
    %9 = vector.load %arg11[%c0_6, %c0_7] : memref<1x32xf32, #tpu.memory_space<vmem>>, vector<1x32xf32>
    %c0_8 = arith.constant 0 : index
    %c0_9 = arith.constant 0 : index
    %10 = vector.load %arg12[%c0_8, %c0_9] : memref<1x1xf32, #tpu.memory_space<vmem>>, vector<1x1xf32>
    %c8_i32 = arith.constant 8 : i32
    %11 = arith.muli %arg1, %c8_i32 : i32
    %c0_i32_10 = arith.constant 0 : i32
    %12 = arith.addi %11, %c0_i32_10 : i32
    %c0_i32_11 = arith.constant 0 : i32
    %13 = arith.addi %0, %c0_i32_11 : i32
    %14 = arith.index_cast %13 : i32 to index
    %15 = arith.index_cast %12 : i32 to index
    %16 = memref.load %arg2[%14, %15] : memref<2x8xi32, #tpu.memory_space<smem>>
    %c2_i32_12 = arith.constant 2 : i32
    %17 = arith.muli %16, %c2_i32_12 : i32
    %c0_i32_13 = arith.constant 0 : i32
    %18 = arith.addi %17, %c0_i32_13 : i32
    %19 = arith.index_cast %18 : i32 to index
    %c0_14 = arith.constant 0 : index
    %20 = vector.load %arg14[%19, %c0_14] : memref<16x32xf32, #tpu.memory_space<vmem>>, vector<1x32xf32>
    %c0_15 = arith.constant 0 : index
    %c0_16 = arith.constant 0 : index
    %21 = vector.load %arg16[%c0_15, %c0_16] : memref<2x32xf32, #tpu.memory_space<vmem>>, vector<1x32xf32>
    tpu.vector_store %arg16[%c0_15, %c0_16], %20 {strides = array<i32>} : memref<2x32xf32, #tpu.memory_space<vmem>>, vector<1x32xf32>,
    %c1_i32 = arith.constant 1 : i32
    %22 = arith.addi %0, %c1_i32 : i32
    %23 = arith.index_cast %22 : i32 to index
    %24 = arith.index_cast %12 : i32 to index
    %25 = memref.load %arg2[%23, %24] : memref<2x8xi32, #tpu.memory_space<smem>>
    %c2_i32_17 = arith.constant 2 : i32
    %26 = arith.muli %25, %c2_i32_17 : i32
    %c1_i32_18 = arith.constant 1 : i32
    %27 = arith.addi %26, %c1_i32_18 : i32
    %28 = arith.index_cast %27 : i32 to index
    %c0_19 = arith.constant 0 : index
    %29 = vector.load %arg14[%28, %c0_19] : memref<16x32xf32, #tpu.memory_space<vmem>>, vector<1x32xf32>
    %c1 = arith.constant 1 : index
    %c0_20 = arith.constant 0 : index
    %30 = vector.load %arg16[%c1, %c0_20] : memref<2x32xf32, #tpu.memory_space<vmem>>, vector<1x32xf32>
    tpu.vector_store %arg16[%c1, %c0_20], %29 {strides = array<i32>} : memref<2x32xf32, #tpu.memory_space<vmem>>, vector<1x32xf32>,
    %c0_21 = arith.constant 0 : index
    %c0_22 = arith.constant 0 : index
    %31 = vector.load %arg16[%c0_21, %c0_22] : memref<2x32xf32, #tpu.memory_space<vmem>>, vector<2x32xf32>
    %c0_23 = arith.constant 0 : index
    %c0_24 = arith.constant 0 : index
    %32 = vector.load %arg15[%c0_23, %c0_24] : memref<2x32xf32, #tpu.memory_space<vmem>>, vector<2x32xf32>
    %33 = tpu.concatenate %31, %32 in 1 : vector<2x32xf32>, vector<2x32xf32> -> vector<2x64xf32>
    %c0_25 = arith.constant 0 : index
    %c0_26 = arith.constant 0 : index
    %c0_27 = arith.constant 0 : index
    %34 = vector.load %arg3[%c0_25, %c0_26, %c0_27] : memref<8x2x32xf32, #tpu.memory_space<vmem>>, vector<1x2x32xf32>
    %35 = vector.shape_cast %34 : vector<1x2x32xf32> to vector<2x32xf32>
    %36 = tpu.concatenate %35, %8 in 1 : vector<2x32xf32>, vector<2x32xf32> -> vector<2x64xf32>
    %cst = arith.constant dense<0.000000e+00> : vector<2x64xf32>
    %37 = tpu.matmul %33, %4, %cst {dimension_numbers = #tpu.dot_dimension_numbers<[1], [0], [0], [1], [0, 0, 1, 1], [], []>} : vector<2x64xf32>, vector<64x64xf32>, vector<2x64xf32> -> vector<2x64xf32>
    %38 = arith.addf %37, %36 : vector<2x64xf32>
    %39 = arith.negf %38 : vector<2x64xf32>
    %40 = math.exp %39 : vector<2x64xf32>
    %cst_28 = arith.constant 1.000000e+00 : f32
    %41 = vector.broadcast %cst_28 : f32 to vector<2x64xf32>
    %42 = arith.addf %41, %40 : vector<2x64xf32>
    %43 = arith.divf %41, %42 : vector<2x64xf32>
    %44 = arith.mulf %33, %43 : vector<2x64xf32>
    %45 = vector.extract_strided_slice %44 {offsets = [0, 0], sizes = [2, 32], strides = [1, 1]} : vector<2x64xf32> to vector<2x32xf32>
    %46 = vector.extract_strided_slice %44 {offsets = [0, 32], sizes = [2, 32], strides = [1, 1]} : vector<2x64xf32> to vector<2x32xf32>
    %cst_29 = arith.constant dense<0.000000e+00> : vector<2x96xf32>
    %47 = tpu.matmul %44, %5, %cst_29 {dimension_numbers = #tpu.dot_dimension_numbers<[1], [0], [0], [1], [0, 0, 1, 1], [], []>} : vector<2x64xf32>, vector<64x96xf32>, vector<2x96xf32> -> vector<2x96xf32>
    %48 = vector.extract_strided_slice %47 {offsets = [0, 0], sizes = [2, 32], strides = [1, 1]} : vector<2x96xf32> to vector<2x32xf32>
    %c0_30 = arith.constant 0 : index
    %c0_31 = arith.constant 0 : index
    %c0_32 = arith.constant 0 : index
    %49 = vector.load %arg4[%c0_30, %c0_31, %c0_32] : memref<8x2x32xf32, #tpu.memory_space<vmem>>, vector<1x2x32xf32>
    %50 = vector.shape_cast %49 : vector<1x2x32xf32> to vector<2x32xf32>
    %51 = arith.addf %48, %50 : vector<2x32xf32>
    %cst_33 = arith.constant 0.000000e+00 : f32
    %52 = vector.broadcast %cst_33 : f32 to vector<2x32xf32>
    %53 = arith.maximumf %51, %52 : vector<2x32xf32>
    %54 = vector.broadcast %9 : vector<1x32xf32> to vector<2x32xf32>
    %55 = arith.mulf %53, %54 : vector<2x32xf32>
    %cst_34 = arith.constant dense<0.000000e+00> : vector<2xf32>
    %56 = vector.multi_reduction <add>, %55, %cst_34 [1] : vector<2x32xf32> to vector<2xf32>
    %57 = vector.shape_cast %56 : vector<2xf32> to vector<2x1xf32>
    %58 = vector.broadcast %10 : vector<1x1xf32> to vector<2x1xf32>
    %59 = arith.addf %57, %58 : vector<2x1xf32>
    %60 = arith.negf %59 : vector<2x1xf32>
    %61 = math.exp %60 : vector<2x1xf32>
    %cst_35 = arith.constant 1.000000e+00 : f32
    %62 = vector.broadcast %cst_35 : f32 to vector<2x1xf32>
    %63 = arith.addf %62, %61 : vector<2x1xf32>
    %64 = arith.divf %62, %63 : vector<2x1xf32>
    %65 = vector.extract_strided_slice %47 {offsets = [0, 32], sizes = [2, 64], strides = [1, 1]} : vector<2x96xf32> to vector<2x64xf32>
    %c0_36 = arith.constant 0 : index
    %c0_37 = arith.constant 0 : index
    %c0_38 = arith.constant 0 : index
    %66 = vector.load %arg5[%c0_36, %c0_37, %c0_38] : memref<8x2x64xf32, #tpu.memory_space<vmem>>, vector<1x2x64xf32>
    %67 = vector.shape_cast %66 : vector<1x2x64xf32> to vector<2x64xf32>
    %68 = arith.addf %65, %67 : vector<2x64xf32>
    %69 = math.tanh %68 : vector<2x64xf32>
    %70 = vector.extract_strided_slice %69 {offsets = [0, 0], sizes = [2, 32], strides = [1, 1]} : vector<2x64xf32> to vector<2x32xf32>
    %71 = arith.addf %46, %70 : vector<2x32xf32>
    %c0_39 = arith.constant 0 : index
    %c0_40 = arith.constant 0 : index
    %72 = vector.load %arg15[%c0_39, %c0_40] : memref<2x32xf32, #tpu.memory_space<vmem>>, vector<2x32xf32>
    tpu.vector_store %arg15[%c0_39, %c0_40], %71 {strides = array<i32>} : memref<2x32xf32, #tpu.memory_space<vmem>>, vector<2x32xf32>,
    %73 = vector.extract_strided_slice %69 {offsets = [0, 32], sizes = [2, 32], strides = [1, 1]} : vector<2x64xf32> to vector<2x32xf32>
    %74 = arith.addf %45, %73 : vector<2x32xf32>
    %c2_i32_41 = arith.constant 2 : i32
    %75 = arith.muli %12, %c2_i32_41 : i32
    %76 = tpu.assume_multiple %75, 2 : i32
    %77 = arith.index_cast %76 : i32 to index
    %c0_42 = arith.constant 0 : index
    %78 = vector.load %arg14[%77, %c0_42] : memref<16x32xf32, #tpu.memory_space<vmem>>, vector<2x32xf32>
    tpu.vector_store %arg14[%77, %c0_42], %74 {strides = array<i32>} : memref<16x32xf32, #tpu.memory_space<vmem>>, vector<2x32xf32>,
    %c8_i32_43 = arith.constant 8 : i32
    %79 = arith.muli %arg1, %c8_i32_43 : i32
    %c1_i32_44 = arith.constant 1 : i32
    %80 = arith.addi %79, %c1_i32_44 : i32
    %c0_i32_45 = arith.constant 0 : i32
    %81 = arith.addi %0, %c0_i32_45 : i32
    %82 = arith.index_cast %81 : i32 to index
    %83 = arith.index_cast %80 : i32 to index
    %84 = memref.load %arg2[%82, %83] : memref<2x8xi32, #tpu.memory_space<smem>>
    %c2_i32_46 = arith.constant 2 : i32
    %85 = arith.muli %84, %c2_i32_46 : i32
    %c0_i32_47 = arith.constant 0 : i32
    %86 = arith.addi %85, %c0_i32_47 : i32
    %87 = arith.index_cast %86 : i32 to index
    %c0_48 = arith.constant 0 : index
    %88 = vector.load %arg14[%87, %c0_48] : memref<16x32xf32, #tpu.memory_space<vmem>>, vector<1x32xf32>
    %c0_49 = arith.constant 0 : index
    %c0_50 = arith.constant 0 : index
    %89 = vector.load %arg16[%c0_49, %c0_50] : memref<2x32xf32, #tpu.memory_space<vmem>>, vector<1x32xf32>
    tpu.vector_store %arg16[%c0_49, %c0_50], %88 {strides = array<i32>} : memref<2x32xf32, #tpu.memory_space<vmem>>, vector<1x32xf32>,
    %c1_i32_51 = arith.constant 1 : i32
    %90 = arith.addi %0, %c1_i32_51 : i32
    %91 = arith.index_cast %90 : i32 to index
    %92 = arith.index_cast %80 : i32 to index
    %93 = memref.load %arg2[%91, %92] : memref<2x8xi32, #tpu.memory_space<smem>>
    %c2_i32_52 = arith.constant 2 : i32
    %94 = arith.muli %93, %c2_i32_52 : i32
    %c1_i32_53 = arith.constant 1 : i32
    %95 = arith.addi %94, %c1_i32_53 : i32
    %96 = arith.index_cast %95 : i32 to index
    %c0_54 = arith.constant 0 : index
    %97 = vector.load %arg14[%96, %c0_54] : memref<16x32xf32, #tpu.memory_space<vmem>>, vector<1x32xf32>
    %c1_55 = arith.constant 1 : index
    %c0_56 = arith.constant 0 : index
    %98 = vector.load %arg16[%c1_55, %c0_56] : memref<2x32xf32, #tpu.memory_space<vmem>>, vector<1x32xf32>
    tpu.vector_store %arg16[%c1_55, %c0_56], %97 {strides = array<i32>} : memref<2x32xf32, #tpu.memory_space<vmem>>, vector<1x32xf32>,
    %c0_57 = arith.constant 0 : index
    %c0_58 = arith.constant 0 : index
    %99 = vector.load %arg16[%c0_57, %c0_58] : memref<2x32xf32, #tpu.memory_space<vmem>>, vector<2x32xf32>
    %c0_59 = arith.constant 0 : index
    %c0_60 = arith.constant 0 : index
    %100 = vector.load %arg15[%c0_59, %c0_60] : memref<2x32xf32, #tpu.memory_space<vmem>>, vector<2x32xf32>
    %101 = tpu.concatenate %99, %100 in 1 : vector<2x32xf32>, vector<2x32xf32> -> vector<2x64xf32>
    %c1_61 = arith.constant 1 : index
    %c0_62 = arith.constant 0 : index
    %c0_63 = arith.constant 0 : index
    %102 = vector.load %arg3[%c1_61, %c0_62, %c0_63] : memref<8x2x32xf32, #tpu.memory_space<vmem>>, vector<1x2x32xf32>
    %103 = vector.shape_cast %102 : vector<1x2x32xf32> to vector<2x32xf32>
    %104 = tpu.concatenate %103, %8 in 1 : vector<2x32xf32>, vector<2x32xf32> -> vector<2x64xf32>
    %cst_64 = arith.constant dense<0.000000e+00> : vector<2x64xf32>
    %105 = tpu.matmul %101, %4, %cst_64 {dimension_numbers = #tpu.dot_dimension_numbers<[1], [0], [0], [1], [0, 0, 1, 1], [], []>} : vector<2x64xf32>, vector<64x64xf32>, vector<2x64xf32> -> vector<2x64xf32>
    %106 = arith.addf %105, %104 : vector<2x64xf32>
    %107 = arith.negf %106 : vector<2x64xf32>
    %108 = math.exp %107 : vector<2x64xf32>
    %cst_65 = arith.constant 1.000000e+00 : f32
    %109 = vector.broadcast %cst_65 : f32 to vector<2x64xf32>
    %110 = arith.addf %109, %108 : vector<2x64xf32>
    %111 = arith.divf %109, %110 : vector<2x64xf32>
    %112 = arith.mulf %101, %111 : vector<2x64xf32>
    %113 = vector.extract_strided_slice %112 {offsets = [0, 0], sizes = [2, 32], strides = [1, 1]} : vector<2x64xf32> to vector<2x32xf32>
    %114 = vector.extract_strided_slice %112 {offsets = [0, 32], sizes = [2, 32], strides = [1, 1]} : vector<2x64xf32> to vector<2x32xf32>
    %cst_66 = arith.constant dense<0.000000e+00> : vector<2x96xf32>
    %115 = tpu.matmul %112, %5, %cst_66 {dimension_numbers = #tpu.dot_dimension_numbers<[1], [0], [0], [1], [0, 0, 1, 1], [], []>} : vector<2x64xf32>, vector<64x96xf32>, vector<2x96xf32> -> vector<2x96xf32>
    %116 = vector.extract_strided_slice %115 {offsets = [0, 0], sizes = [2, 32], strides = [1, 1]} : vector<2x96xf32> to vector<2x32xf32>
    %c1_67 = arith.constant 1 : index
    %c0_68 = arith.constant 0 : index
    %c0_69 = arith.constant 0 : index
    %117 = vector.load %arg4[%c1_67, %c0_68, %c0_69] : memref<8x2x32xf32, #tpu.memory_space<vmem>>, vector<1x2x32xf32>
    %118 = vector.shape_cast %117 : vector<1x2x32xf32> to vector<2x32xf32>
    %119 = arith.addf %116, %118 : vector<2x32xf32>
    %cst_70 = arith.constant 0.000000e+00 : f32
    %120 = vector.broadcast %cst_70 : f32 to vector<2x32xf32>
    %121 = arith.maximumf %119, %120 : vector<2x32xf32>
    %122 = vector.broadcast %9 : vector<1x32xf32> to vector<2x32xf32>
    %123 = arith.mulf %121, %122 : vector<2x32xf32>
    %cst_71 = arith.constant dense<0.000000e+00> : vector<2xf32>
    %124 = vector.multi_reduction <add>, %123, %cst_71 [1] : vector<2x32xf32> to vector<2xf32>
    %125 = vector.shape_cast %124 : vector<2xf32> to vector<2x1xf32>
    %126 = vector.broadcast %10 : vector<1x1xf32> to vector<2x1xf32>
    %127 = arith.addf %125, %126 : vector<2x1xf32>
    %128 = arith.negf %127 : vector<2x1xf32>
    %129 = math.exp %128 : vector<2x1xf32>
    %cst_72 = arith.constant 1.000000e+00 : f32
    %130 = vector.broadcast %cst_72 : f32 to vector<2x1xf32>
    %131 = arith.addf %130, %129 : vector<2x1xf32>
    %132 = arith.divf %130, %131 : vector<2x1xf32>
    %133 = vector.extract_strided_slice %115 {offsets = [0, 32], sizes = [2, 64], strides = [1, 1]} : vector<2x96xf32> to vector<2x64xf32>
    %c1_73 = arith.constant 1 : index
    %c0_74 = arith.constant 0 : index
    %c0_75 = arith.constant 0 : index
    %134 = vector.load %arg5[%c1_73, %c0_74, %c0_75] : memref<8x2x64xf32, #tpu.memory_space<vmem>>, vector<1x2x64xf32>
    %135 = vector.shape_cast %134 : vector<1x2x64xf32> to vector<2x64xf32>
    %136 = arith.addf %133, %135 : vector<2x64xf32>
    %137 = math.tanh %136 : vector<2x64xf32>
    %138 = vector.extract_strided_slice %137 {offsets = [0, 0], sizes = [2, 32], strides = [1, 1]} : vector<2x64xf32> to vector<2x32xf32>
    %139 = arith.addf %114, %138 : vector<2x32xf32>
    %c0_76 = arith.constant 0 : index
    %c0_77 = arith.constant 0 : index
    %140 = vector.load %arg15[%c0_76, %c0_77] : memref<2x32xf32, #tpu.memory_space<vmem>>, vector<2x32xf32>
    tpu.vector_store %arg15[%c0_76, %c0_77], %139 {strides = array<i32>} : memref<2x32xf32, #tpu.memory_space<vmem>>, vector<2x32xf32>,
    %141 = vector.extract_strided_slice %137 {offsets = [0, 32], sizes = [2, 32], strides = [1, 1]} : vector<2x64xf32> to vector<2x32xf32>
    %142 = arith.addf %113, %141 : vector<2x32xf32>
    %c2_i32_78 = arith.constant 2 : i32
    %143 = arith.muli %80, %c2_i32_78 : i32
    %144 = tpu.assume_multiple %143, 2 : i32
    %145 = arith.index_cast %144 : i32 to index
    %c0_79 = arith.constant 0 : index
    %146 = vector.load %arg14[%145, %c0_79] : memref<16x32xf32, #tpu.memory_space<vmem>>, vector<2x32xf32>
    tpu.vector_store %arg14[%145, %c0_79], %142 {strides = array<i32>} : memref<16x32xf32, #tpu.memory_space<vmem>>, vector<2x32xf32>,
    %c8_i32_80 = arith.constant 8 : i32
    %147 = arith.muli %arg1, %c8_i32_80 : i32
    %c2_i32_81 = arith.constant 2 : i32
    %148 = arith.addi %147, %c2_i32_81 : i32
    %c0_i32_82 = arith.constant 0 : i32
    %149 = arith.addi %0, %c0_i32_82 : i32
    %150 = arith.index_cast %149 : i32 to index
    %151 = arith.index_cast %148 : i32 to index
    %152 = memref.load %arg2[%150, %151] : memref<2x8xi32, #tpu.memory_space<smem>>
    %c2_i32_83 = arith.constant 2 : i32
    %153 = arith.muli %152, %c2_i32_83 : i32
    %c0_i32_84 = arith.constant 0 : i32
    %154 = arith.addi %153, %c0_i32_84 : i32
    %155 = arith.index_cast %154 : i32 to index
    %c0_85 = arith.constant 0 : index
    %156 = vector.load %arg14[%155, %c0_85] : memref<16x32xf32, #tpu.memory_space<vmem>>, vector<1x32xf32>
    %c0_86 = arith.constant 0 : index
    %c0_87 = arith.constant 0 : index
    %157 = vector.load %arg16[%c0_86, %c0_87] : memref<2x32xf32, #tpu.memory_space<vmem>>, vector<1x32xf32>
    tpu.vector_store %arg16[%c0_86, %c0_87], %156 {strides = array<i32>} : memref<2x32xf32, #tpu.memory_space<vmem>>, vector<1x32xf32>,
    %c1_i32_88 = arith.constant 1 : i32
    %158 = arith.addi %0, %c1_i32_88 : i32
    %159 = arith.index_cast %158 : i32 to index
    %160 = arith.index_cast %148 : i32 to index
    %161 = memref.load %arg2[%159, %160] : memref<2x8xi32, #tpu.memory_space<smem>>
    %c2_i32_89 = arith.constant 2 : i32
    %162 = arith.muli %161, %c2_i32_89 : i32
    %c1_i32_90 = arith.constant 1 : i32
    %163 = arith.addi %162, %c1_i32_90 : i32
    %164 = arith.index_cast %163 : i32 to index
    %c0_91 = arith.constant 0 : index
    %165 = vector.load %arg14[%164, %c0_91] : memref<16x32xf32, #tpu.memory_space<vmem>>, vector<1x32xf32>
    %c1_92 = arith.constant 1 : index
    %c0_93 = arith.constant 0 : index
    %166 = vector.load %arg16[%c1_92, %c0_93] : memref<2x32xf32, #tpu.memory_space<vmem>>, vector<1x32xf32>
    tpu.vector_store %arg16[%c1_92, %c0_93], %165 {strides = array<i32>} : memref<2x32xf32, #tpu.memory_space<vmem>>, vector<1x32xf32>,
    %c0_94 = arith.constant 0 : index
    %c0_95 = arith.constant 0 : index
    %167 = vector.load %arg16[%c0_94, %c0_95] : memref<2x32xf32, #tpu.memory_space<vmem>>, vector<2x32xf32>
    %c0_96 = arith.constant 0 : index
    %c0_97 = arith.constant 0 : index
    %168 = vector.load %arg15[%c0_96, %c0_97] : memref<2x32xf32, #tpu.memory_space<vmem>>, vector<2x32xf32>
    %169 = tpu.concatenate %167, %168 in 1 : vector<2x32xf32>, vector<2x32xf32> -> vector<2x64xf32>
    %c2 = arith.constant 2 : index
    %c0_98 = arith.constant 0 : index
    %c0_99 = arith.constant 0 : index
    %170 = vector.load %arg3[%c2, %c0_98, %c0_99] : memref<8x2x32xf32, #tpu.memory_space<vmem>>, vector<1x2x32xf32>
    %171 = vector.shape_cast %170 : vector<1x2x32xf32> to vector<2x32xf32>
    %172 = tpu.concatenate %171, %8 in 1 : vector<2x32xf32>, vector<2x32xf32> -> vector<2x64xf32>
    %cst_100 = arith.constant dense<0.000000e+00> : vector<2x64xf32>
    %173 = tpu.matmul %169, %4, %cst_100 {dimension_numbers = #tpu.dot_dimension_numbers<[1], [0], [0], [1], [0, 0, 1, 1], [], []>} : vector<2x64xf32>, vector<64x64xf32>, vector<2x64xf32> -> vector<2x64xf32>
    %174 = arith.addf %173, %172 : vector<2x64xf32>
    %175 = arith.negf %174 : vector<2x64xf32>
    %176 = math.exp %175 : vector<2x64xf32>
    %cst_101 = arith.constant 1.000000e+00 : f32
    %177 = vector.broadcast %cst_101 : f32 to vector<2x64xf32>
    %178 = arith.addf %177, %176 : vector<2x64xf32>
    %179 = arith.divf %177, %178 : vector<2x64xf32>
    %180 = arith.mulf %169, %179 : vector<2x64xf32>
    %181 = vector.extract_strided_slice %180 {offsets = [0, 0], sizes = [2, 32], strides = [1, 1]} : vector<2x64xf32> to vector<2x32xf32>
    %182 = vector.extract_strided_slice %180 {offsets = [0, 32], sizes = [2, 32], strides = [1, 1]} : vector<2x64xf32> to vector<2x32xf32>
    %cst_102 = arith.constant dense<0.000000e+00> : vector<2x96xf32>
    %183 = tpu.matmul %180, %5, %cst_102 {dimension_numbers = #tpu.dot_dimension_numbers<[1], [0], [0], [1], [0, 0, 1, 1], [], []>} : vector<2x64xf32>, vector<64x96xf32>, vector<2x96xf32> -> vector<2x96xf32>
    %184 = vector.extract_strided_slice %183 {offsets = [0, 0], sizes = [2, 32], strides = [1, 1]} : vector<2x96xf32> to vector<2x32xf32>
    %c2_103 = arith.constant 2 : index
    %c0_104 = arith.constant 0 : index
    %c0_105 = arith.constant 0 : index
    %185 = vector.load %arg4[%c2_103, %c0_104, %c0_105] : memref<8x2x32xf32, #tpu.memory_space<vmem>>, vector<1x2x32xf32>
    %186 = vector.shape_cast %185 : vector<1x2x32xf32> to vector<2x32xf32>
    %187 = arith.addf %184, %186 : vector<2x32xf32>
    %cst_106 = arith.constant 0.000000e+00 : f32
    %188 = vector.broadcast %cst_106 : f32 to vector<2x32xf32>
    %189 = arith.maximumf %187, %188 : vector<2x32xf32>
    %190 = vector.broadcast %9 : vector<1x32xf32> to vector<2x32xf32>
    %191 = arith.mulf %189, %190 : vector<2x32xf32>
    %cst_107 = arith.constant dense<0.000000e+00> : vector<2xf32>
    %192 = vector.multi_reduction <add>, %191, %cst_107 [1] : vector<2x32xf32> to vector<2xf32>
    %193 = vector.shape_cast %192 : vector<2xf32> to vector<2x1xf32>
    %194 = vector.broadcast %10 : vector<1x1xf32> to vector<2x1xf32>
    %195 = arith.addf %193, %194 : vector<2x1xf32>
    %196 = arith.negf %195 : vector<2x1xf32>
    %197 = math.exp %196 : vector<2x1xf32>
    %cst_108 = arith.constant 1.000000e+00 : f32
    %198 = vector.broadcast %cst_108 : f32 to vector<2x1xf32>
    %199 = arith.addf %198, %197 : vector<2x1xf32>
    %200 = arith.divf %198, %199 : vector<2x1xf32>
    %201 = vector.extract_strided_slice %183 {offsets = [0, 32], sizes = [2, 64], strides = [1, 1]} : vector<2x96xf32> to vector<2x64xf32>
    %c2_109 = arith.constant 2 : index
    %c0_110 = arith.constant 0 : index
    %c0_111 = arith.constant 0 : index
    %202 = vector.load %arg5[%c2_109, %c0_110, %c0_111] : memref<8x2x64xf32, #tpu.memory_space<vmem>>, vector<1x2x64xf32>
    %203 = vector.shape_cast %202 : vector<1x2x64xf32> to vector<2x64xf32>
    %204 = arith.addf %201, %203 : vector<2x64xf32>
    %205 = math.tanh %204 : vector<2x64xf32>
    %206 = vector.extract_strided_slice %205 {offsets = [0, 0], sizes = [2, 32], strides = [1, 1]} : vector<2x64xf32> to vector<2x32xf32>
    %207 = arith.addf %182, %206 : vector<2x32xf32>
    %c0_112 = arith.constant 0 : index
    %c0_113 = arith.constant 0 : index
    %208 = vector.load %arg15[%c0_112, %c0_113] : memref<2x32xf32, #tpu.memory_space<vmem>>, vector<2x32xf32>
    tpu.vector_store %arg15[%c0_112, %c0_113], %207 {strides = array<i32>} : memref<2x32xf32, #tpu.memory_space<vmem>>, vector<2x32xf32>,
    %209 = vector.extract_strided_slice %205 {offsets = [0, 32], sizes = [2, 32], strides = [1, 1]} : vector<2x64xf32> to vector<2x32xf32>
    %210 = arith.addf %181, %209 : vector<2x32xf32>
    %c2_i32_114 = arith.constant 2 : i32
    %211 = arith.muli %148, %c2_i32_114 : i32
    %212 = tpu.assume_multiple %211, 2 : i32
    %213 = arith.index_cast %212 : i32 to index
    %c0_115 = arith.constant 0 : index
    %214 = vector.load %arg14[%213, %c0_115] : memref<16x32xf32, #tpu.memory_space<vmem>>, vector<2x32xf32>
    tpu.vector_store %arg14[%213, %c0_115], %210 {strides = array<i32>} : memref<16x32xf32, #tpu.memory_space<vmem>>, vector<2x32xf32>,
    %c8_i32_116 = arith.constant 8 : i32
    %215 = arith.muli %arg1, %c8_i32_116 : i32
    %c3_i32 = arith.constant 3 : i32
    %216 = arith.addi %215, %c3_i32 : i32
    %c0_i32_117 = arith.constant 0 : i32
    %217 = arith.addi %0, %c0_i32_117 : i32
    %218 = arith.index_cast %217 : i32 to index
    %219 = arith.index_cast %216 : i32 to index
    %220 = memref.load %arg2[%218, %219] : memref<2x8xi32, #tpu.memory_space<smem>>
    %c2_i32_118 = arith.constant 2 : i32
    %221 = arith.muli %220, %c2_i32_118 : i32
    %c0_i32_119 = arith.constant 0 : i32
    %222 = arith.addi %221, %c0_i32_119 : i32
    %223 = arith.index_cast %222 : i32 to index
    %c0_120 = arith.constant 0 : index
    %224 = vector.load %arg14[%223, %c0_120] : memref<16x32xf32, #tpu.memory_space<vmem>>, vector<1x32xf32>
    %c0_121 = arith.constant 0 : index
    %c0_122 = arith.constant 0 : index
    %225 = vector.load %arg16[%c0_121, %c0_122] : memref<2x32xf32, #tpu.memory_space<vmem>>, vector<1x32xf32>
    tpu.vector_store %arg16[%c0_121, %c0_122], %224 {strides = array<i32>} : memref<2x32xf32, #tpu.memory_space<vmem>>, vector<1x32xf32>,
    %c1_i32_123 = arith.constant 1 : i32
    %226 = arith.addi %0, %c1_i32_123 : i32
    %227 = arith.index_cast %226 : i32 to index
    %228 = arith.index_cast %216 : i32 to index
    %229 = memref.load %arg2[%227, %228] : memref<2x8xi32, #tpu.memory_space<smem>>
    %c2_i32_124 = arith.constant 2 : i32
    %230 = arith.muli %229, %c2_i32_124 : i32
    %c1_i32_125 = arith.constant 1 : i32
    %231 = arith.addi %230, %c1_i32_125 : i32
    %232 = arith.index_cast %231 : i32 to index
    %c0_126 = arith.constant 0 : index
    %233 = vector.load %arg14[%232, %c0_126] : memref<16x32xf32, #tpu.memory_space<vmem>>, vector<1x32xf32>
    %c1_127 = arith.constant 1 : index
    %c0_128 = arith.constant 0 : index
    %234 = vector.load %arg16[%c1_127, %c0_128] : memref<2x32xf32, #tpu.memory_space<vmem>>, vector<1x32xf32>
    tpu.vector_store %arg16[%c1_127, %c0_128], %233 {strides = array<i32>} : memref<2x32xf32, #tpu.memory_space<vmem>>, vector<1x32xf32>,
    %c0_129 = arith.constant 0 : index
    %c0_130 = arith.constant 0 : index
    %235 = vector.load %arg16[%c0_129, %c0_130] : memref<2x32xf32, #tpu.memory_space<vmem>>, vector<2x32xf32>
    %c0_131 = arith.constant 0 : index
    %c0_132 = arith.constant 0 : index
    %236 = vector.load %arg15[%c0_131, %c0_132] : memref<2x32xf32, #tpu.memory_space<vmem>>, vector<2x32xf32>
    %237 = tpu.concatenate %235, %236 in 1 : vector<2x32xf32>, vector<2x32xf32> -> vector<2x64xf32>
    %c3 = arith.constant 3 : index
    %c0_133 = arith.constant 0 : index
    %c0_134 = arith.constant 0 : index
    %238 = vector.load %arg3[%c3, %c0_133, %c0_134] : memref<8x2x32xf32, #tpu.memory_space<vmem>>, vector<1x2x32xf32>
    %239 = vector.shape_cast %238 : vector<1x2x32xf32> to vector<2x32xf32>
    %240 = tpu.concatenate %239, %8 in 1 : vector<2x32xf32>, vector<2x32xf32> -> vector<2x64xf32>
    %cst_135 = arith.constant dense<0.000000e+00> : vector<2x64xf32>
    %241 = tpu.matmul %237, %4, %cst_135 {dimension_numbers = #tpu.dot_dimension_numbers<[1], [0], [0], [1], [0, 0, 1, 1], [], []>} : vector<2x64xf32>, vector<64x64xf32>, vector<2x64xf32> -> vector<2x64xf32>
    %242 = arith.addf %241, %240 : vector<2x64xf32>
    %243 = arith.negf %242 : vector<2x64xf32>
    %244 = math.exp %243 : vector<2x64xf32>
    %cst_136 = arith.constant 1.000000e+00 : f32
    %245 = vector.broadcast %cst_136 : f32 to vector<2x64xf32>
    %246 = arith.addf %245, %244 : vector<2x64xf32>
    %247 = arith.divf %245, %246 : vector<2x64xf32>
    %248 = arith.mulf %237, %247 : vector<2x64xf32>
    %249 = vector.extract_strided_slice %248 {offsets = [0, 0], sizes = [2, 32], strides = [1, 1]} : vector<2x64xf32> to vector<2x32xf32>
    %250 = vector.extract_strided_slice %248 {offsets = [0, 32], sizes = [2, 32], strides = [1, 1]} : vector<2x64xf32> to vector<2x32xf32>
    %cst_137 = arith.constant dense<0.000000e+00> : vector<2x96xf32>
    %251 = tpu.matmul %248, %5, %cst_137 {dimension_numbers = #tpu.dot_dimension_numbers<[1], [0], [0], [1], [0, 0, 1, 1], [], []>} : vector<2x64xf32>, vector<64x96xf32>, vector<2x96xf32> -> vector<2x96xf32>
    %252 = vector.extract_strided_slice %251 {offsets = [0, 0], sizes = [2, 32], strides = [1, 1]} : vector<2x96xf32> to vector<2x32xf32>
    %c3_138 = arith.constant 3 : index
    %c0_139 = arith.constant 0 : index
    %c0_140 = arith.constant 0 : index
    %253 = vector.load %arg4[%c3_138, %c0_139, %c0_140] : memref<8x2x32xf32, #tpu.memory_space<vmem>>, vector<1x2x32xf32>
    %254 = vector.shape_cast %253 : vector<1x2x32xf32> to vector<2x32xf32>
    %255 = arith.addf %252, %254 : vector<2x32xf32>
    %cst_141 = arith.constant 0.000000e+00 : f32
    %256 = vector.broadcast %cst_141 : f32 to vector<2x32xf32>
    %257 = arith.maximumf %255, %256 : vector<2x32xf32>
    %258 = vector.broadcast %9 : vector<1x32xf32> to vector<2x32xf32>
    %259 = arith.mulf %257, %258 : vector<2x32xf32>
    %cst_142 = arith.constant dense<0.000000e+00> : vector<2xf32>
    %260 = vector.multi_reduction <add>, %259, %cst_142 [1] : vector<2x32xf32> to vector<2xf32>
    %261 = vector.shape_cast %260 : vector<2xf32> to vector<2x1xf32>
    %262 = vector.broadcast %10 : vector<1x1xf32> to vector<2x1xf32>
    %263 = arith.addf %261, %262 : vector<2x1xf32>
    %264 = arith.negf %263 : vector<2x1xf32>
    %265 = math.exp %264 : vector<2x1xf32>
    %cst_143 = arith.constant 1.000000e+00 : f32
    %266 = vector.broadcast %cst_143 : f32 to vector<2x1xf32>
    %267 = arith.addf %266, %265 : vector<2x1xf32>
    %268 = arith.divf %266, %267 : vector<2x1xf32>
    %269 = vector.extract_strided_slice %251 {offsets = [0, 32], sizes = [2, 64], strides = [1, 1]} : vector<2x96xf32> to vector<2x64xf32>
    %c3_144 = arith.constant 3 : index
    %c0_145 = arith.constant 0 : index
    %c0_146 = arith.constant 0 : index
    %270 = vector.load %arg5[%c3_144, %c0_145, %c0_146] : memref<8x2x64xf32, #tpu.memory_space<vmem>>, vector<1x2x64xf32>
    %271 = vector.shape_cast %270 : vector<1x2x64xf32> to vector<2x64xf32>
    %272 = arith.addf %269, %271 : vector<2x64xf32>
    %273 = math.tanh %272 : vector<2x64xf32>
    %274 = vector.extract_strided_slice %273 {offsets = [0, 0], sizes = [2, 32], strides = [1, 1]} : vector<2x64xf32> to vector<2x32xf32>
    %275 = arith.addf %250, %274 : vector<2x32xf32>
    %c0_147 = arith.constant 0 : index
    %c0_148 = arith.constant 0 : index
    %276 = vector.load %arg15[%c0_147, %c0_148] : memref<2x32xf32, #tpu.memory_space<vmem>>, vector<2x32xf32>
    tpu.vector_store %arg15[%c0_147, %c0_148], %275 {strides = array<i32>} : memref<2x32xf32, #tpu.memory_space<vmem>>, vector<2x32xf32>,
    %277 = vector.extract_strided_slice %273 {offsets = [0, 32], sizes = [2, 32], strides = [1, 1]} : vector<2x64xf32> to vector<2x32xf32>
    %278 = arith.addf %249, %277 : vector<2x32xf32>
    %c2_i32_149 = arith.constant 2 : i32
    %279 = arith.muli %216, %c2_i32_149 : i32
    %280 = tpu.assume_multiple %279, 2 : i32
    %281 = arith.index_cast %280 : i32 to index
    %c0_150 = arith.constant 0 : index
    %282 = vector.load %arg14[%281, %c0_150] : memref<16x32xf32, #tpu.memory_space<vmem>>, vector<2x32xf32>
    tpu.vector_store %arg14[%281, %c0_150], %278 {strides = array<i32>} : memref<16x32xf32, #tpu.memory_space<vmem>>, vector<2x32xf32>,
    %c8_i32_151 = arith.constant 8 : i32
    %283 = arith.muli %arg1, %c8_i32_151 : i32
    %c4_i32 = arith.constant 4 : i32
    %284 = arith.addi %283, %c4_i32 : i32
    %c0_i32_152 = arith.constant 0 : i32
    %285 = arith.addi %0, %c0_i32_152 : i32
    %286 = arith.index_cast %285 : i32 to index
    %287 = arith.index_cast %284 : i32 to index
    %288 = memref.load %arg2[%286, %287] : memref<2x8xi32, #tpu.memory_space<smem>>
    %c2_i32_153 = arith.constant 2 : i32
    %289 = arith.muli %288, %c2_i32_153 : i32
    %c0_i32_154 = arith.constant 0 : i32
    %290 = arith.addi %289, %c0_i32_154 : i32
    %291 = arith.index_cast %290 : i32 to index
    %c0_155 = arith.constant 0 : index
    %292 = vector.load %arg14[%291, %c0_155] : memref<16x32xf32, #tpu.memory_space<vmem>>, vector<1x32xf32>
    %c0_156 = arith.constant 0 : index
    %c0_157 = arith.constant 0 : index
    %293 = vector.load %arg16[%c0_156, %c0_157] : memref<2x32xf32, #tpu.memory_space<vmem>>, vector<1x32xf32>
    tpu.vector_store %arg16[%c0_156, %c0_157], %292 {strides = array<i32>} : memref<2x32xf32, #tpu.memory_space<vmem>>, vector<1x32xf32>,
    %c1_i32_158 = arith.constant 1 : i32
    %294 = arith.addi %0, %c1_i32_158 : i32
    %295 = arith.index_cast %294 : i32 to index
    %296 = arith.index_cast %284 : i32 to index
    %297 = memref.load %arg2[%295, %296] : memref<2x8xi32, #tpu.memory_space<smem>>
    %c2_i32_159 = arith.constant 2 : i32
    %298 = arith.muli %297, %c2_i32_159 : i32
    %c1_i32_160 = arith.constant 1 : i32
    %299 = arith.addi %298, %c1_i32_160 : i32
    %300 = arith.index_cast %299 : i32 to index
    %c0_161 = arith.constant 0 : index
    %301 = vector.load %arg14[%300, %c0_161] : memref<16x32xf32, #tpu.memory_space<vmem>>, vector<1x32xf32>
    %c1_162 = arith.constant 1 : index
    %c0_163 = arith.constant 0 : index
    %302 = vector.load %arg16[%c1_162, %c0_163] : memref<2x32xf32, #tpu.memory_space<vmem>>, vector<1x32xf32>
    tpu.vector_store %arg16[%c1_162, %c0_163], %301 {strides = array<i32>} : memref<2x32xf32, #tpu.memory_space<vmem>>, vector<1x32xf32>,
    %c0_164 = arith.constant 0 : index
    %c0_165 = arith.constant 0 : index
    %303 = vector.load %arg16[%c0_164, %c0_165] : memref<2x32xf32, #tpu.memory_space<vmem>>, vector<2x32xf32>
    %c0_166 = arith.constant 0 : index
    %c0_167 = arith.constant 0 : index
    %304 = vector.load %arg15[%c0_166, %c0_167] : memref<2x32xf32, #tpu.memory_space<vmem>>, vector<2x32xf32>
    %305 = tpu.concatenate %303, %304 in 1 : vector<2x32xf32>, vector<2x32xf32> -> vector<2x64xf32>
    %c4 = arith.constant 4 : index
    %c0_168 = arith.constant 0 : index
    %c0_169 = arith.constant 0 : index
    %306 = vector.load %arg3[%c4, %c0_168, %c0_169] : memref<8x2x32xf32, #tpu.memory_space<vmem>>, vector<1x2x32xf32>
    %307 = vector.shape_cast %306 : vector<1x2x32xf32> to vector<2x32xf32>
    %308 = tpu.concatenate %307, %8 in 1 : vector<2x32xf32>, vector<2x32xf32> -> vector<2x64xf32>
    %cst_170 = arith.constant dense<0.000000e+00> : vector<2x64xf32>
    %309 = tpu.matmul %305, %4, %cst_170 {dimension_numbers = #tpu.dot_dimension_numbers<[1], [0], [0], [1], [0, 0, 1, 1], [], []>} : vector<2x64xf32>, vector<64x64xf32>, vector<2x64xf32> -> vector<2x64xf32>
    %310 = arith.addf %309, %308 : vector<2x64xf32>
    %311 = arith.negf %310 : vector<2x64xf32>
    %312 = math.exp %311 : vector<2x64xf32>
    %cst_171 = arith.constant 1.000000e+00 : f32
    %313 = vector.broadcast %cst_171 : f32 to vector<2x64xf32>
    %314 = arith.addf %313, %312 : vector<2x64xf32>
    %315 = arith.divf %313, %314 : vector<2x64xf32>
    %316 = arith.mulf %305, %315 : vector<2x64xf32>
    %317 = vector.extract_strided_slice %316 {offsets = [0, 0], sizes = [2, 32], strides = [1, 1]} : vector<2x64xf32> to vector<2x32xf32>
    %318 = vector.extract_strided_slice %316 {offsets = [0, 32], sizes = [2, 32], strides = [1, 1]} : vector<2x64xf32> to vector<2x32xf32>
    %cst_172 = arith.constant dense<0.000000e+00> : vector<2x96xf32>
    %319 = tpu.matmul %316, %5, %cst_172 {dimension_numbers = #tpu.dot_dimension_numbers<[1], [0], [0], [1], [0, 0, 1, 1], [], []>} : vector<2x64xf32>, vector<64x96xf32>, vector<2x96xf32> -> vector<2x96xf32>
    %320 = vector.extract_strided_slice %319 {offsets = [0, 0], sizes = [2, 32], strides = [1, 1]} : vector<2x96xf32> to vector<2x32xf32>
    %c4_173 = arith.constant 4 : index
    %c0_174 = arith.constant 0 : index
    %c0_175 = arith.constant 0 : index
    %321 = vector.load %arg4[%c4_173, %c0_174, %c0_175] : memref<8x2x32xf32, #tpu.memory_space<vmem>>, vector<1x2x32xf32>
    %322 = vector.shape_cast %321 : vector<1x2x32xf32> to vector<2x32xf32>
    %323 = arith.addf %320, %322 : vector<2x32xf32>
    %cst_176 = arith.constant 0.000000e+00 : f32
    %324 = vector.broadcast %cst_176 : f32 to vector<2x32xf32>
    %325 = arith.maximumf %323, %324 : vector<2x32xf32>
    %326 = vector.broadcast %9 : vector<1x32xf32> to vector<2x32xf32>
    %327 = arith.mulf %325, %326 : vector<2x32xf32>
    %cst_177 = arith.constant dense<0.000000e+00> : vector<2xf32>
    %328 = vector.multi_reduction <add>, %327, %cst_177 [1] : vector<2x32xf32> to vector<2xf32>
    %329 = vector.shape_cast %328 : vector<2xf32> to vector<2x1xf32>
    %330 = vector.broadcast %10 : vector<1x1xf32> to vector<2x1xf32>
    %331 = arith.addf %329, %330 : vector<2x1xf32>
    %332 = arith.negf %331 : vector<2x1xf32>
    %333 = math.exp %332 : vector<2x1xf32>
    %cst_178 = arith.constant 1.000000e+00 : f32
    %334 = vector.broadcast %cst_178 : f32 to vector<2x1xf32>
    %335 = arith.addf %334, %333 : vector<2x1xf32>
    %336 = arith.divf %334, %335 : vector<2x1xf32>
    %337 = vector.extract_strided_slice %319 {offsets = [0, 32], sizes = [2, 64], strides = [1, 1]} : vector<2x96xf32> to vector<2x64xf32>
    %c4_179 = arith.constant 4 : index
    %c0_180 = arith.constant 0 : index
    %c0_181 = arith.constant 0 : index
    %338 = vector.load %arg5[%c4_179, %c0_180, %c0_181] : memref<8x2x64xf32, #tpu.memory_space<vmem>>, vector<1x2x64xf32>
    %339 = vector.shape_cast %338 : vector<1x2x64xf32> to vector<2x64xf32>
    %340 = arith.addf %337, %339 : vector<2x64xf32>
    %341 = math.tanh %340 : vector<2x64xf32>
    %342 = vector.extract_strided_slice %341 {offsets = [0, 0], sizes = [2, 32], strides = [1, 1]} : vector<2x64xf32> to vector<2x32xf32>
    %343 = arith.addf %318, %342 : vector<2x32xf32>
    %c0_182 = arith.constant 0 : index
    %c0_183 = arith.constant 0 : index
    %344 = vector.load %arg15[%c0_182, %c0_183] : memref<2x32xf32, #tpu.memory_space<vmem>>, vector<2x32xf32>
    tpu.vector_store %arg15[%c0_182, %c0_183], %343 {strides = array<i32>} : memref<2x32xf32, #tpu.memory_space<vmem>>, vector<2x32xf32>,
    %345 = vector.extract_strided_slice %341 {offsets = [0, 32], sizes = [2, 32], strides = [1, 1]} : vector<2x64xf32> to vector<2x32xf32>
    %346 = arith.addf %317, %345 : vector<2x32xf32>
    %c2_i32_184 = arith.constant 2 : i32
    %347 = arith.muli %284, %c2_i32_184 : i32
    %348 = tpu.assume_multiple %347, 2 : i32
    %349 = arith.index_cast %348 : i32 to index
    %c0_185 = arith.constant 0 : index
    %350 = vector.load %arg14[%349, %c0_185] : memref<16x32xf32, #tpu.memory_space<vmem>>, vector<2x32xf32>
    tpu.vector_store %arg14[%349, %c0_185], %346 {strides = array<i32>} : memref<16x32xf32, #tpu.memory_space<vmem>>, vector<2x32xf32>,
    %c8_i32_186 = arith.constant 8 : i32
    %351 = arith.muli %arg1, %c8_i32_186 : i32
    %c5_i32 = arith.constant 5 : i32
    %352 = arith.addi %351, %c5_i32 : i32
    %c0_i32_187 = arith.constant 0 : i32
    %353 = arith.addi %0, %c0_i32_187 : i32
    %354 = arith.index_cast %353 : i32 to index
    %355 = arith.index_cast %352 : i32 to index
    %356 = memref.load %arg2[%354, %355] : memref<2x8xi32, #tpu.memory_space<smem>>
    %c2_i32_188 = arith.constant 2 : i32
    %357 = arith.muli %356, %c2_i32_188 : i32
    %c0_i32_189 = arith.constant 0 : i32
    %358 = arith.addi %357, %c0_i32_189 : i32
    %359 = arith.index_cast %358 : i32 to index
    %c0_190 = arith.constant 0 : index
    %360 = vector.load %arg14[%359, %c0_190] : memref<16x32xf32, #tpu.memory_space<vmem>>, vector<1x32xf32>
    %c0_191 = arith.constant 0 : index
    %c0_192 = arith.constant 0 : index
    %361 = vector.load %arg16[%c0_191, %c0_192] : memref<2x32xf32, #tpu.memory_space<vmem>>, vector<1x32xf32>
    tpu.vector_store %arg16[%c0_191, %c0_192], %360 {strides = array<i32>} : memref<2x32xf32, #tpu.memory_space<vmem>>, vector<1x32xf32>,
    %c1_i32_193 = arith.constant 1 : i32
    %362 = arith.addi %0, %c1_i32_193 : i32
    %363 = arith.index_cast %362 : i32 to index
    %364 = arith.index_cast %352 : i32 to index
    %365 = memref.load %arg2[%363, %364] : memref<2x8xi32, #tpu.memory_space<smem>>
    %c2_i32_194 = arith.constant 2 : i32
    %366 = arith.muli %365, %c2_i32_194 : i32
    %c1_i32_195 = arith.constant 1 : i32
    %367 = arith.addi %366, %c1_i32_195 : i32
    %368 = arith.index_cast %367 : i32 to index
    %c0_196 = arith.constant 0 : index
    %369 = vector.load %arg14[%368, %c0_196] : memref<16x32xf32, #tpu.memory_space<vmem>>, vector<1x32xf32>
    %c1_197 = arith.constant 1 : index
    %c0_198 = arith.constant 0 : index
    %370 = vector.load %arg16[%c1_197, %c0_198] : memref<2x32xf32, #tpu.memory_space<vmem>>, vector<1x32xf32>
    tpu.vector_store %arg16[%c1_197, %c0_198], %369 {strides = array<i32>} : memref<2x32xf32, #tpu.memory_space<vmem>>, vector<1x32xf32>,
    %c0_199 = arith.constant 0 : index
    %c0_200 = arith.constant 0 : index
    %371 = vector.load %arg16[%c0_199, %c0_200] : memref<2x32xf32, #tpu.memory_space<vmem>>, vector<2x32xf32>
    %c0_201 = arith.constant 0 : index
    %c0_202 = arith.constant 0 : index
    %372 = vector.load %arg15[%c0_201, %c0_202] : memref<2x32xf32, #tpu.memory_space<vmem>>, vector<2x32xf32>
    %373 = tpu.concatenate %371, %372 in 1 : vector<2x32xf32>, vector<2x32xf32> -> vector<2x64xf32>
    %c5 = arith.constant 5 : index
    %c0_203 = arith.constant 0 : index
    %c0_204 = arith.constant 0 : index
    %374 = vector.load %arg3[%c5, %c0_203, %c0_204] : memref<8x2x32xf32, #tpu.memory_space<vmem>>, vector<1x2x32xf32>
    %375 = vector.shape_cast %374 : vector<1x2x32xf32> to vector<2x32xf32>
    %376 = tpu.concatenate %375, %8 in 1 : vector<2x32xf32>, vector<2x32xf32> -> vector<2x64xf32>
    %cst_205 = arith.constant dense<0.000000e+00> : vector<2x64xf32>
    %377 = tpu.matmul %373, %4, %cst_205 {dimension_numbers = #tpu.dot_dimension_numbers<[1], [0], [0], [1], [0, 0, 1, 1], [], []>} : vector<2x64xf32>, vector<64x64xf32>, vector<2x64xf32> -> vector<2x64xf32>
    %378 = arith.addf %377, %376 : vector<2x64xf32>
    %379 = arith.negf %378 : vector<2x64xf32>
    %380 = math.exp %379 : vector<2x64xf32>
    %cst_206 = arith.constant 1.000000e+00 : f32
    %381 = vector.broadcast %cst_206 : f32 to vector<2x64xf32>
    %382 = arith.addf %381, %380 : vector<2x64xf32>
    %383 = arith.divf %381, %382 : vector<2x64xf32>
    %384 = arith.mulf %373, %383 : vector<2x64xf32>
    %385 = vector.extract_strided_slice %384 {offsets = [0, 0], sizes = [2, 32], strides = [1, 1]} : vector<2x64xf32> to vector<2x32xf32>
    %386 = vector.extract_strided_slice %384 {offsets = [0, 32], sizes = [2, 32], strides = [1, 1]} : vector<2x64xf32> to vector<2x32xf32>
    %cst_207 = arith.constant dense<0.000000e+00> : vector<2x96xf32>
    %387 = tpu.matmul %384, %5, %cst_207 {dimension_numbers = #tpu.dot_dimension_numbers<[1], [0], [0], [1], [0, 0, 1, 1], [], []>} : vector<2x64xf32>, vector<64x96xf32>, vector<2x96xf32> -> vector<2x96xf32>
    %388 = vector.extract_strided_slice %387 {offsets = [0, 0], sizes = [2, 32], strides = [1, 1]} : vector<2x96xf32> to vector<2x32xf32>
    %c5_208 = arith.constant 5 : index
    %c0_209 = arith.constant 0 : index
    %c0_210 = arith.constant 0 : index
    %389 = vector.load %arg4[%c5_208, %c0_209, %c0_210] : memref<8x2x32xf32, #tpu.memory_space<vmem>>, vector<1x2x32xf32>
    %390 = vector.shape_cast %389 : vector<1x2x32xf32> to vector<2x32xf32>
    %391 = arith.addf %388, %390 : vector<2x32xf32>
    %cst_211 = arith.constant 0.000000e+00 : f32
    %392 = vector.broadcast %cst_211 : f32 to vector<2x32xf32>
    %393 = arith.maximumf %391, %392 : vector<2x32xf32>
    %394 = vector.broadcast %9 : vector<1x32xf32> to vector<2x32xf32>
    %395 = arith.mulf %393, %394 : vector<2x32xf32>
    %cst_212 = arith.constant dense<0.000000e+00> : vector<2xf32>
    %396 = vector.multi_reduction <add>, %395, %cst_212 [1] : vector<2x32xf32> to vector<2xf32>
    %397 = vector.shape_cast %396 : vector<2xf32> to vector<2x1xf32>
    %398 = vector.broadcast %10 : vector<1x1xf32> to vector<2x1xf32>
    %399 = arith.addf %397, %398 : vector<2x1xf32>
    %400 = arith.negf %399 : vector<2x1xf32>
    %401 = math.exp %400 : vector<2x1xf32>
    %cst_213 = arith.constant 1.000000e+00 : f32
    %402 = vector.broadcast %cst_213 : f32 to vector<2x1xf32>
    %403 = arith.addf %402, %401 : vector<2x1xf32>
    %404 = arith.divf %402, %403 : vector<2x1xf32>
    %405 = vector.extract_strided_slice %387 {offsets = [0, 32], sizes = [2, 64], strides = [1, 1]} : vector<2x96xf32> to vector<2x64xf32>
    %c5_214 = arith.constant 5 : index
    %c0_215 = arith.constant 0 : index
    %c0_216 = arith.constant 0 : index
    %406 = vector.load %arg5[%c5_214, %c0_215, %c0_216] : memref<8x2x64xf32, #tpu.memory_space<vmem>>, vector<1x2x64xf32>
    %407 = vector.shape_cast %406 : vector<1x2x64xf32> to vector<2x64xf32>
    %408 = arith.addf %405, %407 : vector<2x64xf32>
    %409 = math.tanh %408 : vector<2x64xf32>
    %410 = vector.extract_strided_slice %409 {offsets = [0, 0], sizes = [2, 32], strides = [1, 1]} : vector<2x64xf32> to vector<2x32xf32>
    %411 = arith.addf %386, %410 : vector<2x32xf32>
    %c0_217 = arith.constant 0 : index
    %c0_218 = arith.constant 0 : index
    %412 = vector.load %arg15[%c0_217, %c0_218] : memref<2x32xf32, #tpu.memory_space<vmem>>, vector<2x32xf32>
    tpu.vector_store %arg15[%c0_217, %c0_218], %411 {strides = array<i32>} : memref<2x32xf32, #tpu.memory_space<vmem>>, vector<2x32xf32>,
    %413 = vector.extract_strided_slice %409 {offsets = [0, 32], sizes = [2, 32], strides = [1, 1]} : vector<2x64xf32> to vector<2x32xf32>
    %414 = arith.addf %385, %413 : vector<2x32xf32>
    %c2_i32_219 = arith.constant 2 : i32
    %415 = arith.muli %352, %c2_i32_219 : i32
    %416 = tpu.assume_multiple %415, 2 : i32
    %417 = arith.index_cast %416 : i32 to index
    %c0_220 = arith.constant 0 : index
    %418 = vector.load %arg14[%417, %c0_220] : memref<16x32xf32, #tpu.memory_space<vmem>>, vector<2x32xf32>
    tpu.vector_store %arg14[%417, %c0_220], %414 {strides = array<i32>} : memref<16x32xf32, #tpu.memory_space<vmem>>, vector<2x32xf32>,
    %c8_i32_221 = arith.constant 8 : i32
    %419 = arith.muli %arg1, %c8_i32_221 : i32
    %c6_i32 = arith.constant 6 : i32
    %420 = arith.addi %419, %c6_i32 : i32
    %c0_i32_222 = arith.constant 0 : i32
    %421 = arith.addi %0, %c0_i32_222 : i32
    %422 = arith.index_cast %421 : i32 to index
    %423 = arith.index_cast %420 : i32 to index
    %424 = memref.load %arg2[%422, %423] : memref<2x8xi32, #tpu.memory_space<smem>>
    %c2_i32_223 = arith.constant 2 : i32
    %425 = arith.muli %424, %c2_i32_223 : i32
    %c0_i32_224 = arith.constant 0 : i32
    %426 = arith.addi %425, %c0_i32_224 : i32
    %427 = arith.index_cast %426 : i32 to index
    %c0_225 = arith.constant 0 : index
    %428 = vector.load %arg14[%427, %c0_225] : memref<16x32xf32, #tpu.memory_space<vmem>>, vector<1x32xf32>
    %c0_226 = arith.constant 0 : index
    %c0_227 = arith.constant 0 : index
    %429 = vector.load %arg16[%c0_226, %c0_227] : memref<2x32xf32, #tpu.memory_space<vmem>>, vector<1x32xf32>
    tpu.vector_store %arg16[%c0_226, %c0_227], %428 {strides = array<i32>} : memref<2x32xf32, #tpu.memory_space<vmem>>, vector<1x32xf32>,
    %c1_i32_228 = arith.constant 1 : i32
    %430 = arith.addi %0, %c1_i32_228 : i32
    %431 = arith.index_cast %430 : i32 to index
    %432 = arith.index_cast %420 : i32 to index
    %433 = memref.load %arg2[%431, %432] : memref<2x8xi32, #tpu.memory_space<smem>>
    %c2_i32_229 = arith.constant 2 : i32
    %434 = arith.muli %433, %c2_i32_229 : i32
    %c1_i32_230 = arith.constant 1 : i32
    %435 = arith.addi %434, %c1_i32_230 : i32
    %436 = arith.index_cast %435 : i32 to index
    %c0_231 = arith.constant 0 : index
    %437 = vector.load %arg14[%436, %c0_231] : memref<16x32xf32, #tpu.memory_space<vmem>>, vector<1x32xf32>
    %c1_232 = arith.constant 1 : index
    %c0_233 = arith.constant 0 : index
    %438 = vector.load %arg16[%c1_232, %c0_233] : memref<2x32xf32, #tpu.memory_space<vmem>>, vector<1x32xf32>
    tpu.vector_store %arg16[%c1_232, %c0_233], %437 {strides = array<i32>} : memref<2x32xf32, #tpu.memory_space<vmem>>, vector<1x32xf32>,
    %c0_234 = arith.constant 0 : index
    %c0_235 = arith.constant 0 : index
    %439 = vector.load %arg16[%c0_234, %c0_235] : memref<2x32xf32, #tpu.memory_space<vmem>>, vector<2x32xf32>
    %c0_236 = arith.constant 0 : index
    %c0_237 = arith.constant 0 : index
    %440 = vector.load %arg15[%c0_236, %c0_237] : memref<2x32xf32, #tpu.memory_space<vmem>>, vector<2x32xf32>
    %441 = tpu.concatenate %439, %440 in 1 : vector<2x32xf32>, vector<2x32xf32> -> vector<2x64xf32>
    %c6 = arith.constant 6 : index
    %c0_238 = arith.constant 0 : index
    %c0_239 = arith.constant 0 : index
    %442 = vector.load %arg3[%c6, %c0_238, %c0_239] : memref<8x2x32xf32, #tpu.memory_space<vmem>>, vector<1x2x32xf32>
    %443 = vector.shape_cast %442 : vector<1x2x32xf32> to vector<2x32xf32>
    %444 = tpu.concatenate %443, %8 in 1 : vector<2x32xf32>, vector<2x32xf32> -> vector<2x64xf32>
    %cst_240 = arith.constant dense<0.000000e+00> : vector<2x64xf32>
    %445 = tpu.matmul %441, %4, %cst_240 {dimension_numbers = #tpu.dot_dimension_numbers<[1], [0], [0], [1], [0, 0, 1, 1], [], []>} : vector<2x64xf32>, vector<64x64xf32>, vector<2x64xf32> -> vector<2x64xf32>
    %446 = arith.addf %445, %444 : vector<2x64xf32>
    %447 = arith.negf %446 : vector<2x64xf32>
    %448 = math.exp %447 : vector<2x64xf32>
    %cst_241 = arith.constant 1.000000e+00 : f32
    %449 = vector.broadcast %cst_241 : f32 to vector<2x64xf32>
    %450 = arith.addf %449, %448 : vector<2x64xf32>
    %451 = arith.divf %449, %450 : vector<2x64xf32>
    %452 = arith.mulf %441, %451 : vector<2x64xf32>
    %453 = vector.extract_strided_slice %452 {offsets = [0, 0], sizes = [2, 32], strides = [1, 1]} : vector<2x64xf32> to vector<2x32xf32>
    %454 = vector.extract_strided_slice %452 {offsets = [0, 32], sizes = [2, 32], strides = [1, 1]} : vector<2x64xf32> to vector<2x32xf32>
    %cst_242 = arith.constant dense<0.000000e+00> : vector<2x96xf32>
    %455 = tpu.matmul %452, %5, %cst_242 {dimension_numbers = #tpu.dot_dimension_numbers<[1], [0], [0], [1], [0, 0, 1, 1], [], []>} : vector<2x64xf32>, vector<64x96xf32>, vector<2x96xf32> -> vector<2x96xf32>
    %456 = vector.extract_strided_slice %455 {offsets = [0, 0], sizes = [2, 32], strides = [1, 1]} : vector<2x96xf32> to vector<2x32xf32>
    %c6_243 = arith.constant 6 : index
    %c0_244 = arith.constant 0 : index
    %c0_245 = arith.constant 0 : index
    %457 = vector.load %arg4[%c6_243, %c0_244, %c0_245] : memref<8x2x32xf32, #tpu.memory_space<vmem>>, vector<1x2x32xf32>
    %458 = vector.shape_cast %457 : vector<1x2x32xf32> to vector<2x32xf32>
    %459 = arith.addf %456, %458 : vector<2x32xf32>
    %cst_246 = arith.constant 0.000000e+00 : f32
    %460 = vector.broadcast %cst_246 : f32 to vector<2x32xf32>
    %461 = arith.maximumf %459, %460 : vector<2x32xf32>
    %462 = vector.broadcast %9 : vector<1x32xf32> to vector<2x32xf32>
    %463 = arith.mulf %461, %462 : vector<2x32xf32>
    %cst_247 = arith.constant dense<0.000000e+00> : vector<2xf32>
    %464 = vector.multi_reduction <add>, %463, %cst_247 [1] : vector<2x32xf32> to vector<2xf32>
    %465 = vector.shape_cast %464 : vector<2xf32> to vector<2x1xf32>
    %466 = vector.broadcast %10 : vector<1x1xf32> to vector<2x1xf32>
    %467 = arith.addf %465, %466 : vector<2x1xf32>
    %468 = arith.negf %467 : vector<2x1xf32>
    %469 = math.exp %468 : vector<2x1xf32>
    %cst_248 = arith.constant 1.000000e+00 : f32
    %470 = vector.broadcast %cst_248 : f32 to vector<2x1xf32>
    %471 = arith.addf %470, %469 : vector<2x1xf32>
    %472 = arith.divf %470, %471 : vector<2x1xf32>
    %473 = vector.extract_strided_slice %455 {offsets = [0, 32], sizes = [2, 64], strides = [1, 1]} : vector<2x96xf32> to vector<2x64xf32>
    %c6_249 = arith.constant 6 : index
    %c0_250 = arith.constant 0 : index
    %c0_251 = arith.constant 0 : index
    %474 = vector.load %arg5[%c6_249, %c0_250, %c0_251] : memref<8x2x64xf32, #tpu.memory_space<vmem>>, vector<1x2x64xf32>
    %475 = vector.shape_cast %474 : vector<1x2x64xf32> to vector<2x64xf32>
    %476 = arith.addf %473, %475 : vector<2x64xf32>
    %477 = math.tanh %476 : vector<2x64xf32>
    %478 = vector.extract_strided_slice %477 {offsets = [0, 0], sizes = [2, 32], strides = [1, 1]} : vector<2x64xf32> to vector<2x32xf32>
    %479 = arith.addf %454, %478 : vector<2x32xf32>
    %c0_252 = arith.constant 0 : index
    %c0_253 = arith.constant 0 : index
    %480 = vector.load %arg15[%c0_252, %c0_253] : memref<2x32xf32, #tpu.memory_space<vmem>>, vector<2x32xf32>
    tpu.vector_store %arg15[%c0_252, %c0_253], %479 {strides = array<i32>} : memref<2x32xf32, #tpu.memory_space<vmem>>, vector<2x32xf32>,
    %481 = vector.extract_strided_slice %477 {offsets = [0, 32], sizes = [2, 32], strides = [1, 1]} : vector<2x64xf32> to vector<2x32xf32>
    %482 = arith.addf %453, %481 : vector<2x32xf32>
    %c2_i32_254 = arith.constant 2 : i32
    %483 = arith.muli %420, %c2_i32_254 : i32
    %484 = tpu.assume_multiple %483, 2 : i32
    %485 = arith.index_cast %484 : i32 to index
    %c0_255 = arith.constant 0 : index
    %486 = vector.load %arg14[%485, %c0_255] : memref<16x32xf32, #tpu.memory_space<vmem>>, vector<2x32xf32>
    tpu.vector_store %arg14[%485, %c0_255], %482 {strides = array<i32>} : memref<16x32xf32, #tpu.memory_space<vmem>>, vector<2x32xf32>,
    %c8_i32_256 = arith.constant 8 : i32
    %487 = arith.muli %arg1, %c8_i32_256 : i32
    %c7_i32 = arith.constant 7 : i32
    %488 = arith.addi %487, %c7_i32 : i32
    %c0_i32_257 = arith.constant 0 : i32
    %489 = arith.addi %0, %c0_i32_257 : i32
    %490 = arith.index_cast %489 : i32 to index
    %491 = arith.index_cast %488 : i32 to index
    %492 = memref.load %arg2[%490, %491] : memref<2x8xi32, #tpu.memory_space<smem>>
    %c2_i32_258 = arith.constant 2 : i32
    %493 = arith.muli %492, %c2_i32_258 : i32
    %c0_i32_259 = arith.constant 0 : i32
    %494 = arith.addi %493, %c0_i32_259 : i32
    %495 = arith.index_cast %494 : i32 to index
    %c0_260 = arith.constant 0 : index
    %496 = vector.load %arg14[%495, %c0_260] : memref<16x32xf32, #tpu.memory_space<vmem>>, vector<1x32xf32>
    %c0_261 = arith.constant 0 : index
    %c0_262 = arith.constant 0 : index
    %497 = vector.load %arg16[%c0_261, %c0_262] : memref<2x32xf32, #tpu.memory_space<vmem>>, vector<1x32xf32>
    tpu.vector_store %arg16[%c0_261, %c0_262], %496 {strides = array<i32>} : memref<2x32xf32, #tpu.memory_space<vmem>>, vector<1x32xf32>,
    %c1_i32_263 = arith.constant 1 : i32
    %498 = arith.addi %0, %c1_i32_263 : i32
    %499 = arith.index_cast %498 : i32 to index
    %500 = arith.index_cast %488 : i32 to index
    %501 = memref.load %arg2[%499, %500] : memref<2x8xi32, #tpu.memory_space<smem>>
    %c2_i32_264 = arith.constant 2 : i32
    %502 = arith.muli %501, %c2_i32_264 : i32
    %c1_i32_265 = arith.constant 1 : i32
    %503 = arith.addi %502, %c1_i32_265 : i32
    %504 = arith.index_cast %503 : i32 to index
    %c0_266 = arith.constant 0 : index
    %505 = vector.load %arg14[%504, %c0_266] : memref<16x32xf32, #tpu.memory_space<vmem>>, vector<1x32xf32>
    %c1_267 = arith.constant 1 : index
    %c0_268 = arith.constant 0 : index
    %506 = vector.load %arg16[%c1_267, %c0_268] : memref<2x32xf32, #tpu.memory_space<vmem>>, vector<1x32xf32>
    tpu.vector_store %arg16[%c1_267, %c0_268], %505 {strides = array<i32>} : memref<2x32xf32, #tpu.memory_space<vmem>>, vector<1x32xf32>,
    %c0_269 = arith.constant 0 : index
    %c0_270 = arith.constant 0 : index
    %507 = vector.load %arg16[%c0_269, %c0_270] : memref<2x32xf32, #tpu.memory_space<vmem>>, vector<2x32xf32>
    %c0_271 = arith.constant 0 : index
    %c0_272 = arith.constant 0 : index
    %508 = vector.load %arg15[%c0_271, %c0_272] : memref<2x32xf32, #tpu.memory_space<vmem>>, vector<2x32xf32>
    %509 = tpu.concatenate %507, %508 in 1 : vector<2x32xf32>, vector<2x32xf32> -> vector<2x64xf32>
    %c7 = arith.constant 7 : index
    %c0_273 = arith.constant 0 : index
    %c0_274 = arith.constant 0 : index
    %510 = vector.load %arg3[%c7, %c0_273, %c0_274] : memref<8x2x32xf32, #tpu.memory_space<vmem>>, vector<1x2x32xf32>
    %511 = vector.shape_cast %510 : vector<1x2x32xf32> to vector<2x32xf32>
    %512 = tpu.concatenate %511, %8 in 1 : vector<2x32xf32>, vector<2x32xf32> -> vector<2x64xf32>
    %cst_275 = arith.constant dense<0.000000e+00> : vector<2x64xf32>
    %513 = tpu.matmul %509, %4, %cst_275 {dimension_numbers = #tpu.dot_dimension_numbers<[1], [0], [0], [1], [0, 0, 1, 1], [], []>} : vector<2x64xf32>, vector<64x64xf32>, vector<2x64xf32> -> vector<2x64xf32>
    %514 = arith.addf %513, %512 : vector<2x64xf32>
    %515 = arith.negf %514 : vector<2x64xf32>
    %516 = math.exp %515 : vector<2x64xf32>
    %cst_276 = arith.constant 1.000000e+00 : f32
    %517 = vector.broadcast %cst_276 : f32 to vector<2x64xf32>
    %518 = arith.addf %517, %516 : vector<2x64xf32>
    %519 = arith.divf %517, %518 : vector<2x64xf32>
    %520 = arith.mulf %509, %519 : vector<2x64xf32>
    %521 = vector.extract_strided_slice %520 {offsets = [0, 0], sizes = [2, 32], strides = [1, 1]} : vector<2x64xf32> to vector<2x32xf32>
    %522 = vector.extract_strided_slice %520 {offsets = [0, 32], sizes = [2, 32], strides = [1, 1]} : vector<2x64xf32> to vector<2x32xf32>
    %cst_277 = arith.constant dense<0.000000e+00> : vector<2x96xf32>
    %523 = tpu.matmul %520, %5, %cst_277 {dimension_numbers = #tpu.dot_dimension_numbers<[1], [0], [0], [1], [0, 0, 1, 1], [], []>} : vector<2x64xf32>, vector<64x96xf32>, vector<2x96xf32> -> vector<2x96xf32>
    %524 = vector.extract_strided_slice %523 {offsets = [0, 0], sizes = [2, 32], strides = [1, 1]} : vector<2x96xf32> to vector<2x32xf32>
    %c7_278 = arith.constant 7 : index
    %c0_279 = arith.constant 0 : index
    %c0_280 = arith.constant 0 : index
    %525 = vector.load %arg4[%c7_278, %c0_279, %c0_280] : memref<8x2x32xf32, #tpu.memory_space<vmem>>, vector<1x2x32xf32>
    %526 = vector.shape_cast %525 : vector<1x2x32xf32> to vector<2x32xf32>
    %527 = arith.addf %524, %526 : vector<2x32xf32>
    %cst_281 = arith.constant 0.000000e+00 : f32
    %528 = vector.broadcast %cst_281 : f32 to vector<2x32xf32>
    %529 = arith.maximumf %527, %528 : vector<2x32xf32>
    %530 = vector.broadcast %9 : vector<1x32xf32> to vector<2x32xf32>
    %531 = arith.mulf %529, %530 : vector<2x32xf32>
    %cst_282 = arith.constant dense<0.000000e+00> : vector<2xf32>
    %532 = vector.multi_reduction <add>, %531, %cst_282 [1] : vector<2x32xf32> to vector<2xf32>
    %533 = vector.shape_cast %532 : vector<2xf32> to vector<2x1xf32>
    %534 = vector.broadcast %10 : vector<1x1xf32> to vector<2x1xf32>
    %535 = arith.addf %533, %534 : vector<2x1xf32>
    %536 = arith.negf %535 : vector<2x1xf32>
    %537 = math.exp %536 : vector<2x1xf32>
    %cst_283 = arith.constant 1.000000e+00 : f32
    %538 = vector.broadcast %cst_283 : f32 to vector<2x1xf32>
    %539 = arith.addf %538, %537 : vector<2x1xf32>
    %540 = arith.divf %538, %539 : vector<2x1xf32>
    %541 = vector.extract_strided_slice %523 {offsets = [0, 32], sizes = [2, 64], strides = [1, 1]} : vector<2x96xf32> to vector<2x64xf32>
    %c7_284 = arith.constant 7 : index
    %c0_285 = arith.constant 0 : index
    %c0_286 = arith.constant 0 : index
    %542 = vector.load %arg5[%c7_284, %c0_285, %c0_286] : memref<8x2x64xf32, #tpu.memory_space<vmem>>, vector<1x2x64xf32>
    %543 = vector.shape_cast %542 : vector<1x2x64xf32> to vector<2x64xf32>
    %544 = arith.addf %541, %543 : vector<2x64xf32>
    %545 = math.tanh %544 : vector<2x64xf32>
    %546 = vector.extract_strided_slice %545 {offsets = [0, 0], sizes = [2, 32], strides = [1, 1]} : vector<2x64xf32> to vector<2x32xf32>
    %547 = arith.addf %522, %546 : vector<2x32xf32>
    %c0_287 = arith.constant 0 : index
    %c0_288 = arith.constant 0 : index
    %548 = vector.load %arg15[%c0_287, %c0_288] : memref<2x32xf32, #tpu.memory_space<vmem>>, vector<2x32xf32>
    tpu.vector_store %arg15[%c0_287, %c0_288], %547 {strides = array<i32>} : memref<2x32xf32, #tpu.memory_space<vmem>>, vector<2x32xf32>,
    %549 = vector.extract_strided_slice %545 {offsets = [0, 32], sizes = [2, 32], strides = [1, 1]} : vector<2x64xf32> to vector<2x32xf32>
    %550 = arith.addf %521, %549 : vector<2x32xf32>
    %c2_i32_289 = arith.constant 2 : i32
    %551 = arith.muli %488, %c2_i32_289 : i32
    %552 = tpu.assume_multiple %551, 2 : i32
    %553 = arith.index_cast %552 : i32 to index
    %c0_290 = arith.constant 0 : index
    %554 = vector.load %arg14[%553, %c0_290] : memref<16x32xf32, #tpu.memory_space<vmem>>, vector<2x32xf32>
    tpu.vector_store %arg14[%553, %c0_290], %550 {strides = array<i32>} : memref<16x32xf32, #tpu.memory_space<vmem>>, vector<2x32xf32>,
    %555 = tpu.concatenate %64, %132, %200, %268, %336, %404, %472, %540 in 1 : vector<2x1xf32>, vector<2x1xf32>, vector<2x1xf32>, vector<2x1xf32>, vector<2x1xf32>, vector<2x1xf32>, vector<2x1xf32>, vector<2x1xf32> -> vector<2x8xf32>
    %556 = tpu.transpose %555, [1, 0] : vector<2x8xf32> -> vector<8x2xf32>
    %c0_291 = arith.constant 0 : index
    %c0_292 = arith.constant 0 : index
    %557 = vector.load %arg13[%c0_291, %c0_292] : memref<8x2xf32, #tpu.memory_space<vmem>>, vector<8x2xf32>
    tpu.vector_store %arg13[%c0_291, %c0_292], %556 {strides = array<i32>} : memref<8x2xf32, #tpu.memory_space<vmem>>, vector<8x2xf32>,
    return
  }
  func.func @transform_0(%arg0: i32, %arg1: i32, %arg2: memref<2x8xi32, #tpu.memory_space<smem>>) -> (i32, i32, i32) {
    %c0_i32 = arith.constant 0 : i32
    %c0_i32_0 = arith.constant 0 : i32
    return %arg1, %arg0, %c0_i32 : i32, i32, i32
  }
  func.func @transform_1(%arg0: i32, %arg1: i32, %arg2: memref<2x8xi32, #tpu.memory_space<smem>>) -> (i32, i32, i32) {
    %c0_i32 = arith.constant 0 : i32
    %c0_i32_0 = arith.constant 0 : i32
    return %arg1, %arg0, %c0_i32 : i32, i32, i32
  }
  func.func @transform_2(%arg0: i32, %arg1: i32, %arg2: memref<2x8xi32, #tpu.memory_space<smem>>) -> (i32, i32, i32) {
    %c0_i32 = arith.constant 0 : i32
    %c0_i32_0 = arith.constant 0 : i32
    return %arg1, %arg0, %c0_i32 : i32, i32, i32
  }
  func.func @transform_3(%arg0: i32, %arg1: i32, %arg2: memref<2x8xi32, #tpu.memory_space<smem>>) -> (i32, i32) {
    %c0_i32 = arith.constant 0 : i32
    %c0_i32_0 = arith.constant 0 : i32
    %c0_i32_1 = arith.constant 0 : i32
    return %c0_i32, %c0_i32_0 : i32, i32
  }
  func.func @transform_4(%arg0: i32, %arg1: i32, %arg2: memref<2x8xi32, #tpu.memory_space<smem>>) -> (i32, i32) {
    %c0_i32 = arith.constant 0 : i32
    %c0_i32_0 = arith.constant 0 : i32
    %c0_i32_1 = arith.constant 0 : i32
    return %c0_i32, %c0_i32_0 : i32, i32
  }
  func.func @transform_5(%arg0: i32, %arg1: i32, %arg2: memref<2x8xi32, #tpu.memory_space<smem>>) -> (i32, i32) {
    %c0_i32 = arith.constant 0 : i32
    %c0_i32_0 = arith.constant 0 : i32
    %c0_i32_1 = arith.constant 0 : i32
    return %c0_i32, %c0_i32_0 : i32, i32
  }
  func.func @transform_6(%arg0: i32, %arg1: i32, %arg2: memref<2x8xi32, #tpu.memory_space<smem>>) -> (i32, i32) {
    %c0_i32 = arith.constant 0 : i32
    %c0_i32_0 = arith.constant 0 : i32
    %c0_i32_1 = arith.constant 0 : i32
    return %c0_i32, %c0_i32_0 : i32, i32
  }
  func.func @transform_7(%arg0: i32, %arg1: i32, %arg2: memref<2x8xi32, #tpu.memory_space<smem>>) -> (i32, i32) {
    %c0_i32 = arith.constant 0 : i32
    %c0_i32_0 = arith.constant 0 : i32
    %c0_i32_1 = arith.constant 0 : i32
    return %c0_i32, %c0_i32_0 : i32, i32
  }
  func.func @transform_8(%arg0: i32, %arg1: i32, %arg2: memref<2x8xi32, #tpu.memory_space<smem>>) -> (i32, i32) {
    %c0_i32 = arith.constant 0 : i32
    %c0_i32_0 = arith.constant 0 : i32
    %c0_i32_1 = arith.constant 0 : i32
    return %c0_i32, %c0_i32_0 : i32, i32
  }
  func.func @transform_9(%arg0: i32, %arg1: i32, %arg2: memref<2x8xi32, #tpu.memory_space<smem>>) -> (i32, i32) {
    %c0_i32 = arith.constant 0 : i32
    %c0_i32_0 = arith.constant 0 : i32
    %c0_i32_1 = arith.constant 0 : i32
    return %c0_i32, %c0_i32_0 : i32, i32
  }
  func.func @transform_10(%arg0: i32, %arg1: i32, %arg2: memref<2x8xi32, #tpu.memory_space<smem>>) -> (i32, i32) {
    %c0_i32 = arith.constant 0 : i32
    return %arg1, %arg0 : i32, i32
  }
}

</mosaic_0001>

<llo_original>
// kernel: tpu_custom_call.1
$region0: #{tpu_custom_call.1}
  #allocation0 [shape = 'u32[]', space=smem, size = 0x4, offset = 0x4, fixed_abs, tag = 'smem constant byte address 0x4 - core index']
  #allocation1 [shape = 'u32[144,128]{1,0:T(1,128)}', space=vmem, size = 0x12000, scoped, tag = 'internal scratch']
  #allocation2 [shape = 'f32[16,32]{1,0:T(8,128)}', space=vmem, size = 0x2000, scoped, tag = 'scratch operand']
  #allocation3 [shape = 'f32[2,32]{1,0:T(2,128)}', space=vmem, size = 0x400, scoped, tag = 'scratch operand']
  #allocation4 [shape = 'f32[2,32]{1,0:T(2,128)}', space=vmem, size = 0x400, scoped, tag = 'scratch operand']
  #allocation5 [shape = 's32[1]{0}', space=sflag, size = 0x4, scoped, tag = 'scoped memory for tpu_custom_call.1']
  #allocation6 [shape = 'u8[1024]{0}', space=smem, size = 0x400, scoped, tag = 'prefetched SMEM operand 0']
  #allocation7 [shape = 'f32[1,1]{1,0:T(1,128)S(1)}', space=vmem, size = 0x200, scoped, tag = 'scoped memory for tpu_custom_call.1']
  %s0 = inlined_call_operand.vmem [shape: s32[2,8], index: 0, kind: input, shape index: {}]
  %s1 = inlined_call_operand.hbm [shape: f32[8,2,32], index: 1, kind: input, shape index: {}]
  %s2 = inlined_call_operand.hbm [shape: f32[8,2,32], index: 2, kind: input, shape index: {}]
  %s3 = inlined_call_operand.hbm [shape: f32[8,2,64], index: 3, kind: input, shape index: {}]
  %s4 = inlined_call_operand.vmem [shape: f32[1,32], index: 4, kind: input, shape index: {}]
  %s5 = inlined_call_operand.vmem [shape: f32[1,32], index: 5, kind: input, shape index: {}]
  %s6 = inlined_call_operand.hbm [shape: f32[64,64], index: 6, kind: input, shape index: {}]
  %s7 = inlined_call_operand.vmem [shape: f32[1,32], index: 7, kind: input, shape index: {}]
  %s8 = inlined_call_operand.hbm [shape: f32[64,96], index: 8, kind: input, shape index: {}]
  %s9 = inlined_call_operand.vmem [shape: f32[1,32], index: 9, kind: input, shape index: {}]
  %s10 = inlined_call_operand.<no memory space> [shape: f32[1,1], index: 10, kind: input, shape index: {}]
  %s11 = inlined_call_operand.vmem [shape: f32[8,2], index: 11, kind: output, shape index: {}]
  %s12 = sld [smem:[#allocation0]]
  $region74: #{tpu_custom_call.1} parent=0
    _
  %s14 = ssub.s32 1, %s12
  %s15 = scalar_select 0, %s14, %s12
  %s16 = sshll.u32 %s0, 4
  %s17 = int_to_ptr.vmem [resolvable:$true] %s16
  %19 = dma.vmem_to_smem %s17, 32, [#allocation6], [#allocation5]
  %v20 = vstv %s10
  %21 = vst [vmem:[#allocation7] sm:$0x1] %v20
  %22 = dma.done [#allocation5], 32
  %23 = sfence
  $region1: #{tpu_custom_call.1} parent=0
    #allocation8 [shape = 'u8[8192]{0}', space=vmem, size = 0x2000, scoped, tag = 'input window, operand 1, single buffered']
    #allocation9 [shape = 's32[1]{0}', space=sflag, size = 0x4, scoped, tag = 'scoped memory for tpu_custom_call.1']
    #allocation10 [shape = 'u8[8192]{0}', space=vmem, size = 0x2000, scoped, tag = 'input window, operand 2, single buffered']
    #allocation11 [shape = 's32[1]{0}', space=sflag, size = 0x4, scoped, tag = 'scoped memory for tpu_custom_call.1']
    #allocation12 [shape = 'u8[8192]{0}', space=vmem, size = 0x2000, scoped, tag = 'input window, operand 3, single buffered']
    #allocation13 [shape = 'u8[32768]{0}', space=vmem, size = 0x8000, scoped, tag = 'input window, operand 6, single buffered']
    #allocation14 [shape = 's32[1]{0}', space=sflag, size = 0x4, scoped, tag = 'scoped memory for tpu_custom_call.1']
    #allocation15 [shape = 'u8[32768]{0}', space=vmem, size = 0x8000, scoped, tag = 'input window, operand 8, single buffered']
    %24 = vsyncpa [#allocation9], 0
    %25 = vsyncpa [#allocation11], 0
    %26 = vsyncpa [#allocation14], 0
    // Predicated region
    $region2: #{tpu_custom_call.1} parent=1 // pred_check
      _
    $region3: #{tpu_custom_call.1} parent=1 // pred_check_branch
      %28 = sbr.rel (0) target = $region5
    $region4: #{tpu_custom_call.1} parent=1 // pred_region
      %s30 = ssub.s32 256, 256
      %31 = vsyncadd [#allocation9], %s30
      %s32 = sshll.u32 [#allocation8], 4
      %s33 = int_to_ptr.vmem [resolvable:$true] %s32
      %38 = dma.hbm_to_vmem [thread:$0]  %s1, 256, %s33, [#allocation9], 32, 32, 2
    $region5: #{tpu_custom_call.1} parent=1 // pred_fallthru
      _
    // Predicated region
    $region6: #{tpu_custom_call.1} parent=1 // pred_check
      _
    $region7: #{tpu_custom_call.1} parent=1 // pred_check_branch
      %40 = sbr.rel (0) target = $region9
    $region8: #{tpu_custom_call.1} parent=1 // pred_region
      %s42 = ssub.s32 256, 256
      %43 = vsyncadd [#allocation11], %s42
      %s44 = sshll.u32 [#allocation10], 4
      %s45 = int_to_ptr.vmem [resolvable:$true] %s44
      %50 = dma.hbm_to_vmem [thread:$0]  %s2, 256, %s45, [#allocation11], 32, 32, 2
    $region9: #{tpu_custom_call.1} parent=1 // pred_fallthru
      _
    // Predicated region
    $region10: #{tpu_custom_call.1} parent=1 // pred_check
      _
    $region11: #{tpu_custom_call.1} parent=1 // pred_check_branch
      %52 = sbr.rel (0) target = $region13
    $region12: #{tpu_custom_call.1} parent=1 // pred_region
      %s54 = ssub.s32 256, 256
      %55 = vsyncadd [#allocation11], %s54
      %s56 = sshll.u32 [#allocation12], 4
      %s57 = int_to_ptr.vmem [resolvable:$true] %s56
      %62 = dma.hbm_to_vmem [thread:$0]  %s3, 256, %s57, [#allocation11], 32, 32, 2
    $region13: #{tpu_custom_call.1} parent=1 // pred_fallthru
      _
    // Predicated region
    $region14: #{tpu_custom_call.1} parent=1 // pred_check
      _
    $region15: #{tpu_custom_call.1} parent=1 // pred_check_branch
      %64 = sbr.rel (0) target = $region17
    $region16: #{tpu_custom_call.1} parent=1 // pred_region
      _
    $region17: #{tpu_custom_call.1} parent=1 // pred_fallthru
      _
    // Predicated region
    $region18: #{tpu_custom_call.1} parent=1 // pred_check
      _
    $region19: #{tpu_custom_call.1} parent=1 // pred_check_branch
      %66 = sbr.rel (0) target = $region21
    $region20: #{tpu_custom_call.1} parent=1 // pred_region
      _
    $region21: #{tpu_custom_call.1} parent=1 // pred_fallthru
      _
    // Predicated region
    $region22: #{tpu_custom_call.1} parent=1 // pred_check
      _
    $region23: #{tpu_custom_call.1} parent=1 // pred_check_branch
      %68 = sbr.rel (0) target = $region25
    $region24: #{tpu_custom_call.1} parent=1 // pred_region
      %s70 = ssub.s32 1024, 1024
      %71 = vsyncadd [#allocation14], %s70
      %s72 = sshll.u32 [#allocation13], 4
      %s73 = int_to_ptr.vmem [resolvable:$true] %s72
      %78 = dma.hbm_to_vmem [thread:$0]  %s6, 1024, %s73, [#allocation14], 128, 128, 8
    $region25: #{tpu_custom_call.1} parent=1 // pred_fallthru
      _
    // Predicated region
    $region26: #{tpu_custom_call.1} parent=1 // pred_check
      _
    $region27: #{tpu_custom_call.1} parent=1 // pred_check_branch
      %80 = sbr.rel (0) target = $region29
    $region28: #{tpu_custom_call.1} parent=1 // pred_region
      _
    $region29: #{tpu_custom_call.1} parent=1 // pred_fallthru
      _
    // Predicated region
    $region30: #{tpu_custom_call.1} parent=1 // pred_check
      _
    $region31: #{tpu_custom_call.1} parent=1 // pred_check_branch
      %82 = sbr.rel (0) target = $region33
    $region32: #{tpu_custom_call.1} parent=1 // pred_region
      %s84 = ssub.s32 1024, 1024
      %85 = vsyncadd [#allocation14], %s84
      %s86 = sshll.u32 [#allocation15], 4
      %s87 = int_to_ptr.vmem [resolvable:$true] %s86
      %92 = dma.hbm_to_vmem [thread:$0]  %s8, 1024, %s87, [#allocation14], 128, 128, 8
    $region33: #{tpu_custom_call.1} parent=1 // pred_fallthru
      _
    // Predicated region
    $region34: #{tpu_custom_call.1} parent=1 // pred_check
      _
    $region35: #{tpu_custom_call.1} parent=1 // pred_check_branch
      %94 = sbr.rel (0) target = $region37
    $region36: #{tpu_custom_call.1} parent=1 // pred_region
      _
    $region37: #{tpu_custom_call.1} parent=1 // pred_fallthru
      _
    // Predicated region
    $region38: #{tpu_custom_call.1} parent=1 // pred_check
      _
    $region39: #{tpu_custom_call.1} parent=1 // pred_check_branch
      %96 = sbr.rel (0) target = $region41
    $region40: #{tpu_custom_call.1} parent=1 // pred_region
      _
    $region41: #{tpu_custom_call.1} parent=1 // pred_fallthru
      _
    // Predicated region
    $region42: #{tpu_custom_call.1} parent=1 // pred_check
      _
    $region43: #{tpu_custom_call.1} parent=1 // pred_check_branch
      %98 = sbr.rel (0) target = $region45
    $region44: #{tpu_custom_call.1} parent=1 // pred_region
      %99 = dma.done [#allocation9], 256
    $region45: #{tpu_custom_call.1} parent=1 // pred_fallthru
      _
    // Predicated region
    $region46: #{tpu_custom_call.1} parent=1 // pred_check
      _
    $region47: #{tpu_custom_call.1} parent=1 // pred_check_branch
      %101 = sbr.rel (0) target = $region49
    $region48: #{tpu_custom_call.1} parent=1 // pred_region
      %102 = dma.done [#allocation11], 256
    $region49: #{tpu_custom_call.1} parent=1 // pred_fallthru
      _
    // Predicated region
    $region50: #{tpu_custom_call.1} parent=1 // pred_check
      _
    $region51: #{tpu_custom_call.1} parent=1 // pred_check_branch
      %104 = sbr.rel (0) target = $region53
    $region52: #{tpu_custom_call.1} parent=1 // pred_region
      %105 = dma.done [#allocation11], 256
    $region53: #{tpu_custom_call.1} parent=1 // pred_fallthru
      _
    // Predicated region
    $region54: #{tpu_custom_call.1} parent=1 // pred_check
      _
    $region55: #{tpu_custom_call.1} parent=1 // pred_check_branch
      %107 = sbr.rel (0) target = $region57
    $region56: #{tpu_custom_call.1} parent=1 // pred_region
      %108 = dma.done [#allocation14], 1024
    $region57: #{tpu_custom_call.1} parent=1 // pred_fallthru
      _
    // Predicated region
    $region58: #{tpu_custom_call.1} parent=1 // pred_check
      _
    $region59: #{tpu_custom_call.1} parent=1 // pred_check_branch
      %110 = sbr.rel (0) target = $region61
    $region60: #{tpu_custom_call.1} parent=1 // pred_region
      %111 = dma.done [#allocation14], 1024
    $region61: #{tpu_custom_call.1} parent=1 // pred_fallthru
      _
    %s112 = smul.u32 0, 2
    %p113 = scmp.eq.s32.totalorder 0, 0
    // Predicated region
    $region62: #{tpu_custom_call.1} parent=1 // pred_check
      %p114 = pneg %p113
    $region63: #{tpu_custom_call.1} parent=1 // pred_check_branch
      %116 = sbr.rel (%p114) target = $region65
    $region64: #{tpu_custom_call.1} parent=1 // pred_region
      %v117 = vld [vmem:[%s4] sm:$0x1]
      %v119 = vlaneseq
      %v120 = vshrl.u32 %v119, 7
      %v121 = vsub.s32 0, %v120
      %v122 = vrot.slane %v117, %v121
      %vm124 = vcmask 254976
      %125 = vst.msk [vmem:[#allocation2] sm:$0x3] %vm124, %v122
      %v126 = vld [vmem:[%s5] sm:$0x1]
      %v128 = vlaneseq
      %v129 = vshrl.u32 %v128, 7
      %v130 = vsub.s32 0, %v129
      %v131 = vrot.slane %v126, %v130
      %133 = vst.msk [vmem:[#allocation3] sm:$0x3] %vm124, %v131
    $region65: #{tpu_custom_call.1} parent=1 // pred_fallthru
      _
    %v134 = vld [vmem:[#allocation13] sm:$0xff]
    %v135 = vld [vmem:[#allocation13 + $0x8] sm:$0xff]
    %v136 = vld [vmem:[#allocation13 + $0x10] sm:$0xff]
    %v137 = vld [vmem:[#allocation13 + $0x18] sm:$0xff]
    %v138 = vld [vmem:[#allocation13 + $0x20] sm:$0xff]
    %v139 = vld [vmem:[#allocation13 + $0x28] sm:$0xff]
    %v140 = vld [vmem:[#allocation13 + $0x30] sm:$0xff]
    %v141 = vld [vmem:[#allocation13 + $0x38] sm:$0xff]
    %v142 = vld [vmem:[#allocation15] sm:$0xff]
    %v143 = vld [vmem:[#allocation15 + $0x8] sm:$0xff]
    %v144 = vld [vmem:[#allocation15 + $0x10] sm:$0xff]
    %v145 = vld [vmem:[#allocation15 + $0x18] sm:$0xff]
    %v146 = vld [vmem:[#allocation15 + $0x20] sm:$0xff]
    %v147 = vld [vmem:[#allocation15 + $0x28] sm:$0xff]
    %v148 = vld [vmem:[#allocation15 + $0x30] sm:$0xff]
    %v149 = vld [vmem:[#allocation15 + $0x38] sm:$0xff]
    %v150 = vld [vmem:[%s7] sm:$0x1]
    %v152 = vlaneseq
    %v153 = vshrl.u32 %v152, 7
    %v154 = vsub.s32 0, %v153
    %v155 = vrot.slane %v150, %v154
    %v156 = vld [vmem:[%s9] sm:$0x1]
    %v157 = vld [vmem:[#allocation7] sm:$0x1]
    %s158 = smul.u32 0, 8
    %s159 = sshra.s32 %s158, 7
    %s160 = sand.u32 %s158, 127
    %s161 = sadd.s32 %s159, %s112
    %s162 = smul.u32 %s161, 128
    %s163 = sshra.s32 %s158, 7
    %s164 = sand.u32 %s158, 127
    %s165 = sadd.s32 %s162, %s164
    %s166 = sld [smem:[#allocation6 + %s165]]
    %s167 = smul.u32 %s166, 2
    %s168 = scalar_lea.vmem [#allocation2], %s167
    %v169 = vld [vmem:[%s168] sm:$0x1]
    %vm170 = vcmask 253952
    %171 = vst.msk [vmem:[#allocation4] sm:$0x1] %vm170, %v169
    %s172 = sadd.s32 %s112, 1
    %s173 = sadd.s32 %s159, %s172
    %s174 = smul.u32 %s173, 128
    %s175 = sadd.s32 %s174, %s164
    %s176 = sld [smem:[#allocation6 + %s175]]
    %s177 = smul.u32 %s176, 2
    %s178 = sadd.s32 %s177, 1
    %s179 = scalar_lea.vmem [#allocation2], %s178
    %v180 = vld [vmem:[%s179] sm:$0x1]
    %181 = vst.msk [vmem:[#allocation4 + $0x1] sm:$0x1] %vm170, %v180
    %v182 = vld [vmem:[#allocation4] sm:$0x3]
    %v183 = vld [vmem:[#allocation3] sm:$0x3]
    %185 = vrot.lane.b32.xlu0 %v183, 32
    %v186 = vpop.permute.xlu0 %185
    %vm188 = vcmask 261120
    %v189 = vsel %vm188, %v182, %v186
    %v190 = vld [vmem:[#allocation8] sm:$0x3]
    %191 = vrot.lane.b32.xlu0 %v155, 32
    %v192 = vpop.permute.xlu0 %191
    %v194 = vsel %vm188, %v190, %v192
    %vm195 = vcmask 523264
    %v197 = vsel %vm195, %v189, 0
    %199 = vmatprep.subr.mxu0 0.0
    %200 = vmatpush1.msra.mxu0 0.0
    %201 = vmatprep.subr.mxu0 0.0
    %202 = vmatpush1.msra.mxu0 0.0
    %203 = vmatprep.subr.mxu0 0.0
    %204 = vmatpush1.msra.mxu0 0.0
    %205 = vmatprep.subr.mxu0 0.0
    %206 = vmatpush1.msra.mxu0 0.0
    %207 = vmatprep.subr.mxu0 0.0
    %208 = vmatpush1.msra.mxu0 0.0
    %209 = vmatprep.subr.mxu0 0.0
    %210 = vmatpush1.msra.mxu0 0.0
    %211 = vmatprep.subr.mxu0 0.0
    %212 = vmatpush1.msra.mxu0 0.0
    %213 = vmatprep.subr.mxu0 0.0
    %214 = vmatpush1.msra.mxu0 0.0
    %215 = vmatprep.subr.mxu0 0.0
    %216 = vmatpush1.msra.mxu0 %v141
    %217 = vmatprep.subr.mxu0 0.0
    %218 = vmatpush1.msra.mxu0 %v140
    %219 = vmatprep.subr.mxu0 0.0
    %220 = vmatpush1.msra.mxu0 %v139
    %221 = vmatprep.subr.mxu0 0.0
    %222 = vmatpush1.msra.mxu0 %v138
    %223 = vmatprep.subr.mxu0 0.0
    %224 = vmatpush1.msra.mxu0 %v137
    %225 = vmatprep.subr.mxu0 0.0
    %226 = vmatpush1.msra.mxu0 %v136
    %227 = vmatprep.subr.mxu0 0.0
    %228 = vmatpush1.msra.mxu0 %v135
    %229 = vmatprep.subr.mxu0 0.0
    %230 = vmatpush1.msra.mxu0 %v134
    %231 = vmatprep.subr.mxu0 0.0
    %232 = vmatpush2.msra.mxu0 0.0
    %233 = vmatprep.subr.mxu0 0.0
    %234 = vmatpush2.msra.mxu0 0.0
    %235 = vmatprep.subr.mxu0 0.0
    %236 = vmatpush2.msra.mxu0 0.0
    %237 = vmatprep.subr.mxu0 0.0
    %238 = vmatpush2.msra.mxu0 0.0
    %239 = vmatprep.subr.mxu0 0.0
    %240 = vmatpush2.msra.mxu0 0.0
    %241 = vmatprep.subr.mxu0 0.0
    %242 = vmatpush2.msra.mxu0 0.0
    %243 = vmatprep.subr.mxu0 0.0
    %244 = vmatpush2.msra.mxu0 0.0
    %245 = vmatprep.subr.mxu0 0.0
    %246 = vmatpush2.msra.mxu0 0.0
    %247 = vmatprep.subr.mxu0 0.0
    %248 = vmatpush2.msra.mxu0 0.0
    %249 = vmatprep.subr.mxu0 0.0
    %250 = vmatpush2.msra.mxu0 0.0
    %251 = vmatprep.subr.mxu0 0.0
    %252 = vmatpush2.msra.mxu0 0.0
    %253 = vmatprep.subr.mxu0 0.0
    %254 = vmatpush2.msra.mxu0 0.0
    %255 = vmatprep.subr.mxu0 0.0
    %256 = vmatpush2.msra.mxu0 0.0
    %257 = vmatprep.subr.mxu0 0.0
    %258 = vmatpush2.msra.mxu0 0.0
    %259 = vmatprep.subr.mxu0 0.0
    %260 = vmatpush2.msra.mxu0 0.0
    %261 = vmatprep.subr.mxu0 0.0
    %262 = vmatpush2.msra.mxu0 0.0
    %263 = vmatprep.mubr.f32.mxu0 0.0
    %264 = vmatmul.mubr.f32.gmra.mxu0 %v197
    %v265 = vpop.f32.mrf.mxu0
    %v266 = vadd.f32 %v194, %v265
    %v267 = vpop.f32.mrf.mxu0
    %268 = vdwg.mxu0
    %v269 = vxor.u32 %v266, 2147483648
    %v270 = vmul.f32 %v269, 1.442695
    %v271 = vpow.pop %v270
    %v272 = vadd.f32 %v271, 1.0
    %v273 = vrcp.pop %v272
    %v274 = vmul.f32 1.0, %v273
    %v275 = vmul.f32 %v189, %v274
    %v277 = vsel %vm195, %v275, 0
    %279 = vmatprep.subr.mxu0 0.0
    %280 = vmatpush1.msra.mxu0 0.0
    %281 = vmatprep.subr.mxu0 0.0
    %282 = vmatpush1.msra.mxu0 0.0
    %283 = vmatprep.subr.mxu0 0.0
    %284 = vmatpush1.msra.mxu0 0.0
    %285 = vmatprep.subr.mxu0 0.0
    %286 = vmatpush1.msra.mxu0 0.0
    %287 = vmatprep.subr.mxu0 0.0
    %288 = vmatpush1.msra.mxu0 0.0
    %289 = vmatprep.subr.mxu0 0.0
    %290 = vmatpush1.msra.mxu0 0.0
    %291 = vmatprep.subr.mxu0 0.0
    %292 = vmatpush1.msra.mxu0 0.0
    %293 = vmatprep.subr.mxu0 0.0
    %294 = vmatpush1.msra.mxu0 0.0
    %295 = vmatprep.subr.mxu0 0.0
    %296 = vmatpush1.msra.mxu0 %v149
    %297 = vmatprep.subr.mxu0 0.0
    %298 = vmatpush1.msra.mxu0 %v148
    %299 = vmatprep.subr.mxu0 0.0
    %300 = vmatpush1.msra.mxu0 %v147
    %301 = vmatprep.subr.mxu0 0.0
    %302 = vmatpush1.msra.mxu0 %v146
    %303 = vmatprep.subr.mxu0 0.0
    %304 = vmatpush1.msra.mxu0 %v145
    %305 = vmatprep.subr.mxu0 0.0
    %306 = vmatpush1.msra.mxu0 %v144
    %307 = vmatprep.subr.mxu0 0.0
    %308 = vmatpush1.msra.mxu0 %v143
    %309 = vmatprep.subr.mxu0 0.0
    %310 = vmatpush1.msra.mxu0 %v142
    %311 = vmatprep.subr.mxu0 0.0
    %312 = vmatpush2.msra.mxu0 0.0
    %313 = vmatprep.subr.mxu0 0.0
    %314 = vmatpush2.msra.mxu0 0.0
    %315 = vmatprep.subr.mxu0 0.0
    %316 = vmatpush2.msra.mxu0 0.0
    %317 = vmatprep.subr.mxu0 0.0
    %318 = vmatpush2.msra.mxu0 0.0
    %319 = vmatprep.subr.mxu0 0.0
    %320 = vmatpush2.msra.mxu0 0.0
    %321 = vmatprep.subr.mxu0 0.0
    %322 = vmatpush2.msra.mxu0 0.0
    %323 = vmatprep.subr.mxu0 0.0
    %324 = vmatpush2.msra.mxu0 0.0
    %325 = vmatprep.subr.mxu0 0.0
    %326 = vmatpush2.msra.mxu0 0.0
    %327 = vmatprep.subr.mxu0 0.0
    %328 = vmatpush2.msra.mxu0 0.0
    %329 = vmatprep.subr.mxu0 0.0
    %330 = vmatpush2.msra.mxu0 0.0
    %331 = vmatprep.subr.mxu0 0.0
    %332 = vmatpush2.msra.mxu0 0.0
    %333 = vmatprep.subr.mxu0 0.0
    %334 = vmatpush2.msra.mxu0 0.0
    %335 = vmatprep.subr.mxu0 0.0
    %336 = vmatpush2.msra.mxu0 0.0
    %337 = vmatprep.subr.mxu0 0.0
    %338 = vmatpush2.msra.mxu0 0.0
    %339 = vmatprep.subr.mxu0 0.0
    %340 = vmatpush2.msra.mxu0 0.0
    %341 = vmatprep.subr.mxu0 0.0
    %342 = vmatpush2.msra.mxu0 0.0
    %343 = vmatprep.mubr.f32.mxu0 0.0
    %344 = vmatmul.mubr.f32.gmra.mxu0 %v277
    %v345 = vpop.f32.mrf.mxu0
    %v346 = vadd.f32 0.0, %v345
    %v347 = vpop.f32.mrf.mxu0
    %348 = vdwg.mxu0
    %v349 = vld [vmem:[#allocation10] sm:$0x3]
    %v350 = vadd.f32 %v346, %v349
    %v351 = vmax.f32 %v350, 0.0
    %v353 = vlaneseq
    %v354 = vshrl.u32 %v353, 7
    %v355 = vsub.s32 0, %v354
    %v356 = vrot.slane %v156, %v355
    %v358 = vmul.f32 %v351, %v356
    %vm359 = vcmask 254976
    %v360 = vsel %vm359, %v358, 0.0
    %361 = vadd.xlane.f32.xlu0 %v360
    %v362 = vpop.xlane.xlu0 %361
    %v364 = vlaneseq
    %v365 = vshrl.u32 %v364, 7
    %v366 = vsub.s32 0, %v365
    %v367 = vrot.slane %v157, %v366
    %v369 = vadd.f32 %v362, %v367
    %v370 = vxor.u32 %v369, 2147483648
    %v371 = vmul.f32 %v370, 1.442695
    %v372 = vpow.pop %v371
    %v373 = vadd.f32 %v372, 1.0
    %v374 = vrcp.pop %v373
    %v375 = vmul.f32 1.0, %v374
    %v376 = vld [vmem:[#allocation12] sm:$0x3]
    %378 = vrot.lane.b32.xlu0 %v376, 32
    %v379 = vpop.permute.xlu0 %378
    %v381 = vadd.f32 %v346, %v379
    %v382 = vtanh.pop %v381
    %v383 = vadd.f32 %v275, %v382
    %385 = vrot.lane.b32.xlu0 %v383, 96
    %v386 = vpop.permute.xlu0 %385
    %388 = vst.msk [vmem:[#allocation3] sm:$0x3] %vm359, %v386
    %390 = vrot.lane.b32.xlu0 %v382, 64
    %v391 = vpop.permute.xlu0 %390
    %v393 = vadd.f32 %v275, %v391
    %s394 = smul.u32 0, 16
    %s395 = scalar_lea.vmem [#allocation2], %s394
    %396 = vst.msk [vmem:[%s395] sm:$0x3] %vm359, %v393
    %s397 = sadd.s32 %s158, 1
    %s398 = sshra.s32 %s397, 7
    %s399 = sand.u32 %s397, 127
    %s400 = sadd.s32 %s398, %s112
    %s401 = smul.u32 %s400, 128
    %s402 = sshra.s32 %s397, 7
    %s403 = sand.u32 %s397, 127
    %s404 = sadd.s32 %s401, %s403
    %s405 = sld [smem:[#allocation6 + %s404]]
    %s406 = smul.u32 %s405, 2
    %s407 = scalar_lea.vmem [#allocation2], %s406
    %v408 = vld [vmem:[%s407] sm:$0x1]
    %409 = vst.msk [vmem:[#allocation4] sm:$0x1] %vm170, %v408
    %s410 = sadd.s32 %s398, %s172
    %s411 = smul.u32 %s410, 128
    %s412 = sadd.s32 %s411, %s403
    %s413 = sld [smem:[#allocation6 + %s412]]
    %s414 = smul.u32 %s413, 2
    %s415 = sadd.s32 %s414, 1
    %s416 = scalar_lea.vmem [#allocation2], %s415
    %v417 = vld [vmem:[%s416] sm:$0x1]
    %418 = vst.msk [vmem:[#allocation4 + $0x1] sm:$0x1] %vm170, %v417
    %v419 = vld [vmem:[#allocation4] sm:$0x3]
    %v420 = vld [vmem:[#allocation3] sm:$0x3]
    %422 = vrot.lane.b32.xlu0 %v420, 32
    %v423 = vpop.permute.xlu0 %422
    %v425 = vsel %vm188, %v419, %v423
    %s426 = scalar_lea.vmem [#allocation8], 2
    %v427 = vld [vmem:[%s426] sm:$0x3]
    %v428 = vsel %vm188, %v427, %v192
    %v430 = vsel %vm195, %v425, 0
    %432 = vmatprep.subr.mxu0 0.0
    %433 = vmatpush1.msra.mxu0 0.0
    %434 = vmatprep.subr.mxu0 0.0
    %435 = vmatpush1.msra.mxu0 0.0
    %436 = vmatprep.subr.mxu0 0.0
    %437 = vmatpush1.msra.mxu0 0.0
    %438 = vmatprep.subr.mxu0 0.0
    %439 = vmatpush1.msra.mxu0 0.0
    %440 = vmatprep.subr.mxu0 0.0
    %441 = vmatpush1.msra.mxu0 0.0
    %442 = vmatprep.subr.mxu0 0.0
    %443 = vmatpush1.msra.mxu0 0.0
    %444 = vmatprep.subr.mxu0 0.0
    %445 = vmatpush1.msra.mxu0 0.0
    %446 = vmatprep.subr.mxu0 0.0
    %447 = vmatpush1.msra.mxu0 0.0
    %448 = vmatprep.subr.mxu0 0.0
    %449 = vmatpush1.msra.mxu0 %v141
    %450 = vmatprep.subr.mxu0 0.0
    %451 = vmatpush1.msra.mxu0 %v140
    %452 = vmatprep.subr.mxu0 0.0
    %453 = vmatpush1.msra.mxu0 %v139
    %454 = vmatprep.subr.mxu0 0.0
    %455 = vmatpush1.msra.mxu0 %v138
    %456 = vmatprep.subr.mxu0 0.0
    %457 = vmatpush1.msra.mxu0 %v137
    %458 = vmatprep.subr.mxu0 0.0
    %459 = vmatpush1.msra.mxu0 %v136
    %460 = vmatprep.subr.mxu0 0.0
    %461 = vmatpush1.msra.mxu0 %v135
    %462 = vmatprep.subr.mxu0 0.0
    %463 = vmatpush1.msra.mxu0 %v134
    %464 = vmatprep.subr.mxu0 0.0
    %465 = vmatpush2.msra.mxu0 0.0
    %466 = vmatprep.subr.mxu0 0.0
    %467 = vmatpush2.msra.mxu0 0.0
    %468 = vmatprep.subr.mxu0 0.0
    %469 = vmatpush2.msra.mxu0 0.0
    %470 = vmatprep.subr.mxu0 0.0
    %471 = vmatpush2.msra.mxu0 0.0
    %472 = vmatprep.subr.mxu0 0.0
    %473 = vmatpush2.msra.mxu0 0.0
    %474 = vmatprep.subr.mxu0 0.0
    %475 = vmatpush2.msra.mxu0 0.0
    %476 = vmatprep.subr.mxu0 0.0
    %477 = vmatpush2.msra.mxu0 0.0
    %478 = vmatprep.subr.mxu0 0.0
    %479 = vmatpush2.msra.mxu0 0.0
    %480 = vmatprep.subr.mxu0 0.0
    %481 = vmatpush2.msra.mxu0 0.0
    %482 = vmatprep.subr.mxu0 0.0
    %483 = vmatpush2.msra.mxu0 0.0
    %484 = vmatprep.subr.mxu0 0.0
    %485 = vmatpush2.msra.mxu0 0.0
    %486 = vmatprep.subr.mxu0 0.0
    %487 = vmatpush2.msra.mxu0 0.0
    %488 = vmatprep.subr.mxu0 0.0
    %489 = vmatpush2.msra.mxu0 0.0
    %490 = vmatprep.subr.mxu0 0.0
    %491 = vmatpush2.msra.mxu0 0.0
    %492 = vmatprep.subr.mxu0 0.0
    %493 = vmatpush2.msra.mxu0 0.0
    %494 = vmatprep.subr.mxu0 0.0
    %495 = vmatpush2.msra.mxu0 0.0
    %496 = vmatprep.mubr.f32.mxu0 0.0
    %497 = vmatmul.mubr.f32.gmra.mxu0 %v430
    %v498 = vpop.f32.mrf.mxu0
    %v499 = vadd.f32 %v428, %v498
    %v500 = vpop.f32.mrf.mxu0
    %501 = vdwg.mxu0
    %v502 = vxor.u32 %v499, 2147483648
    %v503 = vmul.f32 %v502, 1.442695
    %v504 = vpow.pop %v503
    %v505 = vadd.f32 %v504, 1.0
    %v506 = vrcp.pop %v505
    %v507 = vmul.f32 1.0, %v506
    %v508 = vmul.f32 %v425, %v507
    %v510 = vsel %vm195, %v508, 0
    %512 = vmatprep.subr.mxu0 0.0
    %513 = vmatpush1.msra.mxu0 0.0
    %514 = vmatprep.subr.mxu0 0.0
    %515 = vmatpush1.msra.mxu0 0.0
    %516 = vmatprep.subr.mxu0 0.0
    %517 = vmatpush1.msra.mxu0 0.0
    %518 = vmatprep.subr.mxu0 0.0
    %519 = vmatpush1.msra.mxu0 0.0
    %520 = vmatprep.subr.mxu0 0.0
    %521 = vmatpush1.msra.mxu0 0.0
    %522 = vmatprep.subr.mxu0 0.0
    %523 = vmatpush1.msra.mxu0 0.0
    %524 = vmatprep.subr.mxu0 0.0
    %525 = vmatpush1.msra.mxu0 0.0
    %526 = vmatprep.subr.mxu0 0.0
    %527 = vmatpush1.msra.mxu0 0.0
    %528 = vmatprep.subr.mxu0 0.0
    %529 = vmatpush1.msra.mxu0 %v149
    %530 = vmatprep.subr.mxu0 0.0
    %531 = vmatpush1.msra.mxu0 %v148
    %532 = vmatprep.subr.mxu0 0.0
    %533 = vmatpush1.msra.mxu0 %v147
    %534 = vmatprep.subr.mxu0 0.0
    %535 = vmatpush1.msra.mxu0 %v146
    %536 = vmatprep.subr.mxu0 0.0
    %537 = vmatpush1.msra.mxu0 %v145
    %538 = vmatprep.subr.mxu0 0.0
    %539 = vmatpush1.msra.mxu0 %v144
    %540 = vmatprep.subr.mxu0 0.0
    %541 = vmatpush1.msra.mxu0 %v143
    %542 = vmatprep.subr.mxu0 0.0
    %543 = vmatpush1.msra.mxu0 %v142
    %544 = vmatprep.subr.mxu0 0.0
    %545 = vmatpush2.msra.mxu0 0.0
    %546 = vmatprep.subr.mxu0 0.0
    %547 = vmatpush2.msra.mxu0 0.0
    %548 = vmatprep.subr.mxu0 0.0
    %549 = vmatpush2.msra.mxu0 0.0
    %550 = vmatprep.subr.mxu0 0.0
    %551 = vmatpush2.msra.mxu0 0.0
    %552 = vmatprep.subr.mxu0 0.0
    %553 = vmatpush2.msra.mxu0 0.0
    %554 = vmatprep.subr.mxu0 0.0
    %555 = vmatpush2.msra.mxu0 0.0
    %556 = vmatprep.subr.mxu0 0.0
    %557 = vmatpush2.msra.mxu0 0.0
    %558 = vmatprep.subr.mxu0 0.0
    %559 = vmatpush2.msra.mxu0 0.0
    %560 = vmatprep.subr.mxu0 0.0
    %561 = vmatpush2.msra.mxu0 0.0
    %562 = vmatprep.subr.mxu0 0.0
    %563 = vmatpush2.msra.mxu0 0.0
    %564 = vmatprep.subr.mxu0 0.0
    %565 = vmatpush2.msra.mxu0 0.0
    %566 = vmatprep.subr.mxu0 0.0
    %567 = vmatpush2.msra.mxu0 0.0
    %568 = vmatprep.subr.mxu0 0.0
    %569 = vmatpush2.msra.mxu0 0.0
    %570 = vmatprep.subr.mxu0 0.0
    %571 = vmatpush2.msra.mxu0 0.0
    %572 = vmatprep.subr.mxu0 0.0
    %573 = vmatpush2.msra.mxu0 0.0
    %574 = vmatprep.subr.mxu0 0.0
    %575 = vmatpush2.msra.mxu0 0.0
    %576 = vmatprep.mubr.f32.mxu0 0.0
    %577 = vmatmul.mubr.f32.gmra.mxu0 %v510
    %v578 = vpop.f32.mrf.mxu0
    %v579 = vadd.f32 0.0, %v578
    %v580 = vpop.f32.mrf.mxu0
    %581 = vdwg.mxu0
    %s582 = scalar_lea.vmem [#allocation10], 2
    %v583 = vld [vmem:[%s582] sm:$0x3]
    %v584 = vadd.f32 %v579, %v583
    %v585 = vmax.f32 %v584, 0.0
    %v586 = vmul.f32 %v585, %v356
    %v587 = vsel %vm359, %v586, 0.0
    %588 = vadd.xlane.f32.xlu0 %v587
    %v589 = vpop.xlane.xlu0 %588
    %v590 = vadd.f32 %v589, %v367
    %v591 = vxor.u32 %v590, 2147483648
    %v592 = vmul.f32 %v591, 1.442695
    %v593 = vpow.pop %v592
    %v594 = vadd.f32 %v593, 1.0
    %v595 = vrcp.pop %v594
    %v596 = vmul.f32 1.0, %v595
    %s597 = scalar_lea.vmem [#allocation12], 2
    %v598 = vld [vmem:[%s597] sm:$0x3]
    %600 = vrot.lane.b32.xlu0 %v598, 32
    %v601 = vpop.permute.xlu0 %600
    %v603 = vadd.f32 %v579, %v601
    %v604 = vtanh.pop %v603
    %v605 = vadd.f32 %v508, %v604
    %607 = vrot.lane.b32.xlu0 %v605, 96
    %v608 = vpop.permute.xlu0 %607
    %610 = vst.msk [vmem:[#allocation3] sm:$0x3] %vm359, %v608
    %612 = vrot.lane.b32.xlu0 %v604, 64
    %v613 = vpop.permute.xlu0 %612
    %v615 = vadd.f32 %v508, %v613
    %s616 = smul.u32 %s397, 2
    %s617 = scalar_lea.vmem [#allocation2], %s616
    %618 = vst.msk [vmem:[%s617] sm:$0x3] %vm359, %v615
    %s619 = sadd.s32 %s158, 2
    %s620 = sshra.s32 %s619, 7
    %s621 = sand.u32 %s619, 127
    %s622 = sadd.s32 %s620, %s112
    %s623 = smul.u32 %s622, 128
    %s624 = sshra.s32 %s619, 7
    %s625 = sand.u32 %s619, 127
    %s626 = sadd.s32 %s623, %s625
    %s627 = sld [smem:[#allocation6 + %s626]]
    %s628 = smul.u32 %s627, 2
    %s629 = scalar_lea.vmem [#allocation2], %s628
    %v630 = vld [vmem:[%s629] sm:$0x1]
    %631 = vst.msk [vmem:[#allocation4] sm:$0x1] %vm170, %v630
    %s632 = sadd.s32 %s620, %s172
    %s633 = smul.u32 %s632, 128
    %s634 = sadd.s32 %s633, %s625
    %s635 = sld [smem:[#allocation6 + %s634]]
    %s636 = smul.u32 %s635, 2
    %s637 = sadd.s32 %s636, 1
    %s638 = scalar_lea.vmem [#allocation2], %s637
    %v639 = vld [vmem:[%s638] sm:$0x1]
    %640 = vst.msk [vmem:[#allocation4 + $0x1] sm:$0x1] %vm170, %v639
    %v641 = vld [vmem:[#allocation4] sm:$0x3]
    %v642 = vld [vmem:[#allocation3] sm:$0x3]
    %644 = vrot.lane.b32.xlu0 %v642, 32
    %v645 = vpop.permute.xlu0 %644
    %v647 = vsel %vm188, %v641, %v645
    %s648 = scalar_lea.vmem [#allocation8], 4
    %v649 = vld [vmem:[%s648] sm:$0x3]
    %v650 = vsel %vm188, %v649, %v192
    %v652 = vsel %vm195, %v647, 0
    %654 = vmatprep.subr.mxu0 0.0
    %655 = vmatpush1.msra.mxu0 0.0
    %656 = vmatprep.subr.mxu0 0.0
    %657 = vmatpush1.msra.mxu0 0.0
    %658 = vmatprep.subr.mxu0 0.0
    %659 = vmatpush1.msra.mxu0 0.0
    %660 = vmatprep.subr.mxu0 0.0
    %661 = vmatpush1.msra.mxu0 0.0
    %662 = vmatprep.subr.mxu0 0.0
    %663 = vmatpush1.msra.mxu0 0.0
    %664 = vmatprep.subr.mxu0 0.0
    %665 = vmatpush1.msra.mxu0 0.0
    %666 = vmatprep.subr.mxu0 0.0
    %667 = vmatpush1.msra.mxu0 0.0
    %668 = vmatprep.subr.mxu0 0.0
    %669 = vmatpush1.msra.mxu0 0.0
    %670 = vmatprep.subr.mxu0 0.0
    %671 = vmatpush1.msra.mxu0 %v141
    %672 = vmatprep.subr.mxu0 0.0
    %673 = vmatpush1.msra.mxu0 %v140
    %674 = vmatprep.subr.mxu0 0.0
    %675 = vmatpush1.msra.mxu0 %v139
    %676 = vmatprep.subr.mxu0 0.0
    %677 = vmatpush1.msra.mxu0 %v138
    %678 = vmatprep.subr.mxu0 0.0
    %679 = vmatpush1.msra.mxu0 %v137
    %680 = vmatprep.subr.mxu0 0.0
    %681 = vmatpush1.msra.mxu0 %v136
    %682 = vmatprep.subr.mxu0 0.0
    %683 = vmatpush1.msra.mxu0 %v135
    %684 = vmatprep.subr.mxu0 0.0
    %685 = vmatpush1.msra.mxu0 %v134
    %686 = vmatprep.subr.mxu0 0.0
    %687 = vmatpush2.msra.mxu0 0.0
    %688 = vmatprep.subr.mxu0 0.0
    %689 = vmatpush2.msra.mxu0 0.0
    %690 = vmatprep.subr.mxu0 0.0
    %691 = vmatpush2.msra.mxu0 0.0
    %692 = vmatprep.subr.mxu0 0.0
    %693 = vmatpush2.msra.mxu0 0.0
    %694 = vmatprep.subr.mxu0 0.0
    %695 = vmatpush2.msra.mxu0 0.0
    %696 = vmatprep.subr.mxu0 0.0
    %697 = vmatpush2.msra.mxu0 0.0
    %698 = vmatprep.subr.mxu0 0.0
    %699 = vmatpush2.msra.mxu0 0.0
    %700 = vmatprep.subr.mxu0 0.0
    %701 = vmatpush2.msra.mxu0 0.0
    %702 = vmatprep.subr.mxu0 0.0
    %703 = vmatpush2.msra.mxu0 0.0
    %704 = vmatprep.subr.mxu0 0.0
    %705 = vmatpush2.msra.mxu0 0.0
    %706 = vmatprep.subr.mxu0 0.0
    %707 = vmatpush2.msra.mxu0 0.0
    %708 = vmatprep.subr.mxu0 0.0
    %709 = vmatpush2.msra.mxu0 0.0
    %710 = vmatprep.subr.mxu0 0.0
    %711 = vmatpush2.msra.mxu0 0.0
    %712 = vmatprep.subr.mxu0 0.0
    %713 = vmatpush2.msra.mxu0 0.0
    %714 = vmatprep.subr.mxu0 0.0
    %715 = vmatpush2.msra.mxu0 0.0
    %716 = vmatprep.subr.mxu0 0.0
    %717 = vmatpush2.msra.mxu0 0.0
    %718 = vmatprep.mubr.f32.mxu0 0.0
    %719 = vmatmul.mubr.f32.gmra.mxu0 %v652
    %v720 = vpop.f32.mrf.mxu0
    %v721 = vadd.f32 %v650, %v720
    %v722 = vpop.f32.mrf.mxu0
    %723 = vdwg.mxu0
    %v724 = vxor.u32 %v721, 2147483648
    %v725 = vmul.f32 %v724, 1.442695
    %v726 = vpow.pop %v725
    %v727 = vadd.f32 %v726, 1.0
    %v728 = vrcp.pop %v727
    %v729 = vmul.f32 1.0, %v728
    %v730 = vmul.f32 %v647, %v729
    %v732 = vsel %vm195, %v730, 0
    %734 = vmatprep.subr.mxu0 0.0
    %735 = vmatpush1.msra.mxu0 0.0
    %736 = vmatprep.subr.mxu0 0.0
    %737 = vmatpush1.msra.mxu0 0.0
    %738 = vmatprep.subr.mxu0 0.0
    %739 = vmatpush1.msra.mxu0 0.0
    %740 = vmatprep.subr.mxu0 0.0
    %741 = vmatpush1.msra.mxu0 0.0
    %742 = vmatprep.subr.mxu0 0.0
    %743 = vmatpush1.msra.mxu0 0.0
    %744 = vmatprep.subr.mxu0 0.0
    %745 = vmatpush1.msra.mxu0 0.0
    %746 = vmatprep.subr.mxu0 0.0
    %747 = vmatpush1.msra.mxu0 0.0
    %748 = vmatprep.subr.mxu0 0.0
    %749 = vmatpush1.msra.mxu0 0.0
    %750 = vmatprep.subr.mxu0 0.0
    %751 = vmatpush1.msra.mxu0 %v149
    %752 = vmatprep.subr.mxu0 0.0
    %753 = vmatpush1.msra.mxu0 %v148
    %754 = vmatprep.subr.mxu0 0.0
    %755 = vmatpush1.msra.mxu0 %v147
    %756 = vmatprep.subr.mxu0 0.0
    %757 = vmatpush1.msra.mxu0 %v146
    %758 = vmatprep.subr.mxu0 0.0
    %759 = vmatpush1.msra.mxu0 %v145
    %760 = vmatprep.subr.mxu0 0.0
    %761 = vmatpush1.msra.mxu0 %v144
    %762 = vmatprep.subr.mxu0 0.0
    %763 = vmatpush1.msra.mxu0 %v143
    %764 = vmatprep.subr.mxu0 0.0
    %765 = vmatpush1.msra.mxu0 %v142
    %766 = vmatprep.subr.mxu0 0.0
    %767 = vmatpush2.msra.mxu0 0.0
    %768 = vmatprep.subr.mxu0 0.0
    %769 = vmatpush2.msra.mxu0 0.0
    %770 = vmatprep.subr.mxu0 0.0
    %771 = vmatpush2.msra.mxu0 0.0
    %772 = vmatprep.subr.mxu0 0.0
    %773 = vmatpush2.msra.mxu0 0.0
    %774 = vmatprep.subr.mxu0 0.0
    %775 = vmatpush2.msra.mxu0 0.0
    %776 = vmatprep.subr.mxu0 0.0
    %777 = vmatpush2.msra.mxu0 0.0
    %778 = vmatprep.subr.mxu0 0.0
    %779 = vmatpush2.msra.mxu0 0.0
    %780 = vmatprep.subr.mxu0 0.0
    %781 = vmatpush2.msra.mxu0 0.0
    %782 = vmatprep.subr.mxu0 0.0
    %783 = vmatpush2.msra.mxu0 0.0
    %784 = vmatprep.subr.mxu0 0.0
    %785 = vmatpush2.msra.mxu0 0.0
    %786 = vmatprep.subr.mxu0 0.0
    %787 = vmatpush2.msra.mxu0 0.0
    %788 = vmatprep.subr.mxu0 0.0
    %789 = vmatpush2.msra.mxu0 0.0
    %790 = vmatprep.subr.mxu0 0.0
    %791 = vmatpush2.msra.mxu0 0.0
    %792 = vmatprep.subr.mxu0 0.0
    %793 = vmatpush2.msra.mxu0 0.0
    %794 = vmatprep.subr.mxu0 0.0
    %795 = vmatpush2.msra.mxu0 0.0
    %796 = vmatprep.subr.mxu0 0.0
    %797 = vmatpush2.msra.mxu0 0.0
    %798 = vmatprep.mubr.f32.mxu0 0.0
    %799 = vmatmul.mubr.f32.gmra.mxu0 %v732
    %v800 = vpop.f32.mrf.mxu0
    %v801 = vadd.f32 0.0, %v800
    %v802 = vpop.f32.mrf.mxu0
    %803 = vdwg.mxu0
    %s804 = scalar_lea.vmem [#allocation10], 4
    %v805 = vld [vmem:[%s804] sm:$0x3]
    %v806 = vadd.f32 %v801, %v805
    %v807 = vmax.f32 %v806, 0.0
    %v808 = vmul.f32 %v807, %v356
    %v809 = vsel %vm359, %v808, 0.0
    %810 = vadd.xlane.f32.xlu0 %v809
    %v811 = vpop.xlane.xlu0 %810
    %v812 = vadd.f32 %v811, %v367
    %v813 = vxor.u32 %v812, 2147483648
    %v814 = vmul.f32 %v813, 1.442695
    %v815 = vpow.pop %v814
    %v816 = vadd.f32 %v815, 1.0
    %v817 = vrcp.pop %v816
    %v818 = vmul.f32 1.0, %v817
    %s819 = scalar_lea.vmem [#allocation12], 4
    %v820 = vld [vmem:[%s819] sm:$0x3]
    %822 = vrot.lane.b32.xlu0 %v820, 32
    %v823 = vpop.permute.xlu0 %822
    %v825 = vadd.f32 %v801, %v823
    %v826 = vtanh.pop %v825
    %v827 = vadd.f32 %v730, %v826
    %829 = vrot.lane.b32.xlu0 %v827, 96
    %v830 = vpop.permute.xlu0 %829
    %832 = vst.msk [vmem:[#allocation3] sm:$0x3] %vm359, %v830
    %834 = vrot.lane.b32.xlu0 %v826, 64
    %v835 = vpop.permute.xlu0 %834
    %v837 = vadd.f32 %v730, %v835
    %s838 = smul.u32 %s619, 2
    %s839 = scalar_lea.vmem [#allocation2], %s838
    %840 = vst.msk [vmem:[%s839] sm:$0x3] %vm359, %v837
    %s841 = sadd.s32 %s158, 3
    %s842 = sshra.s32 %s841, 7
    %s843 = sand.u32 %s841, 127
    %s844 = sadd.s32 %s842, %s112
    %s845 = smul.u32 %s844, 128
    %s846 = sshra.s32 %s841, 7
    %s847 = sand.u32 %s841, 127
    %s848 = sadd.s32 %s845, %s847
    %s849 = sld [smem:[#allocation6 + %s848]]
    %s850 = smul.u32 %s849, 2
    %s851 = scalar_lea.vmem [#allocation2], %s850
    %v852 = vld [vmem:[%s851] sm:$0x1]
    %853 = vst.msk [vmem:[#allocation4] sm:$0x1] %vm170, %v852
    %s854 = sadd.s32 %s842, %s172
    %s855 = smul.u32 %s854, 128
    %s856 = sadd.s32 %s855, %s847
    %s857 = sld [smem:[#allocation6 + %s856]]
    %s858 = smul.u32 %s857, 2
    %s859 = sadd.s32 %s858, 1
    %s860 = scalar_lea.vmem [#allocation2], %s859
    %v861 = vld [vmem:[%s860] sm:$0x1]
    %862 = vst.msk [vmem:[#allocation4 + $0x1] sm:$0x1] %vm170, %v861
    %v863 = vld [vmem:[#allocation4] sm:$0x3]
    %v864 = vld [vmem:[#allocation3] sm:$0x3]
    %866 = vrot.lane.b32.xlu0 %v864, 32
    %v867 = vpop.permute.xlu0 %866
    %v869 = vsel %vm188, %v863, %v867
    %s870 = scalar_lea.vmem [#allocation8], 6
    %v871 = vld [vmem:[%s870] sm:$0x3]
    %v872 = vsel %vm188, %v871, %v192
    %v874 = vsel %vm195, %v869, 0
    %876 = vmatprep.subr.mxu0 0.0
    %877 = vmatpush1.msra.mxu0 0.0
    %878 = vmatprep.subr.mxu0 0.0
    %879 = vmatpush1.msra.mxu0 0.0
    %880 = vmatprep.subr.mxu0 0.0
    %881 = vmatpush1.msra.mxu0 0.0
    %882 = vmatprep.subr.mxu0 0.0
    %883 = vmatpush1.msra.mxu0 0.0
    %884 = vmatprep.subr.mxu0 0.0
    %885 = vmatpush1.msra.mxu0 0.0
    %886 = vmatprep.subr.mxu0 0.0
    %887 = vmatpush1.msra.mxu0 0.0
    %888 = vmatprep.subr.mxu0 0.0
    %889 = vmatpush1.msra.mxu0 0.0
    %890 = vmatprep.subr.mxu0 0.0
    %891 = vmatpush1.msra.mxu0 0.0
    %892 = vmatprep.subr.mxu0 0.0
    %893 = vmatpush1.msra.mxu0 %v141
    %894 = vmatprep.subr.mxu0 0.0
    %895 = vmatpush1.msra.mxu0 %v140
    %896 = vmatprep.subr.mxu0 0.0
    %897 = vmatpush1.msra.mxu0 %v139
    %898 = vmatprep.subr.mxu0 0.0
    %899 = vmatpush1.msra.mxu0 %v138
    %900 = vmatprep.subr.mxu0 0.0
    %901 = vmatpush1.msra.mxu0 %v137
    %902 = vmatprep.subr.mxu0 0.0
    %903 = vmatpush1.msra.mxu0 %v136
    %904 = vmatprep.subr.mxu0 0.0
    %905 = vmatpush1.msra.mxu0 %v135
    %906 = vmatprep.subr.mxu0 0.0
    %907 = vmatpush1.msra.mxu0 %v134
    %908 = vmatprep.subr.mxu0 0.0
    %909 = vmatpush2.msra.mxu0 0.0
    %910 = vmatprep.subr.mxu0 0.0
    %911 = vmatpush2.msra.mxu0 0.0
    %912 = vmatprep.subr.mxu0 0.0
    %913 = vmatpush2.msra.mxu0 0.0
    %914 = vmatprep.subr.mxu0 0.0
    %915 = vmatpush2.msra.mxu0 0.0
    %916 = vmatprep.subr.mxu0 0.0
    %917 = vmatpush2.msra.mxu0 0.0
    %918 = vmatprep.subr.mxu0 0.0
    %919 = vmatpush2.msra.mxu0 0.0
    %920 = vmatprep.subr.mxu0 0.0
    %921 = vmatpush2.msra.mxu0 0.0
    %922 = vmatprep.subr.mxu0 0.0
    %923 = vmatpush2.msra.mxu0 0.0
    %924 = vmatprep.subr.mxu0 0.0
    %925 = vmatpush2.msra.mxu0 0.0
    %926 = vmatprep.subr.mxu0 0.0
    %927 = vmatpush2.msra.mxu0 0.0
    %928 = vmatprep.subr.mxu0 0.0
    %929 = vmatpush2.msra.mxu0 0.0
    %930 = vmatprep.subr.mxu0 0.0
    %931 = vmatpush2.msra.mxu0 0.0
    %932 = vmatprep.subr.mxu0 0.0
    %933 = vmatpush2.msra.mxu0 0.0
    %934 = vmatprep.subr.mxu0 0.0
    %935 = vmatpush2.msra.mxu0 0.0
    %936 = vmatprep.subr.mxu0 0.0
    %937 = vmatpush2.msra.mxu0 0.0
    %938 = vmatprep.subr.mxu0 0.0
    %939 = vmatpush2.msra.mxu0 0.0
    %940 = vmatprep.mubr.f32.mxu0 0.0
    %941 = vmatmul.mubr.f32.gmra.mxu0 %v874
    %v942 = vpop.f32.mrf.mxu0
    %v943 = vadd.f32 %v872, %v942
    %v944 = vpop.f32.mrf.mxu0
    %945 = vdwg.mxu0
    %v946 = vxor.u32 %v943, 2147483648
    %v947 = vmul.f32 %v946, 1.442695
    %v948 = vpow.pop %v947
    %v949 = vadd.f32 %v948, 1.0
    %v950 = vrcp.pop %v949
    %v951 = vmul.f32 1.0, %v950
    %v952 = vmul.f32 %v869, %v951
    %v954 = vsel %vm195, %v952, 0
    %956 = vmatprep.subr.mxu0 0.0
    %957 = vmatpush1.msra.mxu0 0.0
    %958 = vmatprep.subr.mxu0 0.0
    %959 = vmatpush1.msra.mxu0 0.0
    %960 = vmatprep.subr.mxu0 0.0
    %961 = vmatpush1.msra.mxu0 0.0
    %962 = vmatprep.subr.mxu0 0.0
    %963 = vmatpush1.msra.mxu0 0.0
    %964 = vmatprep.subr.mxu0 0.0
    %965 = vmatpush1.msra.mxu0 0.0
    %966 = vmatprep.subr.mxu0 0.0
    %967 = vmatpush1.msra.mxu0 0.0
    %968 = vmatprep.subr.mxu0 0.0
    %969 = vmatpush1.msra.mxu0 0.0
    %970 = vmatprep.subr.mxu0 0.0
    %971 = vmatpush1.msra.mxu0 0.0
    %972 = vmatprep.subr.mxu0 0.0
    %973 = vmatpush1.msra.mxu0 %v149
    %974 = vmatprep.subr.mxu0 0.0
    %975 = vmatpush1.msra.mxu0 %v148
    %976 = vmatprep.subr.mxu0 0.0
    %977 = vmatpush1.msra.mxu0 %v147
    %978 = vmatprep.subr.mxu0 0.0
    %979 = vmatpush1.msra.mxu0 %v146
    %980 = vmatprep.subr.mxu0 0.0
    %981 = vmatpush1.msra.mxu0 %v145
    %982 = vmatprep.subr.mxu0 0.0
    %983 = vmatpush1.msra.mxu0 %v144
    %984 = vmatprep.subr.mxu0 0.0
    %985 = vmatpush1.msra.mxu0 %v143
    %986 = vmatprep.subr.mxu0 0.0
    %987 = vmatpush1.msra.mxu0 %v142
    %988 = vmatprep.subr.mxu0 0.0
    %989 = vmatpush2.msra.mxu0 0.0
    %990 = vmatprep.subr.mxu0 0.0
    %991 = vmatpush2.msra.mxu0 0.0
    %992 = vmatprep.subr.mxu0 0.0
    %993 = vmatpush2.msra.mxu0 0.0
    %994 = vmatprep.subr.mxu0 0.0
    %995 = vmatpush2.msra.mxu0 0.0
    %996 = vmatprep.subr.mxu0 0.0
    %997 = vmatpush2.msra.mxu0 0.0
    %998 = vmatprep.subr.mxu0 0.0
    %999 = vmatpush2.msra.mxu0 0.0
    %1000 = vmatprep.subr.mxu0 0.0
    %1001 = vmatpush2.msra.mxu0 0.0
    %1002 = vmatprep.subr.mxu0 0.0
    %1003 = vmatpush2.msra.mxu0 0.0
    %1004 = vmatprep.subr.mxu0 0.0
    %1005 = vmatpush2.msra.mxu0 0.0
    %1006 = vmatprep.subr.mxu0 0.0
    %1007 = vmatpush2.msra.mxu0 0.0
    %1008 = vmatprep.subr.mxu0 0.0
    %1009 = vmatpush2.msra.mxu0 0.0
    %1010 = vmatprep.subr.mxu0 0.0
    %1011 = vmatpush2.msra.mxu0 0.0
    %1012 = vmatprep.subr.mxu0 0.0
    %1013 = vmatpush2.msra.mxu0 0.0
    %1014 = vmatprep.subr.mxu0 0.0
    %1015 = vmatpush2.msra.mxu0 0.0
    %1016 = vmatprep.subr.mxu0 0.0
    %1017 = vmatpush2.msra.mxu0 0.0
    %1018 = vmatprep.subr.mxu0 0.0
    %1019 = vmatpush2.msra.mxu0 0.0
    %1020 = vmatprep.mubr.f32.mxu0 0.0
    %1021 = vmatmul.mubr.f32.gmra.mxu0 %v954
    %v1022 = vpop.f32.mrf.mxu0
    %v1023 = vadd.f32 0.0, %v1022
    %v1024 = vpop.f32.mrf.mxu0
    %1025 = vdwg.mxu0
    %s1026 = scalar_lea.vmem [#allocation10], 6
    %v1027 = vld [vmem:[%s1026] sm:$0x3]
    %v1028 = vadd.f32 %v1023, %v1027
    %v1029 = vmax.f32 %v1028, 0.0
    %v1030 = vmul.f32 %v1029, %v356
    %v1031 = vsel %vm359, %v1030, 0.0
    %1032 = vadd.xlane.f32.xlu0 %v1031
    %v1033 = vpop.xlane.xlu0 %1032
    %v1034 = vadd.f32 %v1033, %v367
    %v1035 = vxor.u32 %v1034, 2147483648
    %v1036 = vmul.f32 %v1035, 1.442695
    %v1037 = vpow.pop %v1036
    %v1038 = vadd.f32 %v1037, 1.0
    %v1039 = vrcp.pop %v1038
    %v1040 = vmul.f32 1.0, %v1039
    %s1041 = scalar_lea.vmem [#allocation12], 6
    %v1042 = vld [vmem:[%s1041] sm:$0x3]
    %1044 = vrot.lane.b32.xlu0 %v1042, 32
    %v1045 = vpop.permute.xlu0 %1044
    %v1047 = vadd.f32 %v1023, %v1045
    %v1048 = vtanh.pop %v1047
    %v1049 = vadd.f32 %v952, %v1048
    %1051 = vrot.lane.b32.xlu0 %v1049, 96
    %v1052 = vpop.permute.xlu0 %1051
    %1054 = vst.msk [vmem:[#allocation3] sm:$0x3] %vm359, %v1052
    %1056 = vrot.lane.b32.xlu0 %v1048, 64
    %v1057 = vpop.permute.xlu0 %1056
    %v1059 = vadd.f32 %v952, %v1057
    %s1060 = smul.u32 %s841, 2
    %s1061 = scalar_lea.vmem [#allocation2], %s1060
    %1062 = vst.msk [vmem:[%s1061] sm:$0x3] %vm359, %v1059
    %s1063 = sadd.s32 %s158, 4
    %s1064 = sshra.s32 %s1063, 7
    %s1065 = sand.u32 %s1063, 127
    %s1066 = sadd.s32 %s1064, %s112
    %s1067 = smul.u32 %s1066, 128
    %s1068 = sshra.s32 %s1063, 7
    %s1069 = sand.u32 %s1063, 127
    %s1070 = sadd.s32 %s1067, %s1069
    %s1071 = sld [smem:[#allocation6 + %s1070]]
    %s1072 = smul.u32 %s1071, 2
    %s1073 = scalar_lea.vmem [#allocation2], %s1072
    %v1074 = vld [vmem:[%s1073] sm:$0x1]
    %1075 = vst.msk [vmem:[#allocation4] sm:$0x1] %vm170, %v1074
    %s1076 = sadd.s32 %s1064, %s172
    %s1077 = smul.u32 %s1076, 128
    %s1078 = sadd.s32 %s1077, %s1069
    %s1079 = sld [smem:[#allocation6 + %s1078]]
    %s1080 = smul.u32 %s1079, 2
    %s1081 = sadd.s32 %s1080, 1
    %s1082 = scalar_lea.vmem [#allocation2], %s1081
    %v1083 = vld [vmem:[%s1082] sm:$0x1]
    %1084 = vst.msk [vmem:[#allocation4 + $0x1] sm:$0x1] %vm170, %v1083
    %v1085 = vld [vmem:[#allocation4] sm:$0x3]
    %v1086 = vld [vmem:[#allocation3] sm:$0x3]
    %1088 = vrot.lane.b32.xlu0 %v1086, 32
    %v1089 = vpop.permute.xlu0 %1088
    %v1091 = vsel %vm188, %v1085, %v1089
    %s1092 = scalar_lea.vmem [#allocation8], 8
    %v1093 = vld [vmem:[%s1092] sm:$0x3]
    %v1094 = vsel %vm188, %v1093, %v192
    %v1096 = vsel %vm195, %v1091, 0
    %1098 = vmatprep.subr.mxu0 0.0
    %1099 = vmatpush1.msra.mxu0 0.0
    %1100 = vmatprep.subr.mxu0 0.0
    %1101 = vmatpush1.msra.mxu0 0.0
    %1102 = vmatprep.subr.mxu0 0.0
    %1103 = vmatpush1.msra.mxu0 0.0
    %1104 = vmatprep.subr.mxu0 0.0
    %1105 = vmatpush1.msra.mxu0 0.0
    %1106 = vmatprep.subr.mxu0 0.0
    %1107 = vmatpush1.msra.mxu0 0.0
    %1108 = vmatprep.subr.mxu0 0.0
    %1109 = vmatpush1.msra.mxu0 0.0
    %1110 = vmatprep.subr.mxu0 0.0
    %1111 = vmatpush1.msra.mxu0 0.0
    %1112 = vmatprep.subr.mxu0 0.0
    %1113 = vmatpush1.msra.mxu0 0.0
    %1114 = vmatprep.subr.mxu0 0.0
    %1115 = vmatpush1.msra.mxu0 %v141
    %1116 = vmatprep.subr.mxu0 0.0
    %1117 = vmatpush1.msra.mxu0 %v140
    %1118 = vmatprep.subr.mxu0 0.0
    %1119 = vmatpush1.msra.mxu0 %v139
    %1120 = vmatprep.subr.mxu0 0.0
    %1121 = vmatpush1.msra.mxu0 %v138
    %1122 = vmatprep.subr.mxu0 0.0
    %1123 = vmatpush1.msra.mxu0 %v137
    %1124 = vmatprep.subr.mxu0 0.0
    %1125 = vmatpush1.msra.mxu0 %v136
    %1126 = vmatprep.subr.mxu0 0.0
    %1127 = vmatpush1.msra.mxu0 %v135
    %1128 = vmatprep.subr.mxu0 0.0
    %1129 = vmatpush1.msra.mxu0 %v134
    %1130 = vmatprep.subr.mxu0 0.0
    %1131 = vmatpush2.msra.mxu0 0.0
    %1132 = vmatprep.subr.mxu0 0.0
    %1133 = vmatpush2.msra.mxu0 0.0
    %1134 = vmatprep.subr.mxu0 0.0
    %1135 = vmatpush2.msra.mxu0 0.0
    %1136 = vmatprep.subr.mxu0 0.0
    %1137 = vmatpush2.msra.mxu0 0.0
    %1138 = vmatprep.subr.mxu0 0.0
    %1139 = vmatpush2.msra.mxu0 0.0
    %1140 = vmatprep.subr.mxu0 0.0
    %1141 = vmatpush2.msra.mxu0 0.0
    %1142 = vmatprep.subr.mxu0 0.0
    %1143 = vmatpush2.msra.mxu0 0.0
    %1144 = vmatprep.subr.mxu0 0.0
    %1145 = vmatpush2.msra.mxu0 0.0
    %1146 = vmatprep.subr.mxu0 0.0
    %1147 = vmatpush2.msra.mxu0 0.0
    %1148 = vmatprep.subr.mxu0 0.0
    %1149 = vmatpush2.msra.mxu0 0.0
    %1150 = vmatprep.subr.mxu0 0.0
    %1151 = vmatpush2.msra.mxu0 0.0
    %1152 = vmatprep.subr.mxu0 0.0
    %1153 = vmatpush2.msra.mxu0 0.0
    %1154 = vmatprep.subr.mxu0 0.0
    %1155 = vmatpush2.msra.mxu0 0.0
    %1156 = vmatprep.subr.mxu0 0.0
    %1157 = vmatpush2.msra.mxu0 0.0
    %1158 = vmatprep.subr.mxu0 0.0
    %1159 = vmatpush2.msra.mxu0 0.0
    %1160 = vmatprep.subr.mxu0 0.0
    %1161 = vmatpush2.msra.mxu0 0.0
    %1162 = vmatprep.mubr.f32.mxu0 0.0
    %1163 = vmatmul.mubr.f32.gmra.mxu0 %v1096
    %v1164 = vpop.f32.mrf.mxu0
    %v1165 = vadd.f32 %v1094, %v1164
    %v1166 = vpop.f32.mrf.mxu0
    %1167 = vdwg.mxu0
    %v1168 = vxor.u32 %v1165, 2147483648
    %v1169 = vmul.f32 %v1168, 1.442695
    %v1170 = vpow.pop %v1169
    %v1171 = vadd.f32 %v1170, 1.0
    %v1172 = vrcp.pop %v1171
    %v1173 = vmul.f32 1.0, %v1172
    %v1174 = vmul.f32 %v1091, %v1173
    %v1176 = vsel %vm195, %v1174, 0
    %1178 = vmatprep.subr.mxu0 0.0
    %1179 = vmatpush1.msra.mxu0 0.0
    %1180 = vmatprep.subr.mxu0 0.0
    %1181 = vmatpush1.msra.mxu0 0.0
    %1182 = vmatprep.subr.mxu0 0.0
    %1183 = vmatpush1.msra.mxu0 0.0
    %1184 = vmatprep.subr.mxu0 0.0
    %1185 = vmatpush1.msra.mxu0 0.0
    %1186 = vmatprep.subr.mxu0 0.0
    %1187 = vmatpush1.msra.mxu0 0.0
    %1188 = vmatprep.subr.mxu0 0.0
    %1189 = vmatpush1.msra.mxu0 0.0
    %1190 = vmatprep.subr.mxu0 0.0
    %1191 = vmatpush1.msra.mxu0 0.0
    %1192 = vmatprep.subr.mxu0 0.0
    %1193 = vmatpush1.msra.mxu0 0.0
    %1194 = vmatprep.subr.mxu0 0.0
    %1195 = vmatpush1.msra.mxu0 %v149
    %1196 = vmatprep.subr.mxu0 0.0
    %1197 = vmatpush1.msra.mxu0 %v148
    %1198 = vmatprep.subr.mxu0 0.0
    %1199 = vmatpush1.msra.mxu0 %v147
    %1200 = vmatprep.subr.mxu0 0.0
    %1201 = vmatpush1.msra.mxu0 %v146
    %1202 = vmatprep.subr.mxu0 0.0
    %1203 = vmatpush1.msra.mxu0 %v145
    %1204 = vmatprep.subr.mxu0 0.0
    %1205 = vmatpush1.msra.mxu0 %v144
    %1206 = vmatprep.subr.mxu0 0.0
    %1207 = vmatpush1.msra.mxu0 %v143
    %1208 = vmatprep.subr.mxu0 0.0
    %1209 = vmatpush1.msra.mxu0 %v142
    %1210 = vmatprep.subr.mxu0 0.0
    %1211 = vmatpush2.msra.mxu0 0.0
    %1212 = vmatprep.subr.mxu0 0.0
    %1213 = vmatpush2.msra.mxu0 0.0
    %1214 = vmatprep.subr.mxu0 0.0
    %1215 = vmatpush2.msra.mxu0 0.0
    %1216 = vmatprep.subr.mxu0 0.0
    %1217 = vmatpush2.msra.mxu0 0.0
    %1218 = vmatprep.subr.mxu0 0.0
    %1219 = vmatpush2.msra.mxu0 0.0
    %1220 = vmatprep.subr.mxu0 0.0
    %1221 = vmatpush2.msra.mxu0 0.0
    %1222 = vmatprep.subr.mxu0 0.0
    %1223 = vmatpush2.msra.mxu0 0.0
    %1224 = vmatprep.subr.mxu0 0.0
    %1225 = vmatpush2.msra.mxu0 0.0
    %1226 = vmatprep.subr.mxu0 0.0
    %1227 = vmatpush2.msra.mxu0 0.0
    %1228 = vmatprep.subr.mxu0 0.0
    %1229 = vmatpush2.msra.mxu0 0.0
    %1230 = vmatprep.subr.mxu0 0.0
    %1231 = vmatpush2.msra.mxu0 0.0
    %1232 = vmatprep.subr.mxu0 0.0
    %1233 = vmatpush2.msra.mxu0 0.0
    %1234 = vmatprep.subr.mxu0 0.0
    %1235 = vmatpush2.msra.mxu0 0.0
    %1236 = vmatprep.subr.mxu0 0.0
    %1237 = vmatpush2.msra.mxu0 0.0
    %1238 = vmatprep.subr.mxu0 0.0
    %1239 = vmatpush2.msra.mxu0 0.0
    %1240 = vmatprep.subr.mxu0 0.0
    %1241 = vmatpush2.msra.mxu0 0.0
    %1242 = vmatprep.mubr.f32.mxu0 0.0
    %1243 = vmatmul.mubr.f32.gmra.mxu0 %v1176
    %v1244 = vpop.f32.mrf.mxu0
    %v1245 = vadd.f32 0.0, %v1244
    %v1246 = vpop.f32.mrf.mxu0
    %1247 = vdwg.mxu0
    %s1248 = scalar_lea.vmem [#allocation10], 8
    %v1249 = vld [vmem:[%s1248] sm:$0x3]
    %v1250 = vadd.f32 %v1245, %v1249
    %v1251 = vmax.f32 %v1250, 0.0
    %v1252 = vmul.f32 %v1251, %v356
    %v1253 = vsel %vm359, %v1252, 0.0
    %1254 = vadd.xlane.f32.xlu0 %v1253
    %v1255 = vpop.xlane.xlu0 %1254
    %v1256 = vadd.f32 %v1255, %v367
    %v1257 = vxor.u32 %v1256, 2147483648
    %v1258 = vmul.f32 %v1257, 1.442695
    %v1259 = vpow.pop %v1258
    %v1260 = vadd.f32 %v1259, 1.0
    %v1261 = vrcp.pop %v1260
    %v1262 = vmul.f32 1.0, %v1261
    %s1263 = scalar_lea.vmem [#allocation12], 8
    %v1264 = vld [vmem:[%s1263] sm:$0x3]
    %1266 = vrot.lane.b32.xlu0 %v1264, 32
    %v1267 = vpop.permute.xlu0 %1266
    %v1269 = vadd.f32 %v1245, %v1267
    %v1270 = vtanh.pop %v1269
    %v1271 = vadd.f32 %v1174, %v1270
    %1273 = vrot.lane.b32.xlu0 %v1271, 96
    %v1274 = vpop.permute.xlu0 %1273
    %1276 = vst.msk [vmem:[#allocation3] sm:$0x3] %vm359, %v1274
    %1278 = vrot.lane.b32.xlu0 %v1270, 64
    %v1279 = vpop.permute.xlu0 %1278
    %v1281 = vadd.f32 %v1174, %v1279
    %s1282 = smul.u32 %s1063, 2
    %s1283 = scalar_lea.vmem [#allocation2], %s1282
    %1284 = vst.msk [vmem:[%s1283] sm:$0x3] %vm359, %v1281
    %s1285 = sadd.s32 %s158, 5
    %s1286 = sshra.s32 %s1285, 7
    %s1287 = sand.u32 %s1285, 127
    %s1288 = sadd.s32 %s1286, %s112
    %s1289 = smul.u32 %s1288, 128
    %s1290 = sshra.s32 %s1285, 7
    %s1291 = sand.u32 %s1285, 127
    %s1292 = sadd.s32 %s1289, %s1291
    %s1293 = sld [smem:[#allocation6 + %s1292]]
    %s1294 = smul.u32 %s1293, 2
    %s1295 = scalar_lea.vmem [#allocation2], %s1294
    %v1296 = vld [vmem:[%s1295] sm:$0x1]
    %1297 = vst.msk [vmem:[#allocation4] sm:$0x1] %vm170, %v1296
    %s1298 = sadd.s32 %s1286, %s172
    %s1299 = smul.u32 %s1298, 128
    %s1300 = sadd.s32 %s1299, %s1291
    %s1301 = sld [smem:[#allocation6 + %s1300]]
    %s1302 = smul.u32 %s1301, 2
    %s1303 = sadd.s32 %s1302, 1
    %s1304 = scalar_lea.vmem [#allocation2], %s1303
    %v1305 = vld [vmem:[%s1304] sm:$0x1]
    %1306 = vst.msk [vmem:[#allocation4 + $0x1] sm:$0x1] %vm170, %v1305
    %v1307 = vld [vmem:[#allocation4] sm:$0x3]
    %v1308 = vld [vmem:[#allocation3] sm:$0x3]
    %1310 = vrot.lane.b32.xlu0 %v1308, 32
    %v1311 = vpop.permute.xlu0 %1310
    %v1313 = vsel %vm188, %v1307, %v1311
    %s1314 = scalar_lea.vmem [#allocation8], 10
    %v1315 = vld [vmem:[%s1314] sm:$0x3]
    %v1316 = vsel %vm188, %v1315, %v192
    %v1318 = vsel %vm195, %v1313, 0
    %1320 = vmatprep.subr.mxu0 0.0
    %1321 = vmatpush1.msra.mxu0 0.0
    %1322 = vmatprep.subr.mxu0 0.0
    %1323 = vmatpush1.msra.mxu0 0.0
    %1324 = vmatprep.subr.mxu0 0.0
    %1325 = vmatpush1.msra.mxu0 0.0
    %1326 = vmatprep.subr.mxu0 0.0
    %1327 = vmatpush1.msra.mxu0 0.0
    %1328 = vmatprep.subr.mxu0 0.0
    %1329 = vmatpush1.msra.mxu0 0.0
    %1330 = vmatprep.subr.mxu0 0.0
    %1331 = vmatpush1.msra.mxu0 0.0
    %1332 = vmatprep.subr.mxu0 0.0
    %1333 = vmatpush1.msra.mxu0 0.0
    %1334 = vmatprep.subr.mxu0 0.0
    %1335 = vmatpush1.msra.mxu0 0.0
    %1336 = vmatprep.subr.mxu0 0.0
    %1337 = vmatpush1.msra.mxu0 %v141
    %1338 = vmatprep.subr.mxu0 0.0
    %1339 = vmatpush1.msra.mxu0 %v140
    %1340 = vmatprep.subr.mxu0 0.0
    %1341 = vmatpush1.msra.mxu0 %v139
    %1342 = vmatprep.subr.mxu0 0.0
    %1343 = vmatpush1.msra.mxu0 %v138
    %1344 = vmatprep.subr.mxu0 0.0
    %1345 = vmatpush1.msra.mxu0 %v137
    %1346 = vmatprep.subr.mxu0 0.0
    %1347 = vmatpush1.msra.mxu0 %v136
    %1348 = vmatprep.subr.mxu0 0.0
    %1349 = vmatpush1.msra.mxu0 %v135
    %1350 = vmatprep.subr.mxu0 0.0
    %1351 = vmatpush1.msra.mxu0 %v134
    %1352 = vmatprep.subr.mxu0 0.0
    %1353 = vmatpush2.msra.mxu0 0.0
    %1354 = vmatprep.subr.mxu0 0.0
    %1355 = vmatpush2.msra.mxu0 0.0
    %1356 = vmatprep.subr.mxu0 0.0
    %1357 = vmatpush2.msra.mxu0 0.0
    %1358 = vmatprep.subr.mxu0 0.0
    %1359 = vmatpush2.msra.mxu0 0.0
    %1360 = vmatprep.subr.mxu0 0.0
    %1361 = vmatpush2.msra.mxu0 0.0
    %1362 = vmatprep.subr.mxu0 0.0
    %1363 = vmatpush2.msra.mxu0 0.0
    %1364 = vmatprep.subr.mxu0 0.0
    %1365 = vmatpush2.msra.mxu0 0.0
    %1366 = vmatprep.subr.mxu0 0.0
    %1367 = vmatpush2.msra.mxu0 0.0
    %1368 = vmatprep.subr.mxu0 0.0
    %1369 = vmatpush2.msra.mxu0 0.0
    %1370 = vmatprep.subr.mxu0 0.0
    %1371 = vmatpush2.msra.mxu0 0.0
    %1372 = vmatprep.subr.mxu0 0.0
    %1373 = vmatpush2.msra.mxu0 0.0
    %1374 = vmatprep.subr.mxu0 0.0
    %1375 = vmatpush2.msra.mxu0 0.0
    %1376 = vmatprep.subr.mxu0 0.0
    %1377 = vmatpush2.msra.mxu0 0.0
    %1378 = vmatprep.subr.mxu0 0.0
    %1379 = vmatpush2.msra.mxu0 0.0
    %1380 = vmatprep.subr.mxu0 0.0
    %1381 = vmatpush2.msra.mxu0 0.0
    %1382 = vmatprep.subr.mxu0 0.0
    %1383 = vmatpush2.msra.mxu0 0.0
    %1384 = vmatprep.mubr.f32.mxu0 0.0
    %1385 = vmatmul.mubr.f32.gmra.mxu0 %v1318
    %v1386 = vpop.f32.mrf.mxu0
    %v1387 = vadd.f32 %v1316, %v1386
    %v1388 = vpop.f32.mrf.mxu0
    %1389 = vdwg.mxu0
    %v1390 = vxor.u32 %v1387, 2147483648
    %v1391 = vmul.f32 %v1390, 1.442695
    %v1392 = vpow.pop %v1391
    %v1393 = vadd.f32 %v1392, 1.0
    %v1394 = vrcp.pop %v1393
    %v1395 = vmul.f32 1.0, %v1394
    %v1396 = vmul.f32 %v1313, %v1395
    %v1398 = vsel %vm195, %v1396, 0
    %1400 = vmatprep.subr.mxu0 0.0
    %1401 = vmatpush1.msra.mxu0 0.0
    %1402 = vmatprep.subr.mxu0 0.0
    %1403 = vmatpush1.msra.mxu0 0.0
    %1404 = vmatprep.subr.mxu0 0.0
    %1405 = vmatpush1.msra.mxu0 0.0
    %1406 = vmatprep.subr.mxu0 0.0
    %1407 = vmatpush1.msra.mxu0 0.0
    %1408 = vmatprep.subr.mxu0 0.0
    %1409 = vmatpush1.msra.mxu0 0.0
    %1410 = vmatprep.subr.mxu0 0.0
    %1411 = vmatpush1.msra.mxu0 0.0
    %1412 = vmatprep.subr.mxu0 0.0
    %1413 = vmatpush1.msra.mxu0 0.0
    %1414 = vmatprep.subr.mxu0 0.0
    %1415 = vmatpush1.msra.mxu0 0.0
    %1416 = vmatprep.subr.mxu0 0.0
    %1417 = vmatpush1.msra.mxu0 %v149
    %1418 = vmatprep.subr.mxu0 0.0
    %1419 = vmatpush1.msra.mxu0 %v148
    %1420 = vmatprep.subr.mxu0 0.0
    %1421 = vmatpush1.msra.mxu0 %v147
    %1422 = vmatprep.subr.mxu0 0.0
    %1423 = vmatpush1.msra.mxu0 %v146
    %1424 = vmatprep.subr.mxu0 0.0
    %1425 = vmatpush1.msra.mxu0 %v145
    %1426 = vmatprep.subr.mxu0 0.0
    %1427 = vmatpush1.msra.mxu0 %v144
    %1428 = vmatprep.subr.mxu0 0.0
    %1429 = vmatpush1.msra.mxu0 %v143
    %1430 = vmatprep.subr.mxu0 0.0
    %1431 = vmatpush1.msra.mxu0 %v142
    %1432 = vmatprep.subr.mxu0 0.0
    %1433 = vmatpush2.msra.mxu0 0.0
    %1434 = vmatprep.subr.mxu0 0.0
    %1435 = vmatpush2.msra.mxu0 0.0
    %1436 = vmatprep.subr.mxu0 0.0
    %1437 = vmatpush2.msra.mxu0 0.0
    %1438 = vmatprep.subr.mxu0 0.0
    %1439 = vmatpush2.msra.mxu0 0.0
    %1440 = vmatprep.subr.mxu0 0.0
    %1441 = vmatpush2.msra.mxu0 0.0
    %1442 = vmatprep.subr.mxu0 0.0
    %1443 = vmatpush2.msra.mxu0 0.0
    %1444 = vmatprep.subr.mxu0 0.0
    %1445 = vmatpush2.msra.mxu0 0.0
    %1446 = vmatprep.subr.mxu0 0.0
    %1447 = vmatpush2.msra.mxu0 0.0
    %1448 = vmatprep.subr.mxu0 0.0
    %1449 = vmatpush2.msra.mxu0 0.0
    %1450 = vmatprep.subr.mxu0 0.0
    %1451 = vmatpush2.msra.mxu0 0.0
    %1452 = vmatprep.subr.mxu0 0.0
    %1453 = vmatpush2.msra.mxu0 0.0
    %1454 = vmatprep.subr.mxu0 0.0
    %1455 = vmatpush2.msra.mxu0 0.0
    %1456 = vmatprep.subr.mxu0 0.0
    %1457 = vmatpush2.msra.mxu0 0.0
    %1458 = vmatprep.subr.mxu0 0.0
    %1459 = vmatpush2.msra.mxu0 0.0
    %1460 = vmatprep.subr.mxu0 0.0
    %1461 = vmatpush2.msra.mxu0 0.0
    %1462 = vmatprep.subr.mxu0 0.0
    %1463 = vmatpush2.msra.mxu0 0.0
    %1464 = vmatprep.mubr.f32.mxu0 0.0
    %1465 = vmatmul.mubr.f32.gmra.mxu0 %v1398
    %v1466 = vpop.f32.mrf.mxu0
    %v1467 = vadd.f32 0.0, %v1466
    %v1468 = vpop.f32.mrf.mxu0
    %1469 = vdwg.mxu0
    %s1470 = scalar_lea.vmem [#allocation10], 10
    %v1471 = vld [vmem:[%s1470] sm:$0x3]
    %v1472 = vadd.f32 %v1467, %v1471
    %v1473 = vmax.f32 %v1472, 0.0
    %v1474 = vmul.f32 %v1473, %v356
    %v1475 = vsel %vm359, %v1474, 0.0
    %1476 = vadd.xlane.f32.xlu0 %v1475
    %v1477 = vpop.xlane.xlu0 %1476
    %v1478 = vadd.f32 %v1477, %v367
    %v1479 = vxor.u32 %v1478, 2147483648
    %v1480 = vmul.f32 %v1479, 1.442695
    %v1481 = vpow.pop %v1480
    %v1482 = vadd.f32 %v1481, 1.0
    %v1483 = vrcp.pop %v1482
    %v1484 = vmul.f32 1.0, %v1483
    %s1485 = scalar_lea.vmem [#allocation12], 10
    %v1486 = vld [vmem:[%s1485] sm:$0x3]
    %1488 = vrot.lane.b32.xlu0 %v1486, 32
    %v1489 = vpop.permute.xlu0 %1488
    %v1491 = vadd.f32 %v1467, %v1489
    %v1492 = vtanh.pop %v1491
    %v1493 = vadd.f32 %v1396, %v1492
    %1495 = vrot.lane.b32.xlu0 %v1493, 96
    %v1496 = vpop.permute.xlu0 %1495
    %1498 = vst.msk [vmem:[#allocation3] sm:$0x3] %vm359, %v1496
    %1500 = vrot.lane.b32.xlu0 %v1492, 64
    %v1501 = vpop.permute.xlu0 %1500
    %v1503 = vadd.f32 %v1396, %v1501
    %s1504 = smul.u32 %s1285, 2
    %s1505 = scalar_lea.vmem [#allocation2], %s1504
    %1506 = vst.msk [vmem:[%s1505] sm:$0x3] %vm359, %v1503
    %s1507 = sadd.s32 %s158, 6
    %s1508 = sshra.s32 %s1507, 7
    %s1509 = sand.u32 %s1507, 127
    %s1510 = sadd.s32 %s1508, %s112
    %s1511 = smul.u32 %s1510, 128
    %s1512 = sshra.s32 %s1507, 7
    %s1513 = sand.u32 %s1507, 127
    %s1514 = sadd.s32 %s1511, %s1513
    %s1515 = sld [smem:[#allocation6 + %s1514]]
    %s1516 = smul.u32 %s1515, 2
    %s1517 = scalar_lea.vmem [#allocation2], %s1516
    %v1518 = vld [vmem:[%s1517] sm:$0x1]
    %1519 = vst.msk [vmem:[#allocation4] sm:$0x1] %vm170, %v1518
    %s1520 = sadd.s32 %s1508, %s172
    %s1521 = smul.u32 %s1520, 128
    %s1522 = sadd.s32 %s1521, %s1513
    %s1523 = sld [smem:[#allocation6 + %s1522]]
    %s1524 = smul.u32 %s1523, 2
    %s1525 = sadd.s32 %s1524, 1
    %s1526 = scalar_lea.vmem [#allocation2], %s1525
    %v1527 = vld [vmem:[%s1526] sm:$0x1]
    %1528 = vst.msk [vmem:[#allocation4 + $0x1] sm:$0x1] %vm170, %v1527
    %v1529 = vld [vmem:[#allocation4] sm:$0x3]
    %v1530 = vld [vmem:[#allocation3] sm:$0x3]
    %1532 = vrot.lane.b32.xlu0 %v1530, 32
    %v1533 = vpop.permute.xlu0 %1532
    %v1535 = vsel %vm188, %v1529, %v1533
    %s1536 = scalar_lea.vmem [#allocation8], 12
    %v1537 = vld [vmem:[%s1536] sm:$0x3]
    %v1538 = vsel %vm188, %v1537, %v192
    %v1540 = vsel %vm195, %v1535, 0
    %1542 = vmatprep.subr.mxu0 0.0
    %1543 = vmatpush1.msra.mxu0 0.0
    %1544 = vmatprep.subr.mxu0 0.0
    %1545 = vmatpush1.msra.mxu0 0.0
    %1546 = vmatprep.subr.mxu0 0.0
    %1547 = vmatpush1.msra.mxu0 0.0
    %1548 = vmatprep.subr.mxu0 0.0
    %1549 = vmatpush1.msra.mxu0 0.0
    %1550 = vmatprep.subr.mxu0 0.0
    %1551 = vmatpush1.msra.mxu0 0.0
    %1552 = vmatprep.subr.mxu0 0.0
    %1553 = vmatpush1.msra.mxu0 0.0
    %1554 = vmatprep.subr.mxu0 0.0
    %1555 = vmatpush1.msra.mxu0 0.0
    %1556 = vmatprep.subr.mxu0 0.0
    %1557 = vmatpush1.msra.mxu0 0.0
    %1558 = vmatprep.subr.mxu0 0.0
    %1559 = vmatpush1.msra.mxu0 %v141
    %1560 = vmatprep.subr.mxu0 0.0
    %1561 = vmatpush1.msra.mxu0 %v140
    %1562 = vmatprep.subr.mxu0 0.0
    %1563 = vmatpush1.msra.mxu0 %v139
    %1564 = vmatprep.subr.mxu0 0.0
    %1565 = vmatpush1.msra.mxu0 %v138
    %1566 = vmatprep.subr.mxu0 0.0
    %1567 = vmatpush1.msra.mxu0 %v137
    %1568 = vmatprep.subr.mxu0 0.0
    %1569 = vmatpush1.msra.mxu0 %v136
    %1570 = vmatprep.subr.mxu0 0.0
    %1571 = vmatpush1.msra.mxu0 %v135
    %1572 = vmatprep.subr.mxu0 0.0
    %1573 = vmatpush1.msra.mxu0 %v134
    %1574 = vmatprep.subr.mxu0 0.0
    %1575 = vmatpush2.msra.mxu0 0.0
    %1576 = vmatprep.subr.mxu0 0.0
    %1577 = vmatpush2.msra.mxu0 0.0
    %1578 = vmatprep.subr.mxu0 0.0
    %1579 = vmatpush2.msra.mxu0 0.0
    %1580 = vmatprep.subr.mxu0 0.0
    %1581 = vmatpush2.msra.mxu0 0.0
    %1582 = vmatprep.subr.mxu0 0.0
    %1583 = vmatpush2.msra.mxu0 0.0
    %1584 = vmatprep.subr.mxu0 0.0
    %1585 = vmatpush2.msra.mxu0 0.0
    %1586 = vmatprep.subr.mxu0 0.0
    %1587 = vmatpush2.msra.mxu0 0.0
    %1588 = vmatprep.subr.mxu0 0.0
    %1589 = vmatpush2.msra.mxu0 0.0
    %1590 = vmatprep.subr.mxu0 0.0
    %1591 = vmatpush2.msra.mxu0 0.0
    %1592 = vmatprep.subr.mxu0 0.0
    %1593 = vmatpush2.msra.mxu0 0.0
    %1594 = vmatprep.subr.mxu0 0.0
    %1595 = vmatpush2.msra.mxu0 0.0
    %1596 = vmatprep.subr.mxu0 0.0
    %1597 = vmatpush2.msra.mxu0 0.0
    %1598 = vmatprep.subr.mxu0 0.0
    %1599 = vmatpush2.msra.mxu0 0.0
    %1600 = vmatprep.subr.mxu0 0.0
    %1601 = vmatpush2.msra.mxu0 0.0
    %1602 = vmatprep.subr.mxu0 0.0
    %1603 = vmatpush2.msra.mxu0 0.0
    %1604 = vmatprep.subr.mxu0 0.0
    %1605 = vmatpush2.msra.mxu0 0.0
    %1606 = vmatprep.mubr.f32.mxu0 0.0
    %1607 = vmatmul.mubr.f32.gmra.mxu0 %v1540
    %v1608 = vpop.f32.mrf.mxu0
    %v1609 = vadd.f32 %v1538, %v1608
    %v1610 = vpop.f32.mrf.mxu0
    %1611 = vdwg.mxu0
    %v1612 = vxor.u32 %v1609, 2147483648
    %v1613 = vmul.f32 %v1612, 1.442695
    %v1614 = vpow.pop %v1613
    %v1615 = vadd.f32 %v1614, 1.0
    %v1616 = vrcp.pop %v1615
    %v1617 = vmul.f32 1.0, %v1616
    %v1618 = vmul.f32 %v1535, %v1617
    %v1620 = vsel %vm195, %v1618, 0
    %1622 = vmatprep.subr.mxu0 0.0
    %1623 = vmatpush1.msra.mxu0 0.0
    %1624 = vmatprep.subr.mxu0 0.0
    %1625 = vmatpush1.msra.mxu0 0.0
    %1626 = vmatprep.subr.mxu0 0.0
    %1627 = vmatpush1.msra.mxu0 0.0
    %1628 = vmatprep.subr.mxu0 0.0
    %1629 = vmatpush1.msra.mxu0 0.0
    %1630 = vmatprep.subr.mxu0 0.0
    %1631 = vmatpush1.msra.mxu0 0.0
    %1632 = vmatprep.subr.mxu0 0.0
    %1633 = vmatpush1.msra.mxu0 0.0
    %1634 = vmatprep.subr.mxu0 0.0
    %1635 = vmatpush1.msra.mxu0 0.0
    %1636 = vmatprep.subr.mxu0 0.0
    %1637 = vmatpush1.msra.mxu0 0.0
    %1638 = vmatprep.subr.mxu0 0.0
    %1639 = vmatpush1.msra.mxu0 %v149
    %1640 = vmatprep.subr.mxu0 0.0
    %1641 = vmatpush1.msra.mxu0 %v148
    %1642 = vmatprep.subr.mxu0 0.0
    %1643 = vmatpush1.msra.mxu0 %v147
    %1644 = vmatprep.subr.mxu0 0.0
    %1645 = vmatpush1.msra.mxu0 %v146
    %1646 = vmatprep.subr.mxu0 0.0
    %1647 = vmatpush1.msra.mxu0 %v145
    %1648 = vmatprep.subr.mxu0 0.0
    %1649 = vmatpush1.msra.mxu0 %v144
    %1650 = vmatprep.subr.mxu0 0.0
    %1651 = vmatpush1.msra.mxu0 %v143
    %1652 = vmatprep.subr.mxu0 0.0
    %1653 = vmatpush1.msra.mxu0 %v142
    %1654 = vmatprep.subr.mxu0 0.0
    %1655 = vmatpush2.msra.mxu0 0.0
    %1656 = vmatprep.subr.mxu0 0.0
    %1657 = vmatpush2.msra.mxu0 0.0
    %1658 = vmatprep.subr.mxu0 0.0
    %1659 = vmatpush2.msra.mxu0 0.0
    %1660 = vmatprep.subr.mxu0 0.0
    %1661 = vmatpush2.msra.mxu0 0.0
    %1662 = vmatprep.subr.mxu0 0.0
    %1663 = vmatpush2.msra.mxu0 0.0
    %1664 = vmatprep.subr.mxu0 0.0
    %1665 = vmatpush2.msra.mxu0 0.0
    %1666 = vmatprep.subr.mxu0 0.0
    %1667 = vmatpush2.msra.mxu0 0.0
    %1668 = vmatprep.subr.mxu0 0.0
    %1669 = vmatpush2.msra.mxu0 0.0
    %1670 = vmatprep.subr.mxu0 0.0
    %1671 = vmatpush2.msra.mxu0 0.0
    %1672 = vmatprep.subr.mxu0 0.0
    %1673 = vmatpush2.msra.mxu0 0.0
    %1674 = vmatprep.subr.mxu0 0.0
    %1675 = vmatpush2.msra.mxu0 0.0
    %1676 = vmatprep.subr.mxu0 0.0
    %1677 = vmatpush2.msra.mxu0 0.0
    %1678 = vmatprep.subr.mxu0 0.0
    %1679 = vmatpush2.msra.mxu0 0.0
    %1680 = vmatprep.subr.mxu0 0.0
    %1681 = vmatpush2.msra.mxu0 0.0
    %1682 = vmatprep.subr.mxu0 0.0
    %1683 = vmatpush2.msra.mxu0 0.0
    %1684 = vmatprep.subr.mxu0 0.0
    %1685 = vmatpush2.msra.mxu0 0.0
    %1686 = vmatprep.mubr.f32.mxu0 0.0
    %1687 = vmatmul.mubr.f32.gmra.mxu0 %v1620
    %v1688 = vpop.f32.mrf.mxu0
    %v1689 = vadd.f32 0.0, %v1688
    %v1690 = vpop.f32.mrf.mxu0
    %1691 = vdwg.mxu0
    %s1692 = scalar_lea.vmem [#allocation10], 12
    %v1693 = vld [vmem:[%s1692] sm:$0x3]
    %v1694 = vadd.f32 %v1689, %v1693
    %v1695 = vmax.f32 %v1694, 0.0
    %v1696 = vmul.f32 %v1695, %v356
    %v1697 = vsel %vm359, %v1696, 0.0
    %1698 = vadd.xlane.f32.xlu0 %v1697
    %v1699 = vpop.xlane.xlu0 %1698
    %v1700 = vadd.f32 %v1699, %v367
    %v1701 = vxor.u32 %v1700, 2147483648
    %v1702 = vmul.f32 %v1701, 1.442695
    %v1703 = vpow.pop %v1702
    %v1704 = vadd.f32 %v1703, 1.0
    %v1705 = vrcp.pop %v1704
    %v1706 = vmul.f32 1.0, %v1705
    %s1707 = scalar_lea.vmem [#allocation12], 12
    %v1708 = vld [vmem:[%s1707] sm:$0x3]
    %1710 = vrot.lane.b32.xlu0 %v1708, 32
    %v1711 = vpop.permute.xlu0 %1710
    %v1713 = vadd.f32 %v1689, %v1711
    %v1714 = vtanh.pop %v1713
    %v1715 = vadd.f32 %v1618, %v1714
    %1717 = vrot.lane.b32.xlu0 %v1715, 96
    %v1718 = vpop.permute.xlu0 %1717
    %1720 = vst.msk [vmem:[#allocation3] sm:$0x3] %vm359, %v1718
    %1722 = vrot.lane.b32.xlu0 %v1714, 64
    %v1723 = vpop.permute.xlu0 %1722
    %v1725 = vadd.f32 %v1618, %v1723
    %s1726 = smul.u32 %s1507, 2
    %s1727 = scalar_lea.vmem [#allocation2], %s1726
    %1728 = vst.msk [vmem:[%s1727] sm:$0x3] %vm359, %v1725
    %s1729 = sadd.s32 %s158, 7
    %s1730 = sshra.s32 %s1729, 7
    %s1731 = sand.u32 %s1729, 127
    %s1732 = sadd.s32 %s1730, %s112
    %s1733 = smul.u32 %s1732, 128
    %s1734 = sshra.s32 %s1729, 7
    %s1735 = sand.u32 %s1729, 127
    %s1736 = sadd.s32 %s1733, %s1735
    %s1737 = sld [smem:[#allocation6 + %s1736]]
    %s1738 = smul.u32 %s1737, 2
    %s1739 = scalar_lea.vmem [#allocation2], %s1738
    %v1740 = vld [vmem:[%s1739] sm:$0x1]
    %1741 = vst.msk [vmem:[#allocation4] sm:$0x1] %vm170, %v1740
    %s1742 = sadd.s32 %s1730, %s172
    %s1743 = smul.u32 %s1742, 128
    %s1744 = sadd.s32 %s1743, %s1735
    %s1745 = sld [smem:[#allocation6 + %s1744]]
    %s1746 = smul.u32 %s1745, 2
    %s1747 = sadd.s32 %s1746, 1
    %s1748 = scalar_lea.vmem [#allocation2], %s1747
    %v1749 = vld [vmem:[%s1748] sm:$0x1]
    %1750 = vst.msk [vmem:[#allocation4 + $0x1] sm:$0x1] %vm170, %v1749
    %v1751 = vld [vmem:[#allocation4] sm:$0x3]
    %v1752 = vld [vmem:[#allocation3] sm:$0x3]
    %1754 = vrot.lane.b32.xlu0 %v1752, 32
    %v1755 = vpop.permute.xlu0 %1754
    %v1757 = vsel %vm188, %v1751, %v1755
    %s1758 = scalar_lea.vmem [#allocation8], 14
    %v1759 = vld [vmem:[%s1758] sm:$0x3]
    %v1760 = vsel %vm188, %v1759, %v192
    %v1762 = vsel %vm195, %v1757, 0
    %1764 = vmatprep.subr.mxu0 0.0
    %1765 = vmatpush1.msra.mxu0 0.0
    %1766 = vmatprep.subr.mxu0 0.0
    %1767 = vmatpush1.msra.mxu0 0.0
    %1768 = vmatprep.subr.mxu0 0.0
    %1769 = vmatpush1.msra.mxu0 0.0
    %1770 = vmatprep.subr.mxu0 0.0
    %1771 = vmatpush1.msra.mxu0 0.0
    %1772 = vmatprep.subr.mxu0 0.0
    %1773 = vmatpush1.msra.mxu0 0.0
    %1774 = vmatprep.subr.mxu0 0.0
    %1775 = vmatpush1.msra.mxu0 0.0
    %1776 = vmatprep.subr.mxu0 0.0
    %1777 = vmatpush1.msra.mxu0 0.0
    %1778 = vmatprep.subr.mxu0 0.0
    %1779 = vmatpush1.msra.mxu0 0.0
    %1780 = vmatprep.subr.mxu0 0.0
    %1781 = vmatpush1.msra.mxu0 %v141
    %1782 = vmatprep.subr.mxu0 0.0
    %1783 = vmatpush1.msra.mxu0 %v140
    %1784 = vmatprep.subr.mxu0 0.0
    %1785 = vmatpush1.msra.mxu0 %v139
    %1786 = vmatprep.subr.mxu0 0.0
    %1787 = vmatpush1.msra.mxu0 %v138
    %1788 = vmatprep.subr.mxu0 0.0
    %1789 = vmatpush1.msra.mxu0 %v137
    %1790 = vmatprep.subr.mxu0 0.0
    %1791 = vmatpush1.msra.mxu0 %v136
    %1792 = vmatprep.subr.mxu0 0.0
    %1793 = vmatpush1.msra.mxu0 %v135
    %1794 = vmatprep.subr.mxu0 0.0
    %1795 = vmatpush1.msra.mxu0 %v134
    %1796 = vmatprep.subr.mxu0 0.0
    %1797 = vmatpush2.msra.mxu0 0.0
    %1798 = vmatprep.subr.mxu0 0.0
    %1799 = vmatpush2.msra.mxu0 0.0
    %1800 = vmatprep.subr.mxu0 0.0
    %1801 = vmatpush2.msra.mxu0 0.0
    %1802 = vmatprep.subr.mxu0 0.0
    %1803 = vmatpush2.msra.mxu0 0.0
    %1804 = vmatprep.subr.mxu0 0.0
    %1805 = vmatpush2.msra.mxu0 0.0
    %1806 = vmatprep.subr.mxu0 0.0
    %1807 = vmatpush2.msra.mxu0 0.0
    %1808 = vmatprep.subr.mxu0 0.0
    %1809 = vmatpush2.msra.mxu0 0.0
    %1810 = vmatprep.subr.mxu0 0.0
    %1811 = vmatpush2.msra.mxu0 0.0
    %1812 = vmatprep.subr.mxu0 0.0
    %1813 = vmatpush2.msra.mxu0 0.0
    %1814 = vmatprep.subr.mxu0 0.0
    %1815 = vmatpush2.msra.mxu0 0.0
    %1816 = vmatprep.subr.mxu0 0.0
    %1817 = vmatpush2.msra.mxu0 0.0
    %1818 = vmatprep.subr.mxu0 0.0
    %1819 = vmatpush2.msra.mxu0 0.0
    %1820 = vmatprep.subr.mxu0 0.0
    %1821 = vmatpush2.msra.mxu0 0.0
    %1822 = vmatprep.subr.mxu0 0.0
    %1823 = vmatpush2.msra.mxu0 0.0
    %1824 = vmatprep.subr.mxu0 0.0
    %1825 = vmatpush2.msra.mxu0 0.0
    %1826 = vmatprep.subr.mxu0 0.0
    %1827 = vmatpush2.msra.mxu0 0.0
    %1828 = vmatprep.mubr.f32.mxu0 0.0
    %1829 = vmatmul.mubr.f32.gmra.mxu0 %v1762
    %v1830 = vpop.f32.mrf.mxu0
    %v1831 = vadd.f32 %v1760, %v1830
    %v1832 = vpop.f32.mrf.mxu0
    %1833 = vdwg.mxu0
    %v1834 = vxor.u32 %v1831, 2147483648
    %v1835 = vmul.f32 %v1834, 1.442695
    %v1836 = vpow.pop %v1835
    %v1837 = vadd.f32 %v1836, 1.0
    %v1838 = vrcp.pop %v1837
    %v1839 = vmul.f32 1.0, %v1838
    %v1840 = vmul.f32 %v1757, %v1839
    %v1842 = vsel %vm195, %v1840, 0
    %1844 = vmatprep.subr.mxu0 0.0
    %1845 = vmatpush1.msra.mxu0 0.0
    %1846 = vmatprep.subr.mxu0 0.0
    %1847 = vmatpush1.msra.mxu0 0.0
    %1848 = vmatprep.subr.mxu0 0.0
    %1849 = vmatpush1.msra.mxu0 0.0
    %1850 = vmatprep.subr.mxu0 0.0
    %1851 = vmatpush1.msra.mxu0 0.0
    %1852 = vmatprep.subr.mxu0 0.0
    %1853 = vmatpush1.msra.mxu0 0.0
    %1854 = vmatprep.subr.mxu0 0.0
    %1855 = vmatpush1.msra.mxu0 0.0
    %1856 = vmatprep.subr.mxu0 0.0
    %1857 = vmatpush1.msra.mxu0 0.0
    %1858 = vmatprep.subr.mxu0 0.0
    %1859 = vmatpush1.msra.mxu0 0.0
    %1860 = vmatprep.subr.mxu0 0.0
    %1861 = vmatpush1.msra.mxu0 %v149
    %1862 = vmatprep.subr.mxu0 0.0
    %1863 = vmatpush1.msra.mxu0 %v148
    %1864 = vmatprep.subr.mxu0 0.0
    %1865 = vmatpush1.msra.mxu0 %v147
    %1866 = vmatprep.subr.mxu0 0.0
    %1867 = vmatpush1.msra.mxu0 %v146
    %1868 = vmatprep.subr.mxu0 0.0
    %1869 = vmatpush1.msra.mxu0 %v145
    %1870 = vmatprep.subr.mxu0 0.0
    %1871 = vmatpush1.msra.mxu0 %v144
    %1872 = vmatprep.subr.mxu0 0.0
    %1873 = vmatpush1.msra.mxu0 %v143
    %1874 = vmatprep.subr.mxu0 0.0
    %1875 = vmatpush1.msra.mxu0 %v142
    %1876 = vmatprep.subr.mxu0 0.0
    %1877 = vmatpush2.msra.mxu0 0.0
    %1878 = vmatprep.subr.mxu0 0.0
    %1879 = vmatpush2.msra.mxu0 0.0
    %1880 = vmatprep.subr.mxu0 0.0
    %1881 = vmatpush2.msra.mxu0 0.0
    %1882 = vmatprep.subr.mxu0 0.0
    %1883 = vmatpush2.msra.mxu0 0.0
    %1884 = vmatprep.subr.mxu0 0.0
    %1885 = vmatpush2.msra.mxu0 0.0
    %1886 = vmatprep.subr.mxu0 0.0
    %1887 = vmatpush2.msra.mxu0 0.0
    %1888 = vmatprep.subr.mxu0 0.0
    %1889 = vmatpush2.msra.mxu0 0.0
    %1890 = vmatprep.subr.mxu0 0.0
    %1891 = vmatpush2.msra.mxu0 0.0
    %1892 = vmatprep.subr.mxu0 0.0
    %1893 = vmatpush2.msra.mxu0 0.0
    %1894 = vmatprep.subr.mxu0 0.0
    %1895 = vmatpush2.msra.mxu0 0.0
    %1896 = vmatprep.subr.mxu0 0.0
    %1897 = vmatpush2.msra.mxu0 0.0
    %1898 = vmatprep.subr.mxu0 0.0
    %1899 = vmatpush2.msra.mxu0 0.0
    %1900 = vmatprep.subr.mxu0 0.0
    %1901 = vmatpush2.msra.mxu0 0.0
    %1902 = vmatprep.subr.mxu0 0.0
    %1903 = vmatpush2.msra.mxu0 0.0
    %1904 = vmatprep.subr.mxu0 0.0
    %1905 = vmatpush2.msra.mxu0 0.0
    %1906 = vmatprep.subr.mxu0 0.0
    %1907 = vmatpush2.msra.mxu0 0.0
    %1908 = vmatprep.mubr.f32.mxu0 0.0
    %1909 = vmatmul.mubr.f32.gmra.mxu0 %v1842
    %v1910 = vpop.f32.mrf.mxu0
    %v1911 = vadd.f32 0.0, %v1910
    %v1912 = vpop.f32.mrf.mxu0
    %1913 = vdwg.mxu0
    %s1914 = scalar_lea.vmem [#allocation10], 14
    %v1915 = vld [vmem:[%s1914] sm:$0x3]
    %v1916 = vadd.f32 %v1911, %v1915
    %v1917 = vmax.f32 %v1916, 0.0
    %v1918 = vmul.f32 %v1917, %v356
    %v1919 = vsel %vm359, %v1918, 0.0
    %1920 = vadd.xlane.f32.xlu0 %v1919
    %v1921 = vpop.xlane.xlu0 %1920
    %v1922 = vadd.f32 %v1921, %v367
    %v1923 = vxor.u32 %v1922, 2147483648
    %v1924 = vmul.f32 %v1923, 1.442695
    %v1925 = vpow.pop %v1924
    %v1926 = vadd.f32 %v1925, 1.0
    %v1927 = vrcp.pop %v1926
    %v1928 = vmul.f32 1.0, %v1927
    %s1929 = scalar_lea.vmem [#allocation12], 14
    %v1930 = vld [vmem:[%s1929] sm:$0x3]
    %1932 = vrot.lane.b32.xlu0 %v1930, 32
    %v1933 = vpop.permute.xlu0 %1932
    %v1935 = vadd.f32 %v1911, %v1933
    %v1936 = vtanh.pop %v1935
    %v1937 = vadd.f32 %v1840, %v1936
    %1939 = vrot.lane.b32.xlu0 %v1937, 96
    %v1940 = vpop.permute.xlu0 %1939
    %1942 = vst.msk [vmem:[#allocation3] sm:$0x3] %vm359, %v1940
    %1944 = vrot.lane.b32.xlu0 %v1936, 64
    %v1945 = vpop.permute.xlu0 %1944
    %v1947 = vadd.f32 %v1840, %v1945
    %s1948 = smul.u32 %s1729, 2
    %s1949 = scalar_lea.vmem [#allocation2], %s1948
    %1950 = vst.msk [vmem:[%s1949] sm:$0x3] %vm359, %v1947
    %1952 = vrot.lane.b32.xlu0 %v596, 1
    %v1953 = vpop.permute.xlu0 %1952
    %1956 = vrot.lane.b32.xlu0 %v818, 2
    %v1957 = vpop.permute.xlu0 %1956
    %1960 = vrot.lane.b32.xlu0 %v1040, 3
    %v1961 = vpop.permute.xlu0 %1960
    %1964 = vrot.lane.b32.xlu0 %v1262, 4
    %v1965 = vpop.permute.xlu0 %1964
    %1968 = vrot.lane.b32.xlu0 %v1484, 5
    %v1969 = vpop.permute.xlu0 %1968
    %1972 = vrot.lane.b32.xlu0 %v1706, 6
    %v1973 = vpop.permute.xlu0 %1972
    %1976 = vrot.lane.b32.xlu0 %v1928, 7
    %v1977 = vpop.permute.xlu0 %1976
    %vm1979 = vcmask 7168
    %v1980 = vsel %vm1979, %v375, %v1953
    %vm1981 = vcmask 15360
    %v1982 = vsel %vm1981, %v1980, %v1957
    %vm1983 = vcmask 23552
    %v1984 = vsel %vm1983, %v1982, %v1961
    %vm1985 = vcmask 31744
    %v1986 = vsel %vm1985, %v1984, %v1965
    %vm1987 = vcmask 39936
    %v1988 = vsel %vm1987, %v1986, %v1969
    %vm1989 = vcmask 48128
    %v1990 = vsel %vm1989, %v1988, %v1973
    %vm1991 = vcmask 56320
    %v1992 = vsel %vm1991, %v1990, %v1977
    %1993 = vxpose.xlu0.b32.start [1/16] %v1992, 128
    %1994 = vxpose.xlu0.b32.cont [2/16] 0.0, 128
    %1995 = vxpose.xlu0.b32.cont [3/16] 0.0, 128
    %1996 = vxpose.xlu0.b32.cont [4/16] 0.0, 128
    %1997 = vxpose.xlu0.b32.cont [5/16] 0.0, 128
    %1998 = vxpose.xlu0.b32.cont [6/16] 0.0, 128
    %1999 = vxpose.xlu0.b32.cont [7/16] 0.0, 128
    %2000 = vxpose.xlu0.b32.cont [8/16] 0.0, 128
    %2001 = vxpose.xlu0.b32.cont [9/16] 0.0, 128
    %2002 = vxpose.xlu0.b32.cont [10/16] 0.0, 128
    %2003 = vxpose.xlu0.b32.cont [11/16] 0.0, 128
    %2004 = vxpose.xlu0.b32.cont [12/16] 0.0, 128
    %2005 = vxpose.xlu0.b32.cont [13/16] 0.0, 128
    %2006 = vxpose.xlu0.b32.cont [14/16] 0.0, 128
    %2007 = vxpose.xlu0.b32.cont [15/16] 0.0, 128
    %2008 = vxpose.xlu0.b32.end [16/16] 0.0, 128
    %v2009 = vpop.trf.xlu0
    %v2010 = vpop.trf.xlu0
    %v2011 = vpop.trf.xlu0
    %v2012 = vpop.trf.xlu0
    %v2013 = vpop.trf.xlu0
    %v2014 = vpop.trf.xlu0
    %v2015 = vpop.trf.xlu0
    %v2016 = vpop.trf.xlu0
    %v2017 = vpop.trf.xlu0
    %v2018 = vpop.trf.xlu0
    %v2019 = vpop.trf.xlu0
    %v2020 = vpop.trf.xlu0
    %v2021 = vpop.trf.xlu0
    %v2022 = vpop.trf.xlu0
    %v2023 = vpop.trf.xlu0
    %v2024 = vpop.trf.xlu0
    %2025 = vst.msk [vmem:[%s11] sm:$0xff] %vm1981, %v2009
    // Predicated region
    $region66: #{tpu_custom_call.1} parent=1 // pred_check
      _
    $region67: #{tpu_custom_call.1} parent=1 // pred_check_branch
      %2027 = sbr.rel (0) target = $region69
    $region68: #{tpu_custom_call.1} parent=1 // pred_region
      _
    $region69: #{tpu_custom_call.1} parent=1 // pred_fallthru
      _
    // Predicated region
    $region70: #{tpu_custom_call.1} parent=1 // pred_check
      _
    $region71: #{tpu_custom_call.1} parent=1 // pred_check_branch
      %2029 = sbr.rel (0) target = $region73
    $region72: #{tpu_custom_call.1} parent=1 // pred_region
      _
    $region73: #{tpu_custom_call.1} parent=1 // pred_fallthru
      _
    %2030 = vsyncpa [#allocation9], 1
    %2031 = vsyncpa [#allocation11], 1
    %2032 = vsyncpa [#allocation14], 1

</llo_original>
